<compile_context>
chip_gen: v5e
topology: v5e:2x2
jax: 0.10.0
libtpu: 0.0.40
codegen_flags: <defaults>
</compile_context>

<pallas_src>
import functools

import jax
import jax.numpy as jnp
from jax.experimental import pallas as pl
from jax.experimental.pallas import tpu as pltpu

BN_EPS = 1e-5
_VMEM_LIMIT = 32 * 1024 * 1024      # >= v7x default scoped limit, << 64 MiB physical
_ACC_BYTES = 128 * 1024             # keep f32 row-tile accumulators ~half the vreg file


def _round_up(x, m):
    return ((x + m - 1) // m) * m


# --------------------------------------------------------------------------
# Pallas kernels
# --------------------------------------------------------------------------

def _conv3x3_bn_relu_kernel(x_ref, w_ref, s_ref, b_ref, o_ref, *, W, use_roll):
    """Valid 3x3 conv (stride 1, no bias) + folded BN + ReLU for one row tile.

    im2col is fused: the input block is one batch element's image flattened to
    full-width rows (bf16); each of the 9 taps is one (L, Cin) x (Cin, Cout)
    MXU dot accumulated in f32.  With `use_roll` the dx=1,2 taps reuse the
    aligned per-dy load via an XLU sublane rotation; the rotated wrap rows land
    only in the last two (garbage) columns of each image row.

    x_ref: (1, rows_in, Cin) bf16     w_ref: (9, Cin, Cout) bf16
    s_ref/b_ref: (1, Cout) f32        o_ref: (1, TR*W, Cout) bf16
    """
    r = pl.program_id(1)
    L = o_ref.shape[1]                       # TR * W full-width rows
    Cout = o_ref.shape[2]
    base = r * L
    acc = jnp.zeros((L, Cout), jnp.float32)
    for dy in range(3):                      # 9 static taps -> 9 MXU dots
        if use_roll:
            start = pl.multiple_of(base + dy * W, 8)
            row = x_ref[0, pl.ds(start, L), :]           # aligned, bf16
            row_f32 = row.astype(jnp.float32)            # rolls done in f32
            for dx in range(3):
                xs = row if dx == 0 else pltpu.roll(
                    row_f32, shift=L - dx, axis=0).astype(jnp.bfloat16)
                acc = acc + jnp.dot(xs, w_ref[dy * 3 + dx],
                                    preferred_element_type=jnp.float32)
        else:
            for dx in range(3):
                xs = x_ref[0, pl.ds(base + dy * W + dx, L), :]
                acc = acc + jnp.dot(xs, w_ref[dy * 3 + dx],
                                    preferred_element_type=jnp.float32)
    o_ref[0] = jnp.maximum(acc * s_ref[...] + b_ref[...], 0.0).astype(o_ref.dtype)


def _xcorr_head_kernel(s_ref, k_ref, w1_ref, s1_ref, b1_ref, w2_ref, b2_ref,
                       o_ref, *, Ws, Hk, Wk, Wk_stored, use_roll):
    """Depthwise cross-correlation fused with the 1x1-conv head, one row tile.

    The correlation tile stays in registers/VMEM (never written to HBM).  Each
    of the Hk template rows needs one aligned full-width load of the search
    features; the Wk column taps reuse it via an XLU sublane rotation (wrap
    rows land only in garbage columns the wrapper slices off).  Multiply-adds
    run in f32 on the VPU (v5e has no bf16 VALU path); accumulators are f32.

    s_ref: (1, rows_s, C) bf16     k_ref: (1, rows_k, C) bf16
    w1_ref: (C, C) bf16            s1_ref/b1_ref: (1, C) f32
    w2_ref: (C, Cop) bf16          b2_ref: (1, Cop) f32
    o_ref:  (1, TR*Ws, Cop) f32    (C / Cop padded to a multiple of 128)
    """
    r = pl.program_id(1)
    L = o_ref.shape[1]                       # TR * Ws full-width rows
    base = r * L
    C = s_ref.shape[2]
    acc = jnp.zeros((L, C), jnp.float32)
    for u in range(Hk):
        if use_roll:
            start = pl.multiple_of(base + u * Ws, 8)
            row = s_ref[0, pl.ds(start, L), :].astype(jnp.float32)
            for v in range(Wk):
                sv = row if v == 0 else pltpu.roll(row, shift=L - v, axis=0)
                kv = k_ref[0, u * Wk_stored + v:u * Wk_stored + v + 1, :]
                acc = acc + sv * kv.astype(jnp.float32)
        else:
            for v in range(Wk):
                sv = s_ref[0, pl.ds(base + u * Ws + v, L), :].astype(jnp.float32)
                kv = k_ref[0, u * Wk_stored + v:u * Wk_stored + v + 1, :]
                acc = acc + sv * kv.astype(jnp.float32)
    # head: 1x1 conv -> BN -> ReLU -> 1x1 conv (+bias); bf16 MXU operands, f32 acc
    h = jnp.dot(acc.astype(jnp.bfloat16), w1_ref[...],
                preferred_element_type=jnp.float32)
    h = jnp.maximum(h * s1_ref[...] + b1_ref[...], 0.0)
    o_ref[0] = jnp.dot(h.astype(jnp.bfloat16), w2_ref[...],
                       preferred_element_type=jnp.float32) + b2_ref[...]


# --------------------------------------------------------------------------
# Wrappers around pallas_call
# --------------------------------------------------------------------------

def _bn_fold(gamma, beta, mean, var):
    scale = gamma * jax.lax.rsqrt(var + BN_EPS)
    return scale, beta - mean * scale


def _row_tile(ho, w, cpad, sublane):
    """Largest TR dividing `ho` whose f32 accumulator (TR*w, cpad) fits the
    budget and whose block second-minor dim (TR*w) respects `sublane`; prefer
    >= 2 row tiles so the grid has work for v7x's second TensorCore (the extra
    grid steps cost ~0.35 us each on single-TC chips -- negligible here)."""
    legal = [tr for tr in range(1, ho + 1)
             if ho % tr == 0 and (tr * w) % sublane == 0
             and tr * w * cpad * 4 <= _ACC_BYTES]
    if not legal:
        return ho                      # full extent is always a legal block shape
    multi = [tr for tr in legal if ho // tr >= 2]
    return max(multi) if multi else max(legal)


def _conv3x3_bn_relu(x_nhwc, w_oihw, scale, bias):
    """Valid 3x3 conv + folded BN + ReLU.

    Returns (features, rows, stored_width): features are
    (B, rows*stored_width, Cpad) bf16 full-width rows whose last two columns
    per image row are wrap garbage; output channels are zero-padded to a
    multiple of 128 (zero scale/bias => padded channels are exactly 0)."""
    B, H, W, Cin = x_nhwc.shape
    Cout = w_oihw.shape[0]
    Cpad = _round_up(Cout, 128)
    Ho = H - 2
    use_roll = (W % 8 == 0)
    TR = _row_tile(Ho, W, Cpad, sublane=16)    # bf16 output block
    R = Ho // TR

    x_flat = x_nhwc.reshape(B, H * W, Cin)
    if not use_roll:                           # offset loads read past the image
        x_flat = jnp.pad(x_flat, ((0, 0), (0, 8), (0, 0)))
    x_flat = x_flat.astype(jnp.bfloat16)
    rows_in = x_flat.shape[1]

    # PyTorch weight (Cout, Cin, 3, 3) -> (3, 3, Cin, Cout) -> (9, Cin, Cpad)
    w9 = jnp.transpose(w_oihw, (2, 3, 1, 0)).reshape(9, Cin, Cout)
    w9 = jnp.pad(w9, ((0, 0), (0, 0), (0, Cpad - Cout))).astype(jnp.bfloat16)
    sp = jnp.pad(scale, (0, Cpad - Cout)).reshape(1, Cpad)
    bp = jnp.pad(bias, (0, Cpad - Cout)).reshape(1, Cpad)

    feat = pl.pallas_call(
        functools.partial(_conv3x3_bn_relu_kernel, W=W, use_roll=use_roll),
        out_shape=jax.ShapeDtypeStruct((B, Ho * W, Cpad), jnp.bfloat16),
        grid=(B, R),
        in_specs=[
            pl.BlockSpec((1, rows_in, Cin), lambda b, r: (b, 0, 0)),
            pl.BlockSpec((9, Cin, Cpad), lambda b, r: (0, 0, 0)),
            pl.BlockSpec((1, Cpad), lambda b, r: (0, 0)),
            pl.BlockSpec((1, Cpad), lambda b, r: (0, 0)),
        ],
        out_specs=pl.BlockSpec((1, TR * W, Cpad), lambda b, r: (b, r, 0)),
        compiler_params=pltpu.CompilerParams(
            dimension_semantics=("parallel", "parallel"),
            vmem_limit_bytes=_VMEM_LIMIT),
    )(x_flat, w9, sp, bp)
    return feat, Ho, W


def _xcorr_head(s_feat, sh, sw, k_feat, kh, kw, w1, s1, b1, w2, b2):
    """Fused depthwise xcorr + head on full-width bf16 feature rows.

    Valid feature widths are sw-2 / kw-2; valid output positions never read the
    stored garbage columns.  Returns (B, Ho, Wo, Co) channel-last f32."""
    B, _, C = s_feat.shape
    Hk, Wk = kh, kw - 2                    # template taps (valid extent)
    Ho, Wo = sh - kh + 1, sw - kw + 1
    hidden = w1.shape[0]
    Co = w2.shape[1]
    Cop = _round_up(Co, 128)
    use_roll = (sw % 8 == 0)
    TR = _row_tile(Ho, sw, C, sublane=8)   # f32 output block
    R = Ho // TR

    if not use_roll:                       # offset loads read past the features
        s_feat = jnp.pad(s_feat,
                         ((0, 0), (0, _round_up(max(Wk - 1, 1), 8)), (0, 0)))
    rows_s = s_feat.shape[1]
    rows_k = k_feat.shape[1]

    w1p = jnp.pad(w1, ((0, C - hidden), (0, C - hidden))).astype(jnp.bfloat16)
    s1p = jnp.pad(s1, (0, C - hidden)).reshape(1, C)
    b1p = jnp.pad(b1, (0, C - hidden)).reshape(1, C)
    w2p = jnp.pad(w2, ((0, C - hidden), (0, Cop - Co))).astype(jnp.bfloat16)
    b2p = jnp.pad(b2, (0, Cop - Co)).reshape(1, Cop)

    out = pl.pallas_call(
        functools.partial(_xcorr_head_kernel, Ws=sw, Hk=Hk, Wk=Wk,
                          Wk_stored=kw, use_roll=use_roll),
        out_shape=jax.ShapeDtypeStruct((B, Ho * sw, Cop), jnp.float32),
        grid=(B, R),
        in_specs=[
            pl.BlockSpec((1, rows_s, C), lambda b, r: (b, 0, 0)),
            pl.BlockSpec((1, rows_k, C), lambda b, r: (b, 0, 0)),
            pl.BlockSpec((C, C), lambda b, r: (0, 0)),
            pl.BlockSpec((1, C), lambda b, r: (0, 0)),
            pl.BlockSpec((1, C), lambda b, r: (0, 0)),
            pl.BlockSpec((C, Cop), lambda b, r: (0, 0)),
            pl.BlockSpec((1, Cop), lambda b, r: (0, 0)),
        ],
        out_specs=pl.BlockSpec((1, TR * sw, Cop), lambda b, r: (b, r, 0)),
        compiler_params=pltpu.CompilerParams(
            dimension_semantics=("parallel", "parallel"),
            vmem_limit_bytes=_VMEM_LIMIT),
    )(s_feat, k_feat, w1p, s1p, b1p, w2p, b2p)
    return out.reshape(B, Ho, sw, Cop)[:, :, :Wo, :Co]


def depthwise_xcorr_forward(params, kernel_nchw, search_nchw):
    """Pallas implementation of DepthwiseXCorr.forward (NCHW in, NCHW out)."""
    k_nhwc = jnp.transpose(kernel_nchw, (0, 2, 3, 1)).astype(jnp.float32)
    s_nhwc = jnp.transpose(search_nchw, (0, 2, 3, 1)).astype(jnp.float32)

    sk, bk = _bn_fold(**params['ck_bn'])
    kf, kh, kw = _conv3x3_bn_relu(k_nhwc, params['ck_w'], sk, bk)   # conv_kernel
    ss, bs = _bn_fold(**params['cs_bn'])
    sf, sh, sw = _conv3x3_bn_relu(s_nhwc, params['cs_w'], ss, bs)   # conv_search

    s1, b1 = _bn_fold(**params['h_bn'])
    w1 = jnp.transpose(params['h_w1'][:, :, 0, 0])      # (hidden, hidden)
    w2 = jnp.transpose(params['h_w2'][:, :, 0, 0])      # (hidden, out_channels)
    out_nhwc = _xcorr_head(sf, sh, sw, kf, kh, kw, w1, s1, b1, w2, params['h_b2'])
    return jnp.transpose(out_nhwc, (0, 3, 1, 2))        # NHWC -> NCHW


# --------------------------------------------------------------------------
# Deterministic parameter init (shapes from DepthwiseXCorr.__init__)
# --------------------------------------------------------------------------

def init_params(key, in_channels, hidden, out_channels):
    keys = jax.random.split(key, 8)

    def w(k, shape, s=0.2):
        return jax.random.uniform(k, shape, jnp.float32, -s, s)

    def bn(k, c):
        k1, k2, k3, k4 = jax.random.split(k, 4)
        return dict(gamma=1.0 + 0.1 * jax.random.normal(k1, (c,), jnp.float32),
                    beta=0.1 * jax.random.normal(k2, (c,), jnp.float32),
                    mean=0.1 * jax.random.normal(k3, (c,), jnp.float32),
                    var=0.5 + jax.random.uniform(k4, (c,), jnp.float32))

    return dict(
        ck_w=w(keys[0], (hidden, in_channels, 3, 3)), ck_bn=bn(keys[1], hidden),
        cs_w=w(keys[2], (hidden, in_channels, 3, 3)), cs_bn=bn(keys[3], hidden),
        h_w1=w(keys[4], (hidden, hidden, 1, 1)),      h_bn=bn(keys[5], hidden),
        h_w2=w(keys[6], (out_channels, hidden, 1, 1)),
        h_b2=0.1 * jax.random.normal(keys[7], (out_channels,), jnp.float32),
    )


# --------------------------------------------------------------------------
# Pure-JAX references (correctness check)
# --------------------------------------------------------------------------

def _reference_forward(params, kernel_nchw, search_nchw, match_bf16=False):
    """Pure-JAX reference.  With match_bf16=True the kernels' bf16 rounding
    points (MXU operands and the bf16 feature transport between the two
    pallas_calls; f32 accumulation everywhere) are emulated so the comparison
    is tight; with match_bf16=False it is the plain f32 module forward."""
    HI = jax.lax.Precision.HIGHEST
    rnd = ((lambda t: t.astype(jnp.bfloat16).astype(jnp.float32))
           if match_bf16 else (lambda t: t))

    def conv3x3(x, w):
        x, w = rnd(x), rnd(w)
        ho, wo = x.shape[2] - 2, x.shape[3] - 2
        out = jnp.zeros((x.shape[0], w.shape[0], ho, wo), jnp.float32)
        for dy in range(3):
            for dx in range(3):
                out = out + jnp.einsum('bchw,oc->bohw',
                                       x[:, :, dy:dy + ho, dx:dx + wo],
                                       w[:, :, dy, dx], precision=HI)
        return out

    def bn_relu(x, bnp):
        s, b = _bn_fold(**bnp)
        return jnp.maximum(x * s[None, :, None, None] + b[None, :, None, None], 0.0)

    # rnd() after BN/ReLU emulates the kernels' bf16 feature transport.
    kf = rnd(bn_relu(conv3x3(kernel_nchw, params['ck_w']), params['ck_bn']))
    sf = rnd(bn_relu(conv3x3(search_nchw, params['cs_w']), params['cs_bn']))

    hk, wk = kf.shape[2], kf.shape[3]
    ho, wo = sf.shape[2] - hk + 1, sf.shape[3] - wk + 1
    feat = jnp.zeros((sf.shape[0], sf.shape[1], ho, wo), jnp.float32)
    for u in range(hk):
        for v in range(wk):
            feat = feat + sf[:, :, u:u + ho, v:v + wo] * kf[:, :, u:u + 1, v:v + 1]

    y = bn_relu(jnp.einsum('bchw,oc->bohw', rnd(feat),
                           rnd(params['h_w1'][:, :, 0, 0]), precision=HI),
                params['h_bn'])
    out = jnp.einsum('bchw,oc->bohw', rnd(y), rnd(params['h_w2'][:, :, 0, 0]),
                     precision=HI)
    return out + params['h_b2'][None, :, None, None]


# --------------------------------------------------------------------------

if __name__ == "__main__":
    B, in_channels, hidden, out_channels = 2, 4, 8, 4
    key = jax.random.PRNGKey(0)
    kp, kk, ks = jax.random.split(key, 3)

    params = init_params(kp, in_channels, hidden, out_channels)
    kernel_x = jax.random.normal(kk, (B, in_channels, 8, 8), jnp.float32)     # template
    search_x = jax.random.normal(ks, (B, in_channels, 16, 16), jnp.float32)   # search

    out = jax.jit(depthwise_xcorr_forward)(params, kernel_x, search_x)
    out = jax.block_until_ready(out)
    assert out.shape == (B, out_channels, 9, 9), out.shape

    # Tight check vs. a reference that emulates the kernels' bf16 rounding
    # points (f32 accumulation): same arithmetic, different schedule.
    ref_bf16 = _reference_forward(params, kernel_x, search_x, match_bf16=True)
    err_bf16 = float(jnp.max(jnp.abs(out - ref_bf16)))
    assert err_bf16 < 5e-2, f"bf16-matched max abs error {err_bf16}"

    # Looser sanity check vs. the plain f32 module semantics.
    ref_f32 = _reference_forward(params, kernel_x, search_x, match_bf16=False)
    err_f32 = float(jnp.max(jnp.abs(out - ref_f32)))
    tol_f32 = 0.15 * max(1.0, float(jnp.max(jnp.abs(ref_f32))))
    assert err_f32 < tol_f32, f"f32 max abs error {err_f32} (tol {tol_f32})"

    print("KERNEL_OK")
</pallas_src>

<mosaic_0001>
module attributes {stable_mosaic.version = 11 : i64} {
  func.func @_conv3x3_bn_relu_kernel(%arg0: i32, %arg1: i32, %arg2: memref<1x256x4xbf16, #tpu.memory_space<vmem>>, %arg3: memref<9x4x128xbf16, #tpu.memory_space<vmem>>, %arg4: memref<1x128xf32, #tpu.memory_space<vmem>>, %arg5: memref<1x128xf32, #tpu.memory_space<vmem>>, %arg6: memref<1x112x128xbf16, #tpu.memory_space<vmem>>) attributes {dimension_semantics = [#tpu.dimension_semantics<parallel>, #tpu.dimension_semantics<parallel>], iteration_bounds = array<i64: 2, 2>, scalar_prefetch = 0 : i64, scratch_operands = 0 : i64, tpu.core_type = #tpu.core_type<tc>, window_params = [{transform_indices = @transform_0, window_bounds = array<i64: 1, 256, 4>}, {pipeline_mode = #tpu.pipeline_mode<synchronous>, transform_indices = @transform_1, window_bounds = array<i64: 9, 4, 128>}, {pipeline_mode = #tpu.pipeline_mode<synchronous>, transform_indices = @transform_2, window_bounds = array<i64: 1, 128>}, {pipeline_mode = #tpu.pipeline_mode<synchronous>, transform_indices = @transform_3, window_bounds = array<i64: 1, 128>}, {transform_indices = @transform_4, window_bounds = array<i64: 1, 112, 128>}]} {
    %c112_i32 = arith.constant 112 : i32
    %0 = arith.muli %arg1, %c112_i32 : i32
    %cst = arith.constant 0.000000e+00 : f32
    %1 = vector.broadcast %cst : f32 to vector<112x128xf32>
    %c0_i32 = arith.constant 0 : i32
    %2 = arith.addi %0, %c0_i32 : i32
    %3 = tpu.assume_multiple %2, 8 : i32
    %c0 = arith.constant 0 : index
    %4 = arith.index_cast %3 : i32 to index
    %c0_0 = arith.constant 0 : index
    %5 = vector.load %arg2[%c0, %4, %c0_0] : memref<1x256x4xbf16, #tpu.memory_space<vmem>>, vector<1x112x4xbf16>
    %6 = vector.shape_cast %5 : vector<1x112x4xbf16> to vector<112x4xbf16>
    %7 = arith.extf %6 : vector<112x4xbf16> to vector<112x4xf32>
    %c0_1 = arith.constant 0 : index
    %c0_2 = arith.constant 0 : index
    %c0_3 = arith.constant 0 : index
    %8 = vector.load %arg3[%c0_1, %c0_2, %c0_3] : memref<9x4x128xbf16, #tpu.memory_space<vmem>>, vector<1x4x128xbf16>
    %9 = vector.shape_cast %8 : vector<1x4x128xbf16> to vector<4x128xbf16>
    %cst_4 = arith.constant dense<0.000000e+00> : vector<112x128xf32>
    %10 = tpu.matmul %6, %9, %cst_4 {dimension_numbers = #tpu.dot_dimension_numbers<[1], [0], [0], [1], [0, 0, 1, 1], [], []>} : vector<112x4xbf16>, vector<4x128xbf16>, vector<112x128xf32> -> vector<112x128xf32>
    %11 = arith.addf %1, %10 : vector<112x128xf32>
    %c111_i32 = arith.constant 111 : i32
    %12 = tpu.dynamic_rotate %7 by %c111_i32 dim 0 : vector<112x4xf32>, i32 -> vector<112x4xf32>
    %13 = arith.truncf %12 : vector<112x4xf32> to vector<112x4xbf16>
    %c1 = arith.constant 1 : index
    %c0_5 = arith.constant 0 : index
    %c0_6 = arith.constant 0 : index
    %14 = vector.load %arg3[%c1, %c0_5, %c0_6] : memref<9x4x128xbf16, #tpu.memory_space<vmem>>, vector<1x4x128xbf16>
    %15 = vector.shape_cast %14 : vector<1x4x128xbf16> to vector<4x128xbf16>
    %cst_7 = arith.constant dense<0.000000e+00> : vector<112x128xf32>
    %16 = tpu.matmul %13, %15, %cst_7 {dimension_numbers = #tpu.dot_dimension_numbers<[1], [0], [0], [1], [0, 0, 1, 1], [], []>} : vector<112x4xbf16>, vector<4x128xbf16>, vector<112x128xf32> -> vector<112x128xf32>
    %17 = arith.addf %11, %16 : vector<112x128xf32>
    %c110_i32 = arith.constant 110 : i32
    %18 = tpu.dynamic_rotate %7 by %c110_i32 dim 0 : vector<112x4xf32>, i32 -> vector<112x4xf32>
    %19 = arith.truncf %18 : vector<112x4xf32> to vector<112x4xbf16>
    %c2 = arith.constant 2 : index
    %c0_8 = arith.constant 0 : index
    %c0_9 = arith.constant 0 : index
    %20 = vector.load %arg3[%c2, %c0_8, %c0_9] : memref<9x4x128xbf16, #tpu.memory_space<vmem>>, vector<1x4x128xbf16>
    %21 = vector.shape_cast %20 : vector<1x4x128xbf16> to vector<4x128xbf16>
    %cst_10 = arith.constant dense<0.000000e+00> : vector<112x128xf32>
    %22 = tpu.matmul %19, %21, %cst_10 {dimension_numbers = #tpu.dot_dimension_numbers<[1], [0], [0], [1], [0, 0, 1, 1], [], []>} : vector<112x4xbf16>, vector<4x128xbf16>, vector<112x128xf32> -> vector<112x128xf32>
    %23 = arith.addf %17, %22 : vector<112x128xf32>
    %c16_i32 = arith.constant 16 : i32
    %24 = arith.addi %0, %c16_i32 : i32
    %25 = tpu.assume_multiple %24, 8 : i32
    %c0_11 = arith.constant 0 : index
    %26 = arith.index_cast %25 : i32 to index
    %c0_12 = arith.constant 0 : index
    %27 = vector.load %arg2[%c0_11, %26, %c0_12] : memref<1x256x4xbf16, #tpu.memory_space<vmem>>, vector<1x112x4xbf16>
    %28 = vector.shape_cast %27 : vector<1x112x4xbf16> to vector<112x4xbf16>
    %29 = arith.extf %28 : vector<112x4xbf16> to vector<112x4xf32>
    %c3 = arith.constant 3 : index
    %c0_13 = arith.constant 0 : index
    %c0_14 = arith.constant 0 : index
    %30 = vector.load %arg3[%c3, %c0_13, %c0_14] : memref<9x4x128xbf16, #tpu.memory_space<vmem>>, vector<1x4x128xbf16>
    %31 = vector.shape_cast %30 : vector<1x4x128xbf16> to vector<4x128xbf16>
    %cst_15 = arith.constant dense<0.000000e+00> : vector<112x128xf32>
    %32 = tpu.matmul %28, %31, %cst_15 {dimension_numbers = #tpu.dot_dimension_numbers<[1], [0], [0], [1], [0, 0, 1, 1], [], []>} : vector<112x4xbf16>, vector<4x128xbf16>, vector<112x128xf32> -> vector<112x128xf32>
    %33 = arith.addf %23, %32 : vector<112x128xf32>
    %c111_i32_16 = arith.constant 111 : i32
    %34 = tpu.dynamic_rotate %29 by %c111_i32_16 dim 0 : vector<112x4xf32>, i32 -> vector<112x4xf32>
    %35 = arith.truncf %34 : vector<112x4xf32> to vector<112x4xbf16>
    %c4 = arith.constant 4 : index
    %c0_17 = arith.constant 0 : index
    %c0_18 = arith.constant 0 : index
    %36 = vector.load %arg3[%c4, %c0_17, %c0_18] : memref<9x4x128xbf16, #tpu.memory_space<vmem>>, vector<1x4x128xbf16>
    %37 = vector.shape_cast %36 : vector<1x4x128xbf16> to vector<4x128xbf16>
    %cst_19 = arith.constant dense<0.000000e+00> : vector<112x128xf32>
    %38 = tpu.matmul %35, %37, %cst_19 {dimension_numbers = #tpu.dot_dimension_numbers<[1], [0], [0], [1], [0, 0, 1, 1], [], []>} : vector<112x4xbf16>, vector<4x128xbf16>, vector<112x128xf32> -> vector<112x128xf32>
    %39 = arith.addf %33, %38 : vector<112x128xf32>
    %c110_i32_20 = arith.constant 110 : i32
    %40 = tpu.dynamic_rotate %29 by %c110_i32_20 dim 0 : vector<112x4xf32>, i32 -> vector<112x4xf32>
    %41 = arith.truncf %40 : vector<112x4xf32> to vector<112x4xbf16>
    %c5 = arith.constant 5 : index
    %c0_21 = arith.constant 0 : index
    %c0_22 = arith.constant 0 : index
    %42 = vector.load %arg3[%c5, %c0_21, %c0_22] : memref<9x4x128xbf16, #tpu.memory_space<vmem>>, vector<1x4x128xbf16>
    %43 = vector.shape_cast %42 : vector<1x4x128xbf16> to vector<4x128xbf16>
    %cst_23 = arith.constant dense<0.000000e+00> : vector<112x128xf32>
    %44 = tpu.matmul %41, %43, %cst_23 {dimension_numbers = #tpu.dot_dimension_numbers<[1], [0], [0], [1], [0, 0, 1, 1], [], []>} : vector<112x4xbf16>, vector<4x128xbf16>, vector<112x128xf32> -> vector<112x128xf32>
    %45 = arith.addf %39, %44 : vector<112x128xf32>
    %c32_i32 = arith.constant 32 : i32
    %46 = arith.addi %0, %c32_i32 : i32
    %47 = tpu.assume_multiple %46, 8 : i32
    %c0_24 = arith.constant 0 : index
    %48 = arith.index_cast %47 : i32 to index
    %c0_25 = arith.constant 0 : index
    %49 = vector.load %arg2[%c0_24, %48, %c0_25] : memref<1x256x4xbf16, #tpu.memory_space<vmem>>, vector<1x112x4xbf16>
    %50 = vector.shape_cast %49 : vector<1x112x4xbf16> to vector<112x4xbf16>
    %51 = arith.extf %50 : vector<112x4xbf16> to vector<112x4xf32>
    %c6 = arith.constant 6 : index
    %c0_26 = arith.constant 0 : index
    %c0_27 = arith.constant 0 : index
    %52 = vector.load %arg3[%c6, %c0_26, %c0_27] : memref<9x4x128xbf16, #tpu.memory_space<vmem>>, vector<1x4x128xbf16>
    %53 = vector.shape_cast %52 : vector<1x4x128xbf16> to vector<4x128xbf16>
    %cst_28 = arith.constant dense<0.000000e+00> : vector<112x128xf32>
    %54 = tpu.matmul %50, %53, %cst_28 {dimension_numbers = #tpu.dot_dimension_numbers<[1], [0], [0], [1], [0, 0, 1, 1], [], []>} : vector<112x4xbf16>, vector<4x128xbf16>, vector<112x128xf32> -> vector<112x128xf32>
    %55 = arith.addf %45, %54 : vector<112x128xf32>
    %c111_i32_29 = arith.constant 111 : i32
    %56 = tpu.dynamic_rotate %51 by %c111_i32_29 dim 0 : vector<112x4xf32>, i32 -> vector<112x4xf32>
    %57 = arith.truncf %56 : vector<112x4xf32> to vector<112x4xbf16>
    %c7 = arith.constant 7 : index
    %c0_30 = arith.constant 0 : index
    %c0_31 = arith.constant 0 : index
    %58 = vector.load %arg3[%c7, %c0_30, %c0_31] : memref<9x4x128xbf16, #tpu.memory_space<vmem>>, vector<1x4x128xbf16>
    %59 = vector.shape_cast %58 : vector<1x4x128xbf16> to vector<4x128xbf16>
    %cst_32 = arith.constant dense<0.000000e+00> : vector<112x128xf32>
    %60 = tpu.matmul %57, %59, %cst_32 {dimension_numbers = #tpu.dot_dimension_numbers<[1], [0], [0], [1], [0, 0, 1, 1], [], []>} : vector<112x4xbf16>, vector<4x128xbf16>, vector<112x128xf32> -> vector<112x128xf32>
    %61 = arith.addf %55, %60 : vector<112x128xf32>
    %c110_i32_33 = arith.constant 110 : i32
    %62 = tpu.dynamic_rotate %51 by %c110_i32_33 dim 0 : vector<112x4xf32>, i32 -> vector<112x4xf32>
    %63 = arith.truncf %62 : vector<112x4xf32> to vector<112x4xbf16>
    %c8 = arith.constant 8 : index
    %c0_34 = arith.constant 0 : index
    %c0_35 = arith.constant 0 : index
    %64 = vector.load %arg3[%c8, %c0_34, %c0_35] : memref<9x4x128xbf16, #tpu.memory_space<vmem>>, vector<1x4x128xbf16>
    %65 = vector.shape_cast %64 : vector<1x4x128xbf16> to vector<4x128xbf16>
    %cst_36 = arith.constant dense<0.000000e+00> : vector<112x128xf32>
    %66 = tpu.matmul %63, %65, %cst_36 {dimension_numbers = #tpu.dot_dimension_numbers<[1], [0], [0], [1], [0, 0, 1, 1], [], []>} : vector<112x4xbf16>, vector<4x128xbf16>, vector<112x128xf32> -> vector<112x128xf32>
    %67 = arith.addf %61, %66 : vector<112x128xf32>
    %c0_37 = arith.constant 0 : index
    %c0_38 = arith.constant 0 : index
    %68 = vector.load %arg4[%c0_37, %c0_38] : memref<1x128xf32, #tpu.memory_space<vmem>>, vector<1x128xf32>
    %69 = vector.broadcast %68 : vector<1x128xf32> to vector<112x128xf32>
    %70 = arith.mulf %67, %69 : vector<112x128xf32>
    %c0_39 = arith.constant 0 : index
    %c0_40 = arith.constant 0 : index
    %71 = vector.load %arg5[%c0_39, %c0_40] : memref<1x128xf32, #tpu.memory_space<vmem>>, vector<1x128xf32>
    %72 = vector.broadcast %71 : vector<1x128xf32> to vector<112x128xf32>
    %73 = arith.addf %70, %72 : vector<112x128xf32>
    %cst_41 = arith.constant 0.000000e+00 : f32
    %74 = vector.broadcast %cst_41 : f32 to vector<112x128xf32>
    %75 = arith.maximumf %73, %74 : vector<112x128xf32>
    %76 = arith.truncf %75 : vector<112x128xf32> to vector<112x128xbf16>
    %c0_42 = arith.constant 0 : index
    %c0_43 = arith.constant 0 : index
    %c0_44 = arith.constant 0 : index
    %77 = vector.load %arg6[%c0_42, %c0_43, %c0_44] : memref<1x112x128xbf16, #tpu.memory_space<vmem>>, vector<1x112x128xbf16>
    %78 = vector.shape_cast %77 : vector<1x112x128xbf16> to vector<112x128xbf16>
    %79 = vector.shape_cast %76 : vector<112x128xbf16> to vector<1x112x128xbf16>
    tpu.vector_store %arg6[%c0_42, %c0_43, %c0_44], %79 {strides = array<i32>} : memref<1x112x128xbf16, #tpu.memory_space<vmem>>, vector<1x112x128xbf16>,
    return
  }
  func.func @transform_0(%arg0: i32, %arg1: i32) -> (i32, i32, i32) {
    %c0_i32 = arith.constant 0 : i32
    %c0_i32_0 = arith.constant 0 : i32
    %c0_i32_1 = arith.constant 0 : i32
    return %arg0, %c0_i32, %c0_i32_0 : i32, i32, i32
  }
  func.func @transform_1(%arg0: i32, %arg1: i32) -> (i32, i32, i32) {
    %c0_i32 = arith.constant 0 : i32
    %c0_i32_0 = arith.constant 0 : i32
    %c0_i32_1 = arith.constant 0 : i32
    %c0_i32_2 = arith.constant 0 : i32
    return %c0_i32, %c0_i32_0, %c0_i32_1 : i32, i32, i32
  }
  func.func @transform_2(%arg0: i32, %arg1: i32) -> (i32, i32) {
    %c0_i32 = arith.constant 0 : i32
    %c0_i32_0 = arith.constant 0 : i32
    %c0_i32_1 = arith.constant 0 : i32
    return %c0_i32, %c0_i32_0 : i32, i32
  }
  func.func @transform_3(%arg0: i32, %arg1: i32) -> (i32, i32) {
    %c0_i32 = arith.constant 0 : i32
    %c0_i32_0 = arith.constant 0 : i32
    %c0_i32_1 = arith.constant 0 : i32
    return %c0_i32, %c0_i32_0 : i32, i32
  }
  func.func @transform_4(%arg0: i32, %arg1: i32) -> (i32, i32, i32) {
    %c0_i32 = arith.constant 0 : i32
    %c0_i32_0 = arith.constant 0 : i32
    return %arg0, %arg1, %c0_i32 : i32, i32, i32
  }
}

module attributes {stable_mosaic.version = 11 : i64} {
  func.func @_conv3x3_bn_relu_kernel(%arg0: i32, %arg1: i32, %arg2: memref<1x64x4xbf16, #tpu.memory_space<vmem>>, %arg3: memref<9x4x128xbf16, #tpu.memory_space<vmem>>, %arg4: memref<1x128xf32, #tpu.memory_space<vmem>>, %arg5: memref<1x128xf32, #tpu.memory_space<vmem>>, %arg6: memref<1x16x128xbf16, #tpu.memory_space<vmem>>) attributes {dimension_semantics = [#tpu.dimension_semantics<parallel>, #tpu.dimension_semantics<parallel>], iteration_bounds = array<i64: 2, 3>, scalar_prefetch = 0 : i64, scratch_operands = 0 : i64, tpu.core_type = #tpu.core_type<tc>, window_params = [{transform_indices = @transform_0, window_bounds = array<i64: 1, 64, 4>}, {pipeline_mode = #tpu.pipeline_mode<synchronous>, transform_indices = @transform_1, window_bounds = array<i64: 9, 4, 128>}, {pipeline_mode = #tpu.pipeline_mode<synchronous>, transform_indices = @transform_2, window_bounds = array<i64: 1, 128>}, {pipeline_mode = #tpu.pipeline_mode<synchronous>, transform_indices = @transform_3, window_bounds = array<i64: 1, 128>}, {transform_indices = @transform_4, window_bounds = array<i64: 1, 16, 128>}]} {
    %c16_i32 = arith.constant 16 : i32
    %0 = arith.muli %arg1, %c16_i32 : i32
    %cst = arith.constant 0.000000e+00 : f32
    %1 = vector.broadcast %cst : f32 to vector<16x128xf32>
    %c0_i32 = arith.constant 0 : i32
    %2 = arith.addi %0, %c0_i32 : i32
    %3 = tpu.assume_multiple %2, 8 : i32
    %c0 = arith.constant 0 : index
    %4 = arith.index_cast %3 : i32 to index
    %c0_0 = arith.constant 0 : index
    %5 = vector.load %arg2[%c0, %4, %c0_0] : memref<1x64x4xbf16, #tpu.memory_space<vmem>>, vector<1x16x4xbf16>
    %6 = vector.shape_cast %5 : vector<1x16x4xbf16> to vector<16x4xbf16>
    %7 = arith.extf %6 : vector<16x4xbf16> to vector<16x4xf32>
    %c0_1 = arith.constant 0 : index
    %c0_2 = arith.constant 0 : index
    %c0_3 = arith.constant 0 : index
    %8 = vector.load %arg3[%c0_1, %c0_2, %c0_3] : memref<9x4x128xbf16, #tpu.memory_space<vmem>>, vector<1x4x128xbf16>
    %9 = vector.shape_cast %8 : vector<1x4x128xbf16> to vector<4x128xbf16>
    %cst_4 = arith.constant dense<0.000000e+00> : vector<16x128xf32>
    %10 = tpu.matmul %6, %9, %cst_4 {dimension_numbers = #tpu.dot_dimension_numbers<[1], [0], [0], [1], [0, 0, 1, 1], [], []>} : vector<16x4xbf16>, vector<4x128xbf16>, vector<16x128xf32> -> vector<16x128xf32>
    %11 = arith.addf %1, %10 : vector<16x128xf32>
    %c15_i32 = arith.constant 15 : i32
    %12 = tpu.dynamic_rotate %7 by %c15_i32 dim 0 : vector<16x4xf32>, i32 -> vector<16x4xf32>
    %13 = arith.truncf %12 : vector<16x4xf32> to vector<16x4xbf16>
    %c1 = arith.constant 1 : index
    %c0_5 = arith.constant 0 : index
    %c0_6 = arith.constant 0 : index
    %14 = vector.load %arg3[%c1, %c0_5, %c0_6] : memref<9x4x128xbf16, #tpu.memory_space<vmem>>, vector<1x4x128xbf16>
    %15 = vector.shape_cast %14 : vector<1x4x128xbf16> to vector<4x128xbf16>
    %cst_7 = arith.constant dense<0.000000e+00> : vector<16x128xf32>
    %16 = tpu.matmul %13, %15, %cst_7 {dimension_numbers = #tpu.dot_dimension_numbers<[1], [0], [0], [1], [0, 0, 1, 1], [], []>} : vector<16x4xbf16>, vector<4x128xbf16>, vector<16x128xf32> -> vector<16x128xf32>
    %17 = arith.addf %11, %16 : vector<16x128xf32>
    %c14_i32 = arith.constant 14 : i32
    %18 = tpu.dynamic_rotate %7 by %c14_i32 dim 0 : vector<16x4xf32>, i32 -> vector<16x4xf32>
    %19 = arith.truncf %18 : vector<16x4xf32> to vector<16x4xbf16>
    %c2 = arith.constant 2 : index
    %c0_8 = arith.constant 0 : index
    %c0_9 = arith.constant 0 : index
    %20 = vector.load %arg3[%c2, %c0_8, %c0_9] : memref<9x4x128xbf16, #tpu.memory_space<vmem>>, vector<1x4x128xbf16>
    %21 = vector.shape_cast %20 : vector<1x4x128xbf16> to vector<4x128xbf16>
    %cst_10 = arith.constant dense<0.000000e+00> : vector<16x128xf32>
    %22 = tpu.matmul %19, %21, %cst_10 {dimension_numbers = #tpu.dot_dimension_numbers<[1], [0], [0], [1], [0, 0, 1, 1], [], []>} : vector<16x4xbf16>, vector<4x128xbf16>, vector<16x128xf32> -> vector<16x128xf32>
    %23 = arith.addf %17, %22 : vector<16x128xf32>
    %c8_i32 = arith.constant 8 : i32
    %24 = arith.addi %0, %c8_i32 : i32
    %25 = tpu.assume_multiple %24, 8 : i32
    %c0_11 = arith.constant 0 : index
    %26 = arith.index_cast %25 : i32 to index
    %c0_12 = arith.constant 0 : index
    %27 = vector.load %arg2[%c0_11, %26, %c0_12] : memref<1x64x4xbf16, #tpu.memory_space<vmem>>, vector<1x16x4xbf16>
    %28 = vector.shape_cast %27 : vector<1x16x4xbf16> to vector<16x4xbf16>
    %29 = arith.extf %28 : vector<16x4xbf16> to vector<16x4xf32>
    %c3 = arith.constant 3 : index
    %c0_13 = arith.constant 0 : index
    %c0_14 = arith.constant 0 : index
    %30 = vector.load %arg3[%c3, %c0_13, %c0_14] : memref<9x4x128xbf16, #tpu.memory_space<vmem>>, vector<1x4x128xbf16>
    %31 = vector.shape_cast %30 : vector<1x4x128xbf16> to vector<4x128xbf16>
    %cst_15 = arith.constant dense<0.000000e+00> : vector<16x128xf32>
    %32 = tpu.matmul %28, %31, %cst_15 {dimension_numbers = #tpu.dot_dimension_numbers<[1], [0], [0], [1], [0, 0, 1, 1], [], []>} : vector<16x4xbf16>, vector<4x128xbf16>, vector<16x128xf32> -> vector<16x128xf32>
    %33 = arith.addf %23, %32 : vector<16x128xf32>
    %c15_i32_16 = arith.constant 15 : i32
    %34 = tpu.dynamic_rotate %29 by %c15_i32_16 dim 0 : vector<16x4xf32>, i32 -> vector<16x4xf32>
    %35 = arith.truncf %34 : vector<16x4xf32> to vector<16x4xbf16>
    %c4 = arith.constant 4 : index
    %c0_17 = arith.constant 0 : index
    %c0_18 = arith.constant 0 : index
    %36 = vector.load %arg3[%c4, %c0_17, %c0_18] : memref<9x4x128xbf16, #tpu.memory_space<vmem>>, vector<1x4x128xbf16>
    %37 = vector.shape_cast %36 : vector<1x4x128xbf16> to vector<4x128xbf16>
    %cst_19 = arith.constant dense<0.000000e+00> : vector<16x128xf32>
    %38 = tpu.matmul %35, %37, %cst_19 {dimension_numbers = #tpu.dot_dimension_numbers<[1], [0], [0], [1], [0, 0, 1, 1], [], []>} : vector<16x4xbf16>, vector<4x128xbf16>, vector<16x128xf32> -> vector<16x128xf32>
    %39 = arith.addf %33, %38 : vector<16x128xf32>
    %c14_i32_20 = arith.constant 14 : i32
    %40 = tpu.dynamic_rotate %29 by %c14_i32_20 dim 0 : vector<16x4xf32>, i32 -> vector<16x4xf32>
    %41 = arith.truncf %40 : vector<16x4xf32> to vector<16x4xbf16>
    %c5 = arith.constant 5 : index
    %c0_21 = arith.constant 0 : index
    %c0_22 = arith.constant 0 : index
    %42 = vector.load %arg3[%c5, %c0_21, %c0_22] : memref<9x4x128xbf16, #tpu.memory_space<vmem>>, vector<1x4x128xbf16>
    %43 = vector.shape_cast %42 : vector<1x4x128xbf16> to vector<4x128xbf16>
    %cst_23 = arith.constant dense<0.000000e+00> : vector<16x128xf32>
    %44 = tpu.matmul %41, %43, %cst_23 {dimension_numbers = #tpu.dot_dimension_numbers<[1], [0], [0], [1], [0, 0, 1, 1], [], []>} : vector<16x4xbf16>, vector<4x128xbf16>, vector<16x128xf32> -> vector<16x128xf32>
    %45 = arith.addf %39, %44 : vector<16x128xf32>
    %c16_i32_24 = arith.constant 16 : i32
    %46 = arith.addi %0, %c16_i32_24 : i32
    %47 = tpu.assume_multiple %46, 8 : i32
    %c0_25 = arith.constant 0 : index
    %48 = arith.index_cast %47 : i32 to index
    %c0_26 = arith.constant 0 : index
    %49 = vector.load %arg2[%c0_25, %48, %c0_26] : memref<1x64x4xbf16, #tpu.memory_space<vmem>>, vector<1x16x4xbf16>
    %50 = vector.shape_cast %49 : vector<1x16x4xbf16> to vector<16x4xbf16>
    %51 = arith.extf %50 : vector<16x4xbf16> to vector<16x4xf32>
    %c6 = arith.constant 6 : index
    %c0_27 = arith.constant 0 : index
    %c0_28 = arith.constant 0 : index
    %52 = vector.load %arg3[%c6, %c0_27, %c0_28] : memref<9x4x128xbf16, #tpu.memory_space<vmem>>, vector<1x4x128xbf16>
    %53 = vector.shape_cast %52 : vector<1x4x128xbf16> to vector<4x128xbf16>
    %cst_29 = arith.constant dense<0.000000e+00> : vector<16x128xf32>
    %54 = tpu.matmul %50, %53, %cst_29 {dimension_numbers = #tpu.dot_dimension_numbers<[1], [0], [0], [1], [0, 0, 1, 1], [], []>} : vector<16x4xbf16>, vector<4x128xbf16>, vector<16x128xf32> -> vector<16x128xf32>
    %55 = arith.addf %45, %54 : vector<16x128xf32>
    %c15_i32_30 = arith.constant 15 : i32
    %56 = tpu.dynamic_rotate %51 by %c15_i32_30 dim 0 : vector<16x4xf32>, i32 -> vector<16x4xf32>
    %57 = arith.truncf %56 : vector<16x4xf32> to vector<16x4xbf16>
    %c7 = arith.constant 7 : index
    %c0_31 = arith.constant 0 : index
    %c0_32 = arith.constant 0 : index
    %58 = vector.load %arg3[%c7, %c0_31, %c0_32] : memref<9x4x128xbf16, #tpu.memory_space<vmem>>, vector<1x4x128xbf16>
    %59 = vector.shape_cast %58 : vector<1x4x128xbf16> to vector<4x128xbf16>
    %cst_33 = arith.constant dense<0.000000e+00> : vector<16x128xf32>
    %60 = tpu.matmul %57, %59, %cst_33 {dimension_numbers = #tpu.dot_dimension_numbers<[1], [0], [0], [1], [0, 0, 1, 1], [], []>} : vector<16x4xbf16>, vector<4x128xbf16>, vector<16x128xf32> -> vector<16x128xf32>
    %61 = arith.addf %55, %60 : vector<16x128xf32>
    %c14_i32_34 = arith.constant 14 : i32
    %62 = tpu.dynamic_rotate %51 by %c14_i32_34 dim 0 : vector<16x4xf32>, i32 -> vector<16x4xf32>
    %63 = arith.truncf %62 : vector<16x4xf32> to vector<16x4xbf16>
    %c8 = arith.constant 8 : index
    %c0_35 = arith.constant 0 : index
    %c0_36 = arith.constant 0 : index
    %64 = vector.load %arg3[%c8, %c0_35, %c0_36] : memref<9x4x128xbf16, #tpu.memory_space<vmem>>, vector<1x4x128xbf16>
    %65 = vector.shape_cast %64 : vector<1x4x128xbf16> to vector<4x128xbf16>
    %cst_37 = arith.constant dense<0.000000e+00> : vector<16x128xf32>
    %66 = tpu.matmul %63, %65, %cst_37 {dimension_numbers = #tpu.dot_dimension_numbers<[1], [0], [0], [1], [0, 0, 1, 1], [], []>} : vector<16x4xbf16>, vector<4x128xbf16>, vector<16x128xf32> -> vector<16x128xf32>
    %67 = arith.addf %61, %66 : vector<16x128xf32>
    %c0_38 = arith.constant 0 : index
    %c0_39 = arith.constant 0 : index
    %68 = vector.load %arg4[%c0_38, %c0_39] : memref<1x128xf32, #tpu.memory_space<vmem>>, vector<1x128xf32>
    %69 = vector.broadcast %68 : vector<1x128xf32> to vector<16x128xf32>
    %70 = arith.mulf %67, %69 : vector<16x128xf32>
    %c0_40 = arith.constant 0 : index
    %c0_41 = arith.constant 0 : index
    %71 = vector.load %arg5[%c0_40, %c0_41] : memref<1x128xf32, #tpu.memory_space<vmem>>, vector<1x128xf32>
    %72 = vector.broadcast %71 : vector<1x128xf32> to vector<16x128xf32>
    %73 = arith.addf %70, %72 : vector<16x128xf32>
    %cst_42 = arith.constant 0.000000e+00 : f32
    %74 = vector.broadcast %cst_42 : f32 to vector<16x128xf32>
    %75 = arith.maximumf %73, %74 : vector<16x128xf32>
    %76 = arith.truncf %75 : vector<16x128xf32> to vector<16x128xbf16>
    %c0_43 = arith.constant 0 : index
    %c0_44 = arith.constant 0 : index
    %c0_45 = arith.constant 0 : index
    %77 = vector.load %arg6[%c0_43, %c0_44, %c0_45] : memref<1x16x128xbf16, #tpu.memory_space<vmem>>, vector<1x16x128xbf16>
    %78 = vector.shape_cast %77 : vector<1x16x128xbf16> to vector<16x128xbf16>
    %79 = vector.shape_cast %76 : vector<16x128xbf16> to vector<1x16x128xbf16>
    tpu.vector_store %arg6[%c0_43, %c0_44, %c0_45], %79 {strides = array<i32>} : memref<1x16x128xbf16, #tpu.memory_space<vmem>>, vector<1x16x128xbf16>,
    return
  }
  func.func @transform_0(%arg0: i32, %arg1: i32) -> (i32, i32, i32) {
    %c0_i32 = arith.constant 0 : i32
    %c0_i32_0 = arith.constant 0 : i32
    %c0_i32_1 = arith.constant 0 : i32
    return %arg0, %c0_i32, %c0_i32_0 : i32, i32, i32
  }
  func.func @transform_1(%arg0: i32, %arg1: i32) -> (i32, i32, i32) {
    %c0_i32 = arith.constant 0 : i32
    %c0_i32_0 = arith.constant 0 : i32
    %c0_i32_1 = arith.constant 0 : i32
    %c0_i32_2 = arith.constant 0 : i32
    return %c0_i32, %c0_i32_0, %c0_i32_1 : i32, i32, i32
  }
  func.func @transform_2(%arg0: i32, %arg1: i32) -> (i32, i32) {
    %c0_i32 = arith.constant 0 : i32
    %c0_i32_0 = arith.constant 0 : i32
    %c0_i32_1 = arith.constant 0 : i32
    return %c0_i32, %c0_i32_0 : i32, i32
  }
  func.func @transform_3(%arg0: i32, %arg1: i32) -> (i32, i32) {
    %c0_i32 = arith.constant 0 : i32
    %c0_i32_0 = arith.constant 0 : i32
    %c0_i32_1 = arith.constant 0 : i32
    return %c0_i32, %c0_i32_0 : i32, i32
  }
  func.func @transform_4(%arg0: i32, %arg1: i32) -> (i32, i32, i32) {
    %c0_i32 = arith.constant 0 : i32
    %c0_i32_0 = arith.constant 0 : i32
    return %arg0, %arg1, %c0_i32 : i32, i32, i32
  }
}

module attributes {stable_mosaic.version = 11 : i64} {
  func.func @_xcorr_head_kernel(%arg0: i32, %arg1: i32, %arg2: memref<1x224x128xbf16, #tpu.memory_space<vmem>>, %arg3: memref<1x48x128xbf16, #tpu.memory_space<vmem>>, %arg4: memref<128x128xbf16, #tpu.memory_space<vmem>>, %arg5: memref<1x128xf32, #tpu.memory_space<vmem>>, %arg6: memref<1x128xf32, #tpu.memory_space<vmem>>, %arg7: memref<128x128xbf16, #tpu.memory_space<vmem>>, %arg8: memref<1x128xf32, #tpu.memory_space<vmem>>, %arg9: memref<1x48x128xf32, #tpu.memory_space<vmem>>) attributes {dimension_semantics = [#tpu.dimension_semantics<parallel>, #tpu.dimension_semantics<parallel>], iteration_bounds = array<i64: 2, 3>, scalar_prefetch = 0 : i64, scratch_operands = 0 : i64, tpu.core_type = #tpu.core_type<tc>, window_params = [{transform_indices = @transform_0, window_bounds = array<i64: 1, 224, 128>}, {transform_indices = @transform_1, window_bounds = array<i64: 1, 48, 128>}, {pipeline_mode = #tpu.pipeline_mode<synchronous>, transform_indices = @transform_2, window_bounds = array<i64: 128, 128>}, {pipeline_mode = #tpu.pipeline_mode<synchronous>, transform_indices = @transform_3, window_bounds = array<i64: 1, 128>}, {pipeline_mode = #tpu.pipeline_mode<synchronous>, transform_indices = @transform_4, window_bounds = array<i64: 1, 128>}, {pipeline_mode = #tpu.pipeline_mode<synchronous>, transform_indices = @transform_5, window_bounds = array<i64: 128, 128>}, {pipeline_mode = #tpu.pipeline_mode<synchronous>, transform_indices = @transform_6, window_bounds = array<i64: 1, 128>}, {transform_indices = @transform_7, window_bounds = array<i64: 1, 48, 128>}]} {
    %c48_i32 = arith.constant 48 : i32
    %0 = arith.muli %arg1, %c48_i32 : i32
    %cst = arith.constant 0.000000e+00 : f32
    %1 = vector.broadcast %cst : f32 to vector<48x128xf32>
    %c0_i32 = arith.constant 0 : i32
    %2 = arith.addi %0, %c0_i32 : i32
    %3 = tpu.assume_multiple %2, 8 : i32
    %c0 = arith.constant 0 : index
    %4 = arith.index_cast %3 : i32 to index
    %c0_0 = arith.constant 0 : index
    %5 = vector.load %arg2[%c0, %4, %c0_0] : memref<1x224x128xbf16, #tpu.memory_space<vmem>>, vector<1x48x128xbf16>
    %6 = vector.shape_cast %5 : vector<1x48x128xbf16> to vector<48x128xbf16>
    %7 = arith.extf %6 : vector<48x128xbf16> to vector<48x128xf32>
    %c0_1 = arith.constant 0 : index
    %c0_2 = arith.constant 0 : index
    %c0_3 = arith.constant 0 : index
    %8 = vector.load %arg3[%c0_1, %c0_2, %c0_3] : memref<1x48x128xbf16, #tpu.memory_space<vmem>>, vector<1x1x128xbf16>
    %9 = vector.shape_cast %8 : vector<1x1x128xbf16> to vector<1x128xbf16>
    %10 = arith.extf %9 : vector<1x128xbf16> to vector<1x128xf32>
    %11 = vector.broadcast %10 : vector<1x128xf32> to vector<48x128xf32>
    %12 = arith.mulf %7, %11 : vector<48x128xf32>
    %13 = arith.addf %1, %12 : vector<48x128xf32>
    %c47_i32 = arith.constant 47 : i32
    %14 = tpu.dynamic_rotate %7 by %c47_i32 dim 0 : vector<48x128xf32>, i32 -> vector<48x128xf32>
    %c0_4 = arith.constant 0 : index
    %c1 = arith.constant 1 : index
    %c0_5 = arith.constant 0 : index
    %15 = vector.load %arg3[%c0_4, %c1, %c0_5] : memref<1x48x128xbf16, #tpu.memory_space<vmem>>, vector<1x1x128xbf16>
    %16 = vector.shape_cast %15 : vector<1x1x128xbf16> to vector<1x128xbf16>
    %17 = arith.extf %16 : vector<1x128xbf16> to vector<1x128xf32>
    %18 = vector.broadcast %17 : vector<1x128xf32> to vector<48x128xf32>
    %19 = arith.mulf %14, %18 : vector<48x128xf32>
    %20 = arith.addf %13, %19 : vector<48x128xf32>
    %c46_i32 = arith.constant 46 : i32
    %21 = tpu.dynamic_rotate %7 by %c46_i32 dim 0 : vector<48x128xf32>, i32 -> vector<48x128xf32>
    %c0_6 = arith.constant 0 : index
    %c2 = arith.constant 2 : index
    %c0_7 = arith.constant 0 : index
    %22 = vector.load %arg3[%c0_6, %c2, %c0_7] : memref<1x48x128xbf16, #tpu.memory_space<vmem>>, vector<1x1x128xbf16>
    %23 = vector.shape_cast %22 : vector<1x1x128xbf16> to vector<1x128xbf16>
    %24 = arith.extf %23 : vector<1x128xbf16> to vector<1x128xf32>
    %25 = vector.broadcast %24 : vector<1x128xf32> to vector<48x128xf32>
    %26 = arith.mulf %21, %25 : vector<48x128xf32>
    %27 = arith.addf %20, %26 : vector<48x128xf32>
    %c45_i32 = arith.constant 45 : i32
    %28 = tpu.dynamic_rotate %7 by %c45_i32 dim 0 : vector<48x128xf32>, i32 -> vector<48x128xf32>
    %c0_8 = arith.constant 0 : index
    %c3 = arith.constant 3 : index
    %c0_9 = arith.constant 0 : index
    %29 = vector.load %arg3[%c0_8, %c3, %c0_9] : memref<1x48x128xbf16, #tpu.memory_space<vmem>>, vector<1x1x128xbf16>
    %30 = vector.shape_cast %29 : vector<1x1x128xbf16> to vector<1x128xbf16>
    %31 = arith.extf %30 : vector<1x128xbf16> to vector<1x128xf32>
    %32 = vector.broadcast %31 : vector<1x128xf32> to vector<48x128xf32>
    %33 = arith.mulf %28, %32 : vector<48x128xf32>
    %34 = arith.addf %27, %33 : vector<48x128xf32>
    %c44_i32 = arith.constant 44 : i32
    %35 = tpu.dynamic_rotate %7 by %c44_i32 dim 0 : vector<48x128xf32>, i32 -> vector<48x128xf32>
    %c0_10 = arith.constant 0 : index
    %c4 = arith.constant 4 : index
    %c0_11 = arith.constant 0 : index
    %36 = vector.load %arg3[%c0_10, %c4, %c0_11] : memref<1x48x128xbf16, #tpu.memory_space<vmem>>, vector<1x1x128xbf16>
    %37 = vector.shape_cast %36 : vector<1x1x128xbf16> to vector<1x128xbf16>
    %38 = arith.extf %37 : vector<1x128xbf16> to vector<1x128xf32>
    %39 = vector.broadcast %38 : vector<1x128xf32> to vector<48x128xf32>
    %40 = arith.mulf %35, %39 : vector<48x128xf32>
    %41 = arith.addf %34, %40 : vector<48x128xf32>
    %c43_i32 = arith.constant 43 : i32
    %42 = tpu.dynamic_rotate %7 by %c43_i32 dim 0 : vector<48x128xf32>, i32 -> vector<48x128xf32>
    %c0_12 = arith.constant 0 : index
    %c5 = arith.constant 5 : index
    %c0_13 = arith.constant 0 : index
    %43 = vector.load %arg3[%c0_12, %c5, %c0_13] : memref<1x48x128xbf16, #tpu.memory_space<vmem>>, vector<1x1x128xbf16>
    %44 = vector.shape_cast %43 : vector<1x1x128xbf16> to vector<1x128xbf16>
    %45 = arith.extf %44 : vector<1x128xbf16> to vector<1x128xf32>
    %46 = vector.broadcast %45 : vector<1x128xf32> to vector<48x128xf32>
    %47 = arith.mulf %42, %46 : vector<48x128xf32>
    %48 = arith.addf %41, %47 : vector<48x128xf32>
    %c16_i32 = arith.constant 16 : i32
    %49 = arith.addi %0, %c16_i32 : i32
    %50 = tpu.assume_multiple %49, 8 : i32
    %c0_14 = arith.constant 0 : index
    %51 = arith.index_cast %50 : i32 to index
    %c0_15 = arith.constant 0 : index
    %52 = vector.load %arg2[%c0_14, %51, %c0_15] : memref<1x224x128xbf16, #tpu.memory_space<vmem>>, vector<1x48x128xbf16>
    %53 = vector.shape_cast %52 : vector<1x48x128xbf16> to vector<48x128xbf16>
    %54 = arith.extf %53 : vector<48x128xbf16> to vector<48x128xf32>
    %c0_16 = arith.constant 0 : index
    %c8 = arith.constant 8 : index
    %c0_17 = arith.constant 0 : index
    %55 = vector.load %arg3[%c0_16, %c8, %c0_17] : memref<1x48x128xbf16, #tpu.memory_space<vmem>>, vector<1x1x128xbf16>
    %56 = vector.shape_cast %55 : vector<1x1x128xbf16> to vector<1x128xbf16>
    %57 = arith.extf %56 : vector<1x128xbf16> to vector<1x128xf32>
    %58 = vector.broadcast %57 : vector<1x128xf32> to vector<48x128xf32>
    %59 = arith.mulf %54, %58 : vector<48x128xf32>
    %60 = arith.addf %48, %59 : vector<48x128xf32>
    %c47_i32_18 = arith.constant 47 : i32
    %61 = tpu.dynamic_rotate %54 by %c47_i32_18 dim 0 : vector<48x128xf32>, i32 -> vector<48x128xf32>
    %c0_19 = arith.constant 0 : index
    %c9 = arith.constant 9 : index
    %c0_20 = arith.constant 0 : index
    %62 = vector.load %arg3[%c0_19, %c9, %c0_20] : memref<1x48x128xbf16, #tpu.memory_space<vmem>>, vector<1x1x128xbf16>
    %63 = vector.shape_cast %62 : vector<1x1x128xbf16> to vector<1x128xbf16>
    %64 = arith.extf %63 : vector<1x128xbf16> to vector<1x128xf32>
    %65 = vector.broadcast %64 : vector<1x128xf32> to vector<48x128xf32>
    %66 = arith.mulf %61, %65 : vector<48x128xf32>
    %67 = arith.addf %60, %66 : vector<48x128xf32>
    %c46_i32_21 = arith.constant 46 : i32
    %68 = tpu.dynamic_rotate %54 by %c46_i32_21 dim 0 : vector<48x128xf32>, i32 -> vector<48x128xf32>
    %c0_22 = arith.constant 0 : index
    %c10 = arith.constant 10 : index
    %c0_23 = arith.constant 0 : index
    %69 = vector.load %arg3[%c0_22, %c10, %c0_23] : memref<1x48x128xbf16, #tpu.memory_space<vmem>>, vector<1x1x128xbf16>
    %70 = vector.shape_cast %69 : vector<1x1x128xbf16> to vector<1x128xbf16>
    %71 = arith.extf %70 : vector<1x128xbf16> to vector<1x128xf32>
    %72 = vector.broadcast %71 : vector<1x128xf32> to vector<48x128xf32>
    %73 = arith.mulf %68, %72 : vector<48x128xf32>
    %74 = arith.addf %67, %73 : vector<48x128xf32>
    %c45_i32_24 = arith.constant 45 : i32
    %75 = tpu.dynamic_rotate %54 by %c45_i32_24 dim 0 : vector<48x128xf32>, i32 -> vector<48x128xf32>
    %c0_25 = arith.constant 0 : index
    %c11 = arith.constant 11 : index
    %c0_26 = arith.constant 0 : index
    %76 = vector.load %arg3[%c0_25, %c11, %c0_26] : memref<1x48x128xbf16, #tpu.memory_space<vmem>>, vector<1x1x128xbf16>
    %77 = vector.shape_cast %76 : vector<1x1x128xbf16> to vector<1x128xbf16>
    %78 = arith.extf %77 : vector<1x128xbf16> to vector<1x128xf32>
    %79 = vector.broadcast %78 : vector<1x128xf32> to vector<48x128xf32>
    %80 = arith.mulf %75, %79 : vector<48x128xf32>
    %81 = arith.addf %74, %80 : vector<48x128xf32>
    %c44_i32_27 = arith.constant 44 : i32
    %82 = tpu.dynamic_rotate %54 by %c44_i32_27 dim 0 : vector<48x128xf32>, i32 -> vector<48x128xf32>
    %c0_28 = arith.constant 0 : index
    %c12 = arith.constant 12 : index
    %c0_29 = arith.constant 0 : index
    %83 = vector.load %arg3[%c0_28, %c12, %c0_29] : memref<1x48x128xbf16, #tpu.memory_space<vmem>>, vector<1x1x128xbf16>
    %84 = vector.shape_cast %83 : vector<1x1x128xbf16> to vector<1x128xbf16>
    %85 = arith.extf %84 : vector<1x128xbf16> to vector<1x128xf32>
    %86 = vector.broadcast %85 : vector<1x128xf32> to vector<48x128xf32>
    %87 = arith.mulf %82, %86 : vector<48x128xf32>
    %88 = arith.addf %81, %87 : vector<48x128xf32>
    %c43_i32_30 = arith.constant 43 : i32
    %89 = tpu.dynamic_rotate %54 by %c43_i32_30 dim 0 : vector<48x128xf32>, i32 -> vector<48x128xf32>
    %c0_31 = arith.constant 0 : index
    %c13 = arith.constant 13 : index
    %c0_32 = arith.constant 0 : index
    %90 = vector.load %arg3[%c0_31, %c13, %c0_32] : memref<1x48x128xbf16, #tpu.memory_space<vmem>>, vector<1x1x128xbf16>
    %91 = vector.shape_cast %90 : vector<1x1x128xbf16> to vector<1x128xbf16>
    %92 = arith.extf %91 : vector<1x128xbf16> to vector<1x128xf32>
    %93 = vector.broadcast %92 : vector<1x128xf32> to vector<48x128xf32>
    %94 = arith.mulf %89, %93 : vector<48x128xf32>
    %95 = arith.addf %88, %94 : vector<48x128xf32>
    %c32_i32 = arith.constant 32 : i32
    %96 = arith.addi %0, %c32_i32 : i32
    %97 = tpu.assume_multiple %96, 8 : i32
    %c0_33 = arith.constant 0 : index
    %98 = arith.index_cast %97 : i32 to index
    %c0_34 = arith.constant 0 : index
    %99 = vector.load %arg2[%c0_33, %98, %c0_34] : memref<1x224x128xbf16, #tpu.memory_space<vmem>>, vector<1x48x128xbf16>
    %100 = vector.shape_cast %99 : vector<1x48x128xbf16> to vector<48x128xbf16>
    %101 = arith.extf %100 : vector<48x128xbf16> to vector<48x128xf32>
    %c0_35 = arith.constant 0 : index
    %c16 = arith.constant 16 : index
    %c0_36 = arith.constant 0 : index
    %102 = vector.load %arg3[%c0_35, %c16, %c0_36] : memref<1x48x128xbf16, #tpu.memory_space<vmem>>, vector<1x1x128xbf16>
    %103 = vector.shape_cast %102 : vector<1x1x128xbf16> to vector<1x128xbf16>
    %104 = arith.extf %103 : vector<1x128xbf16> to vector<1x128xf32>
    %105 = vector.broadcast %104 : vector<1x128xf32> to vector<48x128xf32>
    %106 = arith.mulf %101, %105 : vector<48x128xf32>
    %107 = arith.addf %95, %106 : vector<48x128xf32>
    %c47_i32_37 = arith.constant 47 : i32
    %108 = tpu.dynamic_rotate %101 by %c47_i32_37 dim 0 : vector<48x128xf32>, i32 -> vector<48x128xf32>
    %c0_38 = arith.constant 0 : index
    %c17 = arith.constant 17 : index
    %c0_39 = arith.constant 0 : index
    %109 = vector.load %arg3[%c0_38, %c17, %c0_39] : memref<1x48x128xbf16, #tpu.memory_space<vmem>>, vector<1x1x128xbf16>
    %110 = vector.shape_cast %109 : vector<1x1x128xbf16> to vector<1x128xbf16>
    %111 = arith.extf %110 : vector<1x128xbf16> to vector<1x128xf32>
    %112 = vector.broadcast %111 : vector<1x128xf32> to vector<48x128xf32>
    %113 = arith.mulf %108, %112 : vector<48x128xf32>
    %114 = arith.addf %107, %113 : vector<48x128xf32>
    %c46_i32_40 = arith.constant 46 : i32
    %115 = tpu.dynamic_rotate %101 by %c46_i32_40 dim 0 : vector<48x128xf32>, i32 -> vector<48x128xf32>
    %c0_41 = arith.constant 0 : index
    %c18 = arith.constant 18 : index
    %c0_42 = arith.constant 0 : index
    %116 = vector.load %arg3[%c0_41, %c18, %c0_42] : memref<1x48x128xbf16, #tpu.memory_space<vmem>>, vector<1x1x128xbf16>
    %117 = vector.shape_cast %116 : vector<1x1x128xbf16> to vector<1x128xbf16>
    %118 = arith.extf %117 : vector<1x128xbf16> to vector<1x128xf32>
    %119 = vector.broadcast %118 : vector<1x128xf32> to vector<48x128xf32>
    %120 = arith.mulf %115, %119 : vector<48x128xf32>
    %121 = arith.addf %114, %120 : vector<48x128xf32>
    %c45_i32_43 = arith.constant 45 : i32
    %122 = tpu.dynamic_rotate %101 by %c45_i32_43 dim 0 : vector<48x128xf32>, i32 -> vector<48x128xf32>
    %c0_44 = arith.constant 0 : index
    %c19 = arith.constant 19 : index
    %c0_45 = arith.constant 0 : index
    %123 = vector.load %arg3[%c0_44, %c19, %c0_45] : memref<1x48x128xbf16, #tpu.memory_space<vmem>>, vector<1x1x128xbf16>
    %124 = vector.shape_cast %123 : vector<1x1x128xbf16> to vector<1x128xbf16>
    %125 = arith.extf %124 : vector<1x128xbf16> to vector<1x128xf32>
    %126 = vector.broadcast %125 : vector<1x128xf32> to vector<48x128xf32>
    %127 = arith.mulf %122, %126 : vector<48x128xf32>
    %128 = arith.addf %121, %127 : vector<48x128xf32>
    %c44_i32_46 = arith.constant 44 : i32
    %129 = tpu.dynamic_rotate %101 by %c44_i32_46 dim 0 : vector<48x128xf32>, i32 -> vector<48x128xf32>
    %c0_47 = arith.constant 0 : index
    %c20 = arith.constant 20 : index
    %c0_48 = arith.constant 0 : index
    %130 = vector.load %arg3[%c0_47, %c20, %c0_48] : memref<1x48x128xbf16, #tpu.memory_space<vmem>>, vector<1x1x128xbf16>
    %131 = vector.shape_cast %130 : vector<1x1x128xbf16> to vector<1x128xbf16>
    %132 = arith.extf %131 : vector<1x128xbf16> to vector<1x128xf32>
    %133 = vector.broadcast %132 : vector<1x128xf32> to vector<48x128xf32>
    %134 = arith.mulf %129, %133 : vector<48x128xf32>
    %135 = arith.addf %128, %134 : vector<48x128xf32>
    %c43_i32_49 = arith.constant 43 : i32
    %136 = tpu.dynamic_rotate %101 by %c43_i32_49 dim 0 : vector<48x128xf32>, i32 -> vector<48x128xf32>
    %c0_50 = arith.constant 0 : index
    %c21 = arith.constant 21 : index
    %c0_51 = arith.constant 0 : index
    %137 = vector.load %arg3[%c0_50, %c21, %c0_51] : memref<1x48x128xbf16, #tpu.memory_space<vmem>>, vector<1x1x128xbf16>
    %138 = vector.shape_cast %137 : vector<1x1x128xbf16> to vector<1x128xbf16>
    %139 = arith.extf %138 : vector<1x128xbf16> to vector<1x128xf32>
    %140 = vector.broadcast %139 : vector<1x128xf32> to vector<48x128xf32>
    %141 = arith.mulf %136, %140 : vector<48x128xf32>
    %142 = arith.addf %135, %141 : vector<48x128xf32>
    %c48_i32_52 = arith.constant 48 : i32
    %143 = arith.addi %0, %c48_i32_52 : i32
    %144 = tpu.assume_multiple %143, 8 : i32
    %c0_53 = arith.constant 0 : index
    %145 = arith.index_cast %144 : i32 to index
    %c0_54 = arith.constant 0 : index
    %146 = vector.load %arg2[%c0_53, %145, %c0_54] : memref<1x224x128xbf16, #tpu.memory_space<vmem>>, vector<1x48x128xbf16>
    %147 = vector.shape_cast %146 : vector<1x48x128xbf16> to vector<48x128xbf16>
    %148 = arith.extf %147 : vector<48x128xbf16> to vector<48x128xf32>
    %c0_55 = arith.constant 0 : index
    %c24 = arith.constant 24 : index
    %c0_56 = arith.constant 0 : index
    %149 = vector.load %arg3[%c0_55, %c24, %c0_56] : memref<1x48x128xbf16, #tpu.memory_space<vmem>>, vector<1x1x128xbf16>
    %150 = vector.shape_cast %149 : vector<1x1x128xbf16> to vector<1x128xbf16>
    %151 = arith.extf %150 : vector<1x128xbf16> to vector<1x128xf32>
    %152 = vector.broadcast %151 : vector<1x128xf32> to vector<48x128xf32>
    %153 = arith.mulf %148, %152 : vector<48x128xf32>
    %154 = arith.addf %142, %153 : vector<48x128xf32>
    %c47_i32_57 = arith.constant 47 : i32
    %155 = tpu.dynamic_rotate %148 by %c47_i32_57 dim 0 : vector<48x128xf32>, i32 -> vector<48x128xf32>
    %c0_58 = arith.constant 0 : index
    %c25 = arith.constant 25 : index
    %c0_59 = arith.constant 0 : index
    %156 = vector.load %arg3[%c0_58, %c25, %c0_59] : memref<1x48x128xbf16, #tpu.memory_space<vmem>>, vector<1x1x128xbf16>
    %157 = vector.shape_cast %156 : vector<1x1x128xbf16> to vector<1x128xbf16>
    %158 = arith.extf %157 : vector<1x128xbf16> to vector<1x128xf32>
    %159 = vector.broadcast %158 : vector<1x128xf32> to vector<48x128xf32>
    %160 = arith.mulf %155, %159 : vector<48x128xf32>
    %161 = arith.addf %154, %160 : vector<48x128xf32>
    %c46_i32_60 = arith.constant 46 : i32
    %162 = tpu.dynamic_rotate %148 by %c46_i32_60 dim 0 : vector<48x128xf32>, i32 -> vector<48x128xf32>
    %c0_61 = arith.constant 0 : index
    %c26 = arith.constant 26 : index
    %c0_62 = arith.constant 0 : index
    %163 = vector.load %arg3[%c0_61, %c26, %c0_62] : memref<1x48x128xbf16, #tpu.memory_space<vmem>>, vector<1x1x128xbf16>
    %164 = vector.shape_cast %163 : vector<1x1x128xbf16> to vector<1x128xbf16>
    %165 = arith.extf %164 : vector<1x128xbf16> to vector<1x128xf32>
    %166 = vector.broadcast %165 : vector<1x128xf32> to vector<48x128xf32>
    %167 = arith.mulf %162, %166 : vector<48x128xf32>
    %168 = arith.addf %161, %167 : vector<48x128xf32>
    %c45_i32_63 = arith.constant 45 : i32
    %169 = tpu.dynamic_rotate %148 by %c45_i32_63 dim 0 : vector<48x128xf32>, i32 -> vector<48x128xf32>
    %c0_64 = arith.constant 0 : index
    %c27 = arith.constant 27 : index
    %c0_65 = arith.constant 0 : index
    %170 = vector.load %arg3[%c0_64, %c27, %c0_65] : memref<1x48x128xbf16, #tpu.memory_space<vmem>>, vector<1x1x128xbf16>
    %171 = vector.shape_cast %170 : vector<1x1x128xbf16> to vector<1x128xbf16>
    %172 = arith.extf %171 : vector<1x128xbf16> to vector<1x128xf32>
    %173 = vector.broadcast %172 : vector<1x128xf32> to vector<48x128xf32>
    %174 = arith.mulf %169, %173 : vector<48x128xf32>
    %175 = arith.addf %168, %174 : vector<48x128xf32>
    %c44_i32_66 = arith.constant 44 : i32
    %176 = tpu.dynamic_rotate %148 by %c44_i32_66 dim 0 : vector<48x128xf32>, i32 -> vector<48x128xf32>
    %c0_67 = arith.constant 0 : index
    %c28 = arith.constant 28 : index
    %c0_68 = arith.constant 0 : index
    %177 = vector.load %arg3[%c0_67, %c28, %c0_68] : memref<1x48x128xbf16, #tpu.memory_space<vmem>>, vector<1x1x128xbf16>
    %178 = vector.shape_cast %177 : vector<1x1x128xbf16> to vector<1x128xbf16>
    %179 = arith.extf %178 : vector<1x128xbf16> to vector<1x128xf32>
    %180 = vector.broadcast %179 : vector<1x128xf32> to vector<48x128xf32>
    %181 = arith.mulf %176, %180 : vector<48x128xf32>
    %182 = arith.addf %175, %181 : vector<48x128xf32>
    %c43_i32_69 = arith.constant 43 : i32
    %183 = tpu.dynamic_rotate %148 by %c43_i32_69 dim 0 : vector<48x128xf32>, i32 -> vector<48x128xf32>
    %c0_70 = arith.constant 0 : index
    %c29 = arith.constant 29 : index
    %c0_71 = arith.constant 0 : index
    %184 = vector.load %arg3[%c0_70, %c29, %c0_71] : memref<1x48x128xbf16, #tpu.memory_space<vmem>>, vector<1x1x128xbf16>
    %185 = vector.shape_cast %184 : vector<1x1x128xbf16> to vector<1x128xbf16>
    %186 = arith.extf %185 : vector<1x128xbf16> to vector<1x128xf32>
    %187 = vector.broadcast %186 : vector<1x128xf32> to vector<48x128xf32>
    %188 = arith.mulf %183, %187 : vector<48x128xf32>
    %189 = arith.addf %182, %188 : vector<48x128xf32>
    %c64_i32 = arith.constant 64 : i32
    %190 = arith.addi %0, %c64_i32 : i32
    %191 = tpu.assume_multiple %190, 8 : i32
    %c0_72 = arith.constant 0 : index
    %192 = arith.index_cast %191 : i32 to index
    %c0_73 = arith.constant 0 : index
    %193 = vector.load %arg2[%c0_72, %192, %c0_73] : memref<1x224x128xbf16, #tpu.memory_space<vmem>>, vector<1x48x128xbf16>
    %194 = vector.shape_cast %193 : vector<1x48x128xbf16> to vector<48x128xbf16>
    %195 = arith.extf %194 : vector<48x128xbf16> to vector<48x128xf32>
    %c0_74 = arith.constant 0 : index
    %c32 = arith.constant 32 : index
    %c0_75 = arith.constant 0 : index
    %196 = vector.load %arg3[%c0_74, %c32, %c0_75] : memref<1x48x128xbf16, #tpu.memory_space<vmem>>, vector<1x1x128xbf16>
    %197 = vector.shape_cast %196 : vector<1x1x128xbf16> to vector<1x128xbf16>
    %198 = arith.extf %197 : vector<1x128xbf16> to vector<1x128xf32>
    %199 = vector.broadcast %198 : vector<1x128xf32> to vector<48x128xf32>
    %200 = arith.mulf %195, %199 : vector<48x128xf32>
    %201 = arith.addf %189, %200 : vector<48x128xf32>
    %c47_i32_76 = arith.constant 47 : i32
    %202 = tpu.dynamic_rotate %195 by %c47_i32_76 dim 0 : vector<48x128xf32>, i32 -> vector<48x128xf32>
    %c0_77 = arith.constant 0 : index
    %c33 = arith.constant 33 : index
    %c0_78 = arith.constant 0 : index
    %203 = vector.load %arg3[%c0_77, %c33, %c0_78] : memref<1x48x128xbf16, #tpu.memory_space<vmem>>, vector<1x1x128xbf16>
    %204 = vector.shape_cast %203 : vector<1x1x128xbf16> to vector<1x128xbf16>
    %205 = arith.extf %204 : vector<1x128xbf16> to vector<1x128xf32>
    %206 = vector.broadcast %205 : vector<1x128xf32> to vector<48x128xf32>
    %207 = arith.mulf %202, %206 : vector<48x128xf32>
    %208 = arith.addf %201, %207 : vector<48x128xf32>
    %c46_i32_79 = arith.constant 46 : i32
    %209 = tpu.dynamic_rotate %195 by %c46_i32_79 dim 0 : vector<48x128xf32>, i32 -> vector<48x128xf32>
    %c0_80 = arith.constant 0 : index
    %c34 = arith.constant 34 : index
    %c0_81 = arith.constant 0 : index
    %210 = vector.load %arg3[%c0_80, %c34, %c0_81] : memref<1x48x128xbf16, #tpu.memory_space<vmem>>, vector<1x1x128xbf16>
    %211 = vector.shape_cast %210 : vector<1x1x128xbf16> to vector<1x128xbf16>
    %212 = arith.extf %211 : vector<1x128xbf16> to vector<1x128xf32>
    %213 = vector.broadcast %212 : vector<1x128xf32> to vector<48x128xf32>
    %214 = arith.mulf %209, %213 : vector<48x128xf32>
    %215 = arith.addf %208, %214 : vector<48x128xf32>
    %c45_i32_82 = arith.constant 45 : i32
    %216 = tpu.dynamic_rotate %195 by %c45_i32_82 dim 0 : vector<48x128xf32>, i32 -> vector<48x128xf32>
    %c0_83 = arith.constant 0 : index
    %c35 = arith.constant 35 : index
    %c0_84 = arith.constant 0 : index
    %217 = vector.load %arg3[%c0_83, %c35, %c0_84] : memref<1x48x128xbf16, #tpu.memory_space<vmem>>, vector<1x1x128xbf16>
    %218 = vector.shape_cast %217 : vector<1x1x128xbf16> to vector<1x128xbf16>
    %219 = arith.extf %218 : vector<1x128xbf16> to vector<1x128xf32>
    %220 = vector.broadcast %219 : vector<1x128xf32> to vector<48x128xf32>
    %221 = arith.mulf %216, %220 : vector<48x128xf32>
    %222 = arith.addf %215, %221 : vector<48x128xf32>
    %c44_i32_85 = arith.constant 44 : i32
    %223 = tpu.dynamic_rotate %195 by %c44_i32_85 dim 0 : vector<48x128xf32>, i32 -> vector<48x128xf32>
    %c0_86 = arith.constant 0 : index
    %c36 = arith.constant 36 : index
    %c0_87 = arith.constant 0 : index
    %224 = vector.load %arg3[%c0_86, %c36, %c0_87] : memref<1x48x128xbf16, #tpu.memory_space<vmem>>, vector<1x1x128xbf16>
    %225 = vector.shape_cast %224 : vector<1x1x128xbf16> to vector<1x128xbf16>
    %226 = arith.extf %225 : vector<1x128xbf16> to vector<1x128xf32>
    %227 = vector.broadcast %226 : vector<1x128xf32> to vector<48x128xf32>
    %228 = arith.mulf %223, %227 : vector<48x128xf32>
    %229 = arith.addf %222, %228 : vector<48x128xf32>
    %c43_i32_88 = arith.constant 43 : i32
    %230 = tpu.dynamic_rotate %195 by %c43_i32_88 dim 0 : vector<48x128xf32>, i32 -> vector<48x128xf32>
    %c0_89 = arith.constant 0 : index
    %c37 = arith.constant 37 : index
    %c0_90 = arith.constant 0 : index
    %231 = vector.load %arg3[%c0_89, %c37, %c0_90] : memref<1x48x128xbf16, #tpu.memory_space<vmem>>, vector<1x1x128xbf16>
    %232 = vector.shape_cast %231 : vector<1x1x128xbf16> to vector<1x128xbf16>
    %233 = arith.extf %232 : vector<1x128xbf16> to vector<1x128xf32>
    %234 = vector.broadcast %233 : vector<1x128xf32> to vector<48x128xf32>
    %235 = arith.mulf %230, %234 : vector<48x128xf32>
    %236 = arith.addf %229, %235 : vector<48x128xf32>
    %c80_i32 = arith.constant 80 : i32
    %237 = arith.addi %0, %c80_i32 : i32
    %238 = tpu.assume_multiple %237, 8 : i32
    %c0_91 = arith.constant 0 : index
    %239 = arith.index_cast %238 : i32 to index
    %c0_92 = arith.constant 0 : index
    %240 = vector.load %arg2[%c0_91, %239, %c0_92] : memref<1x224x128xbf16, #tpu.memory_space<vmem>>, vector<1x48x128xbf16>
    %241 = vector.shape_cast %240 : vector<1x48x128xbf16> to vector<48x128xbf16>
    %242 = arith.extf %241 : vector<48x128xbf16> to vector<48x128xf32>
    %c0_93 = arith.constant 0 : index
    %c40 = arith.constant 40 : index
    %c0_94 = arith.constant 0 : index
    %243 = vector.load %arg3[%c0_93, %c40, %c0_94] : memref<1x48x128xbf16, #tpu.memory_space<vmem>>, vector<1x1x128xbf16>
    %244 = vector.shape_cast %243 : vector<1x1x128xbf16> to vector<1x128xbf16>
    %245 = arith.extf %244 : vector<1x128xbf16> to vector<1x128xf32>
    %246 = vector.broadcast %245 : vector<1x128xf32> to vector<48x128xf32>
    %247 = arith.mulf %242, %246 : vector<48x128xf32>
    %248 = arith.addf %236, %247 : vector<48x128xf32>
    %c47_i32_95 = arith.constant 47 : i32
    %249 = tpu.dynamic_rotate %242 by %c47_i32_95 dim 0 : vector<48x128xf32>, i32 -> vector<48x128xf32>
    %c0_96 = arith.constant 0 : index
    %c41 = arith.constant 41 : index
    %c0_97 = arith.constant 0 : index
    %250 = vector.load %arg3[%c0_96, %c41, %c0_97] : memref<1x48x128xbf16, #tpu.memory_space<vmem>>, vector<1x1x128xbf16>
    %251 = vector.shape_cast %250 : vector<1x1x128xbf16> to vector<1x128xbf16>
    %252 = arith.extf %251 : vector<1x128xbf16> to vector<1x128xf32>
    %253 = vector.broadcast %252 : vector<1x128xf32> to vector<48x128xf32>
    %254 = arith.mulf %249, %253 : vector<48x128xf32>
    %255 = arith.addf %248, %254 : vector<48x128xf32>
    %c46_i32_98 = arith.constant 46 : i32
    %256 = tpu.dynamic_rotate %242 by %c46_i32_98 dim 0 : vector<48x128xf32>, i32 -> vector<48x128xf32>
    %c0_99 = arith.constant 0 : index
    %c42 = arith.constant 42 : index
    %c0_100 = arith.constant 0 : index
    %257 = vector.load %arg3[%c0_99, %c42, %c0_100] : memref<1x48x128xbf16, #tpu.memory_space<vmem>>, vector<1x1x128xbf16>
    %258 = vector.shape_cast %257 : vector<1x1x128xbf16> to vector<1x128xbf16>
    %259 = arith.extf %258 : vector<1x128xbf16> to vector<1x128xf32>
    %260 = vector.broadcast %259 : vector<1x128xf32> to vector<48x128xf32>
    %261 = arith.mulf %256, %260 : vector<48x128xf32>
    %262 = arith.addf %255, %261 : vector<48x128xf32>
    %c45_i32_101 = arith.constant 45 : i32
    %263 = tpu.dynamic_rotate %242 by %c45_i32_101 dim 0 : vector<48x128xf32>, i32 -> vector<48x128xf32>
    %c0_102 = arith.constant 0 : index
    %c43 = arith.constant 43 : index
    %c0_103 = arith.constant 0 : index
    %264 = vector.load %arg3[%c0_102, %c43, %c0_103] : memref<1x48x128xbf16, #tpu.memory_space<vmem>>, vector<1x1x128xbf16>
    %265 = vector.shape_cast %264 : vector<1x1x128xbf16> to vector<1x128xbf16>
    %266 = arith.extf %265 : vector<1x128xbf16> to vector<1x128xf32>
    %267 = vector.broadcast %266 : vector<1x128xf32> to vector<48x128xf32>
    %268 = arith.mulf %263, %267 : vector<48x128xf32>
    %269 = arith.addf %262, %268 : vector<48x128xf32>
    %c44_i32_104 = arith.constant 44 : i32
    %270 = tpu.dynamic_rotate %242 by %c44_i32_104 dim 0 : vector<48x128xf32>, i32 -> vector<48x128xf32>
    %c0_105 = arith.constant 0 : index
    %c44 = arith.constant 44 : index
    %c0_106 = arith.constant 0 : index
    %271 = vector.load %arg3[%c0_105, %c44, %c0_106] : memref<1x48x128xbf16, #tpu.memory_space<vmem>>, vector<1x1x128xbf16>
    %272 = vector.shape_cast %271 : vector<1x1x128xbf16> to vector<1x128xbf16>
    %273 = arith.extf %272 : vector<1x128xbf16> to vector<1x128xf32>
    %274 = vector.broadcast %273 : vector<1x128xf32> to vector<48x128xf32>
    %275 = arith.mulf %270, %274 : vector<48x128xf32>
    %276 = arith.addf %269, %275 : vector<48x128xf32>
    %c43_i32_107 = arith.constant 43 : i32
    %277 = tpu.dynamic_rotate %242 by %c43_i32_107 dim 0 : vector<48x128xf32>, i32 -> vector<48x128xf32>
    %c0_108 = arith.constant 0 : index
    %c45 = arith.constant 45 : index
    %c0_109 = arith.constant 0 : index
    %278 = vector.load %arg3[%c0_108, %c45, %c0_109] : memref<1x48x128xbf16, #tpu.memory_space<vmem>>, vector<1x1x128xbf16>
    %279 = vector.shape_cast %278 : vector<1x1x128xbf16> to vector<1x128xbf16>
    %280 = arith.extf %279 : vector<1x128xbf16> to vector<1x128xf32>
    %281 = vector.broadcast %280 : vector<1x128xf32> to vector<48x128xf32>
    %282 = arith.mulf %277, %281 : vector<48x128xf32>
    %283 = arith.addf %276, %282 : vector<48x128xf32>
    %284 = arith.truncf %283 : vector<48x128xf32> to vector<48x128xbf16>
    %c0_110 = arith.constant 0 : index
    %c0_111 = arith.constant 0 : index
    %285 = vector.load %arg4[%c0_110, %c0_111] : memref<128x128xbf16, #tpu.memory_space<vmem>>, vector<128x128xbf16>
    %cst_112 = arith.constant dense<0.000000e+00> : vector<48x128xf32>
    %286 = tpu.matmul %284, %285, %cst_112 {dimension_numbers = #tpu.dot_dimension_numbers<[1], [0], [0], [1], [0, 0, 1, 1], [], []>} : vector<48x128xbf16>, vector<128x128xbf16>, vector<48x128xf32> -> vector<48x128xf32>
    %c0_113 = arith.constant 0 : index
    %c0_114 = arith.constant 0 : index
    %287 = vector.load %arg5[%c0_113, %c0_114] : memref<1x128xf32, #tpu.memory_space<vmem>>, vector<1x128xf32>
    %288 = vector.broadcast %287 : vector<1x128xf32> to vector<48x128xf32>
    %289 = arith.mulf %286, %288 : vector<48x128xf32>
    %c0_115 = arith.constant 0 : index
    %c0_116 = arith.constant 0 : index
    %290 = vector.load %arg6[%c0_115, %c0_116] : memref<1x128xf32, #tpu.memory_space<vmem>>, vector<1x128xf32>
    %291 = vector.broadcast %290 : vector<1x128xf32> to vector<48x128xf32>
    %292 = arith.addf %289, %291 : vector<48x128xf32>
    %cst_117 = arith.constant 0.000000e+00 : f32
    %293 = vector.broadcast %cst_117 : f32 to vector<48x128xf32>
    %294 = arith.maximumf %292, %293 : vector<48x128xf32>
    %295 = arith.truncf %294 : vector<48x128xf32> to vector<48x128xbf16>
    %c0_118 = arith.constant 0 : index
    %c0_119 = arith.constant 0 : index
    %296 = vector.load %arg7[%c0_118, %c0_119] : memref<128x128xbf16, #tpu.memory_space<vmem>>, vector<128x128xbf16>
    %cst_120 = arith.constant dense<0.000000e+00> : vector<48x128xf32>
    %297 = tpu.matmul %295, %296, %cst_120 {dimension_numbers = #tpu.dot_dimension_numbers<[1], [0], [0], [1], [0, 0, 1, 1], [], []>} : vector<48x128xbf16>, vector<128x128xbf16>, vector<48x128xf32> -> vector<48x128xf32>
    %c0_121 = arith.constant 0 : index
    %c0_122 = arith.constant 0 : index
    %298 = vector.load %arg8[%c0_121, %c0_122] : memref<1x128xf32, #tpu.memory_space<vmem>>, vector<1x128xf32>
    %299 = vector.broadcast %298 : vector<1x128xf32> to vector<48x128xf32>
    %300 = arith.addf %297, %299 : vector<48x128xf32>
    %c0_123 = arith.constant 0 : index
    %c0_124 = arith.constant 0 : index
    %c0_125 = arith.constant 0 : index
    %301 = vector.load %arg9[%c0_123, %c0_124, %c0_125] : memref<1x48x128xf32, #tpu.memory_space<vmem>>, vector<1x48x128xf32>
    %302 = vector.shape_cast %301 : vector<1x48x128xf32> to vector<48x128xf32>
    %303 = vector.shape_cast %300 : vector<48x128xf32> to vector<1x48x128xf32>
    tpu.vector_store %arg9[%c0_123, %c0_124, %c0_125], %303 {strides = array<i32>} : memref<1x48x128xf32, #tpu.memory_space<vmem>>, vector<1x48x128xf32>,
    return
  }
  func.func @transform_0(%arg0: i32, %arg1: i32) -> (i32, i32, i32) {
    %c0_i32 = arith.constant 0 : i32
    %c0_i32_0 = arith.constant 0 : i32
    %c0_i32_1 = arith.constant 0 : i32
    return %arg0, %c0_i32, %c0_i32_0 : i32, i32, i32
  }
  func.func @transform_1(%arg0: i32, %arg1: i32) -> (i32, i32, i32) {
    %c0_i32 = arith.constant 0 : i32
    %c0_i32_0 = arith.constant 0 : i32
    %c0_i32_1 = arith.constant 0 : i32
    return %arg0, %c0_i32, %c0_i32_0 : i32, i32, i32
  }
  func.func @transform_2(%arg0: i32, %arg1: i32) -> (i32, i32) {
    %c0_i32 = arith.constant 0 : i32
    %c0_i32_0 = arith.constant 0 : i32
    %c0_i32_1 = arith.constant 0 : i32
    return %c0_i32, %c0_i32_0 : i32, i32
  }
  func.func @transform_3(%arg0: i32, %arg1: i32) -> (i32, i32) {
    %c0_i32 = arith.constant 0 : i32
    %c0_i32_0 = arith.constant 0 : i32
    %c0_i32_1 = arith.constant 0 : i32
    return %c0_i32, %c0_i32_0 : i32, i32
  }
  func.func @transform_4(%arg0: i32, %arg1: i32) -> (i32, i32) {
    %c0_i32 = arith.constant 0 : i32
    %c0_i32_0 = arith.constant 0 : i32
    %c0_i32_1 = arith.constant 0 : i32
    return %c0_i32, %c0_i32_0 : i32, i32
  }
  func.func @transform_5(%arg0: i32, %arg1: i32) -> (i32, i32) {
    %c0_i32 = arith.constant 0 : i32
    %c0_i32_0 = arith.constant 0 : i32
    %c0_i32_1 = arith.constant 0 : i32
    return %c0_i32, %c0_i32_0 : i32, i32
  }
  func.func @transform_6(%arg0: i32, %arg1: i32) -> (i32, i32) {
    %c0_i32 = arith.constant 0 : i32
    %c0_i32_0 = arith.constant 0 : i32
    %c0_i32_1 = arith.constant 0 : i32
    return %c0_i32, %c0_i32_0 : i32, i32
  }
  func.func @transform_7(%arg0: i32, %arg1: i32) -> (i32, i32, i32) {
    %c0_i32 = arith.constant 0 : i32
    %c0_i32_0 = arith.constant 0 : i32
    return %arg0, %arg1, %c0_i32 : i32, i32, i32
  }
}

</mosaic_0001>

<llo_original>
// kernel: depthwise_xcorr_forward.3
$region0: #{depthwise_xcorr_forward.3}
  #allocation0 [shape = 'u32[]', space=smem, size = 0x4, offset = 0x4, fixed_abs, tag = 'smem constant byte address 0x4 - core index']
  #allocation1 [shape = 'u32[72,128]{1,0:T(1,128)}', space=vmem, size = 0x9000, scoped, tag = 'internal scratch']
  %s0 = inlined_call_operand.vmem [shape: bf16[2,64,4], index: 0, kind: input, shape index: {}]
  %s1 = inlined_call_operand.vmem [shape: bf16[9,4,128], index: 1, kind: input, shape index: {}]
  %s2 = inlined_call_operand.vmem [shape: f32[1,128], index: 2, kind: input, shape index: {}]
  %s3 = inlined_call_operand.vmem [shape: f32[1,128], index: 3, kind: input, shape index: {}]
  %s4 = inlined_call_operand.vmem [shape: bf16[2,48,128], index: 4, kind: output, shape index: {}]
  %s5 = sld [smem:[#allocation0]]
  $region49: #{depthwise_xcorr_forward.3} parent=0
    _
  %s7 = ssub.s32 1, %s5
  %s8 = scalar_select 0, %s7, %s5
  loop: start=0, step=1, limit=8
  $region2: #{depthwise_xcorr_forward.3} parent=0 // loop_pre_header
    _
  $region3: #{depthwise_xcorr_forward.3} parent=0 // loop_header
    %s10 = sphi 0, %s14
    %p11 = scmp.ge.s32.totalorder %s10, 8
    %s17 = sphi 0, %s29
    %s18 = sphi 0, %s25
    %s19 = sphi 0, %s17
    %s20 = sphi 0, %s18
    %s21 = sphi 0, %s19
    %s22 = sphi 0, %s20
    %s32 = sphi 0, %s34
    %s35 = sphi 0, %s32
    %s36 = sphi 0, %s35
    %s52 = sphi 0, %s36
    %s56 = sphi 0, %s56
    %s58 = sphi 0, %s56
    %s59 = sphi 0, %s58
    %s73 = sphi 0, %s59
    %s77 = sphi 0, %s77
    %s79 = sphi 0, %s77
    %s80 = sphi 0, %s79
    %s94 = sphi 0, %s80
    %s98 = sphi 0, %s98
    %s100 = sphi 0, %s98
    %s101 = sphi 0, %s100
    %s115 = sphi 0, %s101
    %s123 = sphi 0, %s125
    %s126 = sphi 0, %s123
    %s127 = sphi 0, %s126
    %s143 = sphi 0, %s127
  $region4: #{depthwise_xcorr_forward.3} parent=0 // loop_header_branch
    %13 = sbr.rel (%p11) target = $region8
  $region5: #{depthwise_xcorr_forward.3} parent=0 // loop_body
    %s15 = ssub.s32 %s10, 1
    %s16 = ssub.s32 %s10, 2
    %s23 = sadd.s32 1, %s18
    %p24 = scmp.ge.s32.totalorder %s23, 3
    %s25 = scalar_select %p24, 0, %s23
    %s26 = sadd.s32 1, %s17
    %s27 = scalar_select %p24, %s26, %s17
    %p28 = scmp.ge.s32.totalorder %s27, 2
    %s29 = scalar_select %p28, 0, %s27
    %s30 = ssub.s32 %s17, %s29
    %p31 = scmp.eq.s32.totalorder %s30, 0
    %s33 = sadd.s32 %s32, 1
    %s34 = scalar_select %p31, %s32, %s33
    %p37 = pneg %p31
    %p38 = scmp.eq.s32.totalorder %s10, 5
    %p39 = por %p37, %p38
    %p40 = scmp.ne.s32.totalorder %s32, %s35
    %p41 = scmp.eq.s32.totalorder %s10, 0
    %p42 = por %p40, %p41
    %p43 = scmp.ne.s32.totalorder %s32, %s35
    %p44 = scmp.eq.s32.totalorder %s15, 5
    %p45 = por %p43, %p44
    %p46 = scmp.ne.s32.totalorder %s35, %s36
    %p47 = scmp.eq.s32.totalorder %s15, 0
    %p48 = por %p46, %p47
    %p49 = scmp.ne.s32.totalorder %s35, %s36
    %p50 = scmp.eq.s32.totalorder %s16, 5
    %p51 = por %p49, %p50
    %p53 = scmp.ne.s32.totalorder %s36, %s52
    %p54 = scmp.eq.s32.totalorder %s16, 0
    %p55 = por %p53, %p54
    %s57 = sadd.s32 %s56, 1
    %p60 = scmp.eq.s32.totalorder %s10, 5
    %p61 = scmp.ne.s32.totalorder %s56, %s58
    %p62 = scmp.eq.s32.totalorder %s10, 0
    %p63 = por %p61, %p62
    %p64 = scmp.ne.s32.totalorder %s56, %s58
    %p65 = scmp.eq.s32.totalorder %s15, 5
    %p66 = por %p64, %p65
    %p67 = scmp.ne.s32.totalorder %s58, %s59
    %p68 = scmp.eq.s32.totalorder %s15, 0
    %p69 = por %p67, %p68
    %p70 = scmp.ne.s32.totalorder %s58, %s59
    %p71 = scmp.eq.s32.totalorder %s16, 5
    %p72 = por %p70, %p71
    %p74 = scmp.ne.s32.totalorder %s59, %s73
    %p75 = scmp.eq.s32.totalorder %s16, 0
    %p76 = por %p74, %p75
    %s78 = sadd.s32 %s77, 1
    %p81 = scmp.eq.s32.totalorder %s10, 5
    %p82 = scmp.ne.s32.totalorder %s77, %s79
    %p83 = scmp.eq.s32.totalorder %s10, 0
    %p84 = por %p82, %p83
    %p85 = scmp.ne.s32.totalorder %s77, %s79
    %p86 = scmp.eq.s32.totalorder %s15, 5
    %p87 = por %p85, %p86
    %p88 = scmp.ne.s32.totalorder %s79, %s80
    %p89 = scmp.eq.s32.totalorder %s15, 0
    %p90 = por %p88, %p89
    %p91 = scmp.ne.s32.totalorder %s79, %s80
    %p92 = scmp.eq.s32.totalorder %s16, 5
    %p93 = por %p91, %p92
    %p95 = scmp.ne.s32.totalorder %s80, %s94
    %p96 = scmp.eq.s32.totalorder %s16, 0
    %p97 = por %p95, %p96
    %s99 = sadd.s32 %s98, 1
    %p102 = scmp.eq.s32.totalorder %s10, 5
    %p103 = scmp.ne.s32.totalorder %s98, %s100
    %p104 = scmp.eq.s32.totalorder %s10, 0
    %p105 = por %p103, %p104
    %p106 = scmp.ne.s32.totalorder %s98, %s100
    %p107 = scmp.eq.s32.totalorder %s15, 5
    %p108 = por %p106, %p107
    %p109 = scmp.ne.s32.totalorder %s100, %s101
    %p110 = scmp.eq.s32.totalorder %s15, 0
    %p111 = por %p109, %p110
    %p112 = scmp.ne.s32.totalorder %s100, %s101
    %p113 = scmp.eq.s32.totalorder %s16, 5
    %p114 = por %p112, %p113
    %p116 = scmp.ne.s32.totalorder %s101, %s115
    %p117 = scmp.eq.s32.totalorder %s16, 0
    %p118 = por %p116, %p117
    %s119 = ssub.s32 %s17, %s29
    %s120 = ssub.s32 %s18, %s25
    %s121 = sor.u32 %s119, %s120
    %p122 = scmp.eq.s32.totalorder %s121, 0
    %s124 = sadd.s32 %s123, 1
    %s125 = scalar_select %p122, %s123, %s124
    %p128 = pneg %p122
    %p129 = scmp.eq.s32.totalorder %s10, 5
    %p130 = por %p128, %p129
    %p131 = scmp.ne.s32.totalorder %s123, %s126
    %p132 = scmp.eq.s32.totalorder %s10, 0
    %p133 = por %p131, %p132
    %p134 = scmp.ne.s32.totalorder %s123, %s126
    %p135 = scmp.eq.s32.totalorder %s15, 5
    %p136 = por %p134, %p135
    %p137 = scmp.ne.s32.totalorder %s126, %s127
    %p138 = scmp.eq.s32.totalorder %s15, 0
    %p139 = por %p137, %p138
    %p140 = scmp.ne.s32.totalorder %s126, %s127
    %p141 = scmp.eq.s32.totalorder %s16, 5
    %p142 = por %p140, %p141
    %p144 = scmp.ne.s32.totalorder %s127, %s143
    %p145 = scmp.eq.s32.totalorder %s16, 0
    %p146 = por %p144, %p145
    %p147 = scmp.le.s32.totalorder 1, %s10
    %p148 = scmp.lt.s32.totalorder %s10, 7
    %p149 = pnand %p147, %p148
    %p150 = pneg %p149
    // Predicated region
    $region9: #{depthwise_xcorr_forward.3} parent=5 // pred_check
      _
    $region10: #{depthwise_xcorr_forward.3} parent=5 // pred_check_branch
      %152 = sbr.rel (%p149) target = $region12
    $region11: #{depthwise_xcorr_forward.3} parent=5 // pred_region
      %s153 = ssub.s32 %s10, 1
      // Predicated region
      $region13: #{depthwise_xcorr_forward.3} parent=11 // pred_check
        %p154 = pneg %p69
      $region14: #{depthwise_xcorr_forward.3} parent=11 // pred_check_branch
        %156 = sbr.rel (%p154) target = $region16
      $region15: #{depthwise_xcorr_forward.3} parent=11 // pred_region
        _
      $region16: #{depthwise_xcorr_forward.3} parent=11 // pred_fallthru
        _
      // Predicated region
      $region17: #{depthwise_xcorr_forward.3} parent=11 // pred_check
        %p157 = pneg %p90
      $region18: #{depthwise_xcorr_forward.3} parent=11 // pred_check_branch
        %159 = sbr.rel (%p157) target = $region20
      $region19: #{depthwise_xcorr_forward.3} parent=11 // pred_region
        _
      $region20: #{depthwise_xcorr_forward.3} parent=11 // pred_fallthru
        _
      // Predicated region
      $region21: #{depthwise_xcorr_forward.3} parent=11 // pred_check
        %p160 = pneg %p111
      $region22: #{depthwise_xcorr_forward.3} parent=11 // pred_check_branch
        %162 = sbr.rel (%p160) target = $region24
      $region23: #{depthwise_xcorr_forward.3} parent=11 // pred_region
        _
      $region24: #{depthwise_xcorr_forward.3} parent=11 // pred_fallthru
        _
    $region12: #{depthwise_xcorr_forward.3} parent=5 // pred_fallthru
      _
    %p163 = scmp.lt.s32.totalorder %s10, 6
    // Predicated region
    $region25: #{depthwise_xcorr_forward.3} parent=5 // pred_check
      %p164 = pneg %p163
    $region26: #{depthwise_xcorr_forward.3} parent=5 // pred_check_branch
      %166 = sbr.rel (%p164) target = $region28
    $region27: #{depthwise_xcorr_forward.3} parent=5 // pred_region
      // Predicated region
      $region29: #{depthwise_xcorr_forward.3} parent=27 // pred_check
        %p167 = pneg %p42
      $region30: #{depthwise_xcorr_forward.3} parent=27 // pred_check_branch
        %169 = sbr.rel (%p167) target = $region32
      $region31: #{depthwise_xcorr_forward.3} parent=27 // pred_region
        %p170 = scmp.lt.s32.totalorder %s17, 1
        %s171 = scalar_select %p170, %s17, 1
        %s172 = smul.addr %s171, 8
        %s173 = smul.addr %s172, 4
        %s174 = scalar_lea.vmem %s0, %s173
      $region32: #{depthwise_xcorr_forward.3} parent=27 // pred_fallthru
        _
    $region28: #{depthwise_xcorr_forward.3} parent=5 // pred_fallthru
      _
    %p175 = scmp.le.s32.totalorder 1, %s10
    %p176 = scmp.lt.s32.totalorder %s10, 7
    %p177 = pnand %p175, %p176
    %p178 = pneg %p177
    // Predicated region
    $region33: #{depthwise_xcorr_forward.3} parent=5 // pred_check
      _
    $region34: #{depthwise_xcorr_forward.3} parent=5 // pred_check_branch
      %180 = sbr.rel (%p177) target = $region36
    $region35: #{depthwise_xcorr_forward.3} parent=5 // pred_region
      %s181 = ssub.s32 %s10, 1
      %p182 = scmp.lt.s32.totalorder %s19, 1
      %s183 = scalar_select %p182, %s19, 1
      %s184 = smul.addr %s183, 8
      %s185 = smul.addr %s184, 4
      %s186 = scalar_lea.vmem %s0, %s185
      %p187 = pneg %p48
      %p188 = pneg %p45
      %p189 = pneg %p69
      %p190 = pneg %p66
      %p191 = pneg %p90
      %p192 = pneg %p87
      %p193 = pneg %p111
      %p194 = pneg %p108
      %p195 = pneg %p139
      %p196 = pneg %p136
      %s197 = smul.u32 2, %s20
      %p198 = scmp.lt.s32.totalorder %s19, 1
      %s199 = scalar_select %p198, %s19, 1
      %p200 = scmp.lt.s32.totalorder %s197, 5
      %s201 = scalar_select %p200, %s197, 5
      %s202 = smul.addr %s199, 6
      %s203 = sadd.s32 %s201, %s202
      %s204 = smul.addr %s203, 4
      %s205 = scalar_lea.vmem %s4, %s204
      %p206 = scmp.lt.s32.totalorder %s19, 1
      %s207 = scalar_select %p206, %s19, 1
      %s208 = smul.addr %s207, 8
      %s209 = smul.addr %s208, 4
      %s210 = scalar_lea.vmem %s0, %s209
      %s211 = smul.u32 2, %s20
      %p212 = scmp.lt.s32.totalorder %s19, 1
      %s213 = scalar_select %p212, %s19, 1
      %p214 = scmp.lt.s32.totalorder %s211, 5
      %s215 = scalar_select %p214, %s211, 5
      %s216 = smul.addr %s213, 6
      %s217 = sadd.s32 %s215, %s216
      %s218 = smul.addr %s217, 4
      %s219 = scalar_lea.vmem %s4, %s218
      %s220 = smul.u32 2, %s20
      %s222 = smul.u32 %s20, 16
      %s223 = sshra.s32 %s222, 3
      %s224 = sand.u32 %s222, 7
      %s225 = smul.addr %s223, 4
      %s226 = scalar_lea.vmem %s210, %s225
      %v227 = vld [vmem:[%s226] sm:$0xf]
      %v228 = vld [vmem:[%s226 + $0x4] sm:$0xf]
      %v229 = vunpack.c.l.bf16 %v227
      %v230 = vunpack.c.l.bf16 %v228
      %v231 = vld [vmem:[%s1] sm:$0x3]
      %v232 = vrot.slane %v229, 1
      %v233 = vrot.slane %v230, 1
      %v234 = vlaneseq
      %v235 = vshrl.u32 %v234, 7
      %vm236 = vcmp.lt.s32.totalorder %v235, 7
      %v237 = vsel %vm236, %v232, %v233
      %v238 = vsel %vm236, %v233, %v232
      %v239 = vpack.c.bf16 %v238, %v237
      %s240 = scalar_lea.vmem %s1, 2
      %v241 = vld [vmem:[%s240] sm:$0x3]
      %vm242 = vcmask 31744
      %v244 = vsel %vm242, %v239, 0
      %vm246 = vcmask 1041408
      %v248 = vsel %vm246, %v241, 0
      %250 = vmatpush.bf16.msra.mxu0 0
      %251 = vmatpush.bf16.msra.mxu0 0
      %252 = vmatpush.bf16.msra.mxu0 0
      %253 = vmatpush.bf16.msra.mxu0 0
      %254 = vmatpush.bf16.msra.mxu0 0
      %255 = vmatpush.bf16.msra.mxu0 0
      %256 = vmatpush.bf16.msra.mxu0 0
      %257 = vmatpush.bf16.msra.mxu0 %v248
      %258 = vmatmul.bf16.gmra.mxu0 %v244
      %v259 = vpop.f32.mrf.mxu0
      %v260 = vadd.f32 0.0, %v259
      %v261 = vpop.f32.mrf.mxu0
      %v262 = vadd.f32 0.0, %v261
      %263 = vdwg.mxu0
      %v266 = vunpack.c.l.b16 %v227
      %v267 = vunpack.c.l.b16 %v228
      %v268 = vpack.c.b16 %v267, %v266
      %v270 = vsel %vm242, %v268, 0
      %v273 = vsel %vm246, %v231, 0
      %275 = vmatpush.bf16.msra.mxu0 0
      %276 = vmatpush.bf16.msra.mxu0 0
      %277 = vmatpush.bf16.msra.mxu0 0
      %278 = vmatpush.bf16.msra.mxu0 0
      %279 = vmatpush.bf16.msra.mxu0 0
      %280 = vmatpush.bf16.msra.mxu0 0
      %281 = vmatpush.bf16.msra.mxu0 0
      %282 = vmatpush.bf16.msra.mxu0 %v273
      %283 = vmatmul.bf16.gmra.mxu0 %v270
      %v284 = vpop.f32.mrf.mxu0
      %v285 = vadd.f32 %v260, %v284
      %v286 = vpop.f32.mrf.mxu0
      %v287 = vadd.f32 %v262, %v286
      %288 = vdwg.mxu0
      %v289 = vrot.slane %v229, 2
      %v290 = vrot.slane %v230, 2
      %vm291 = vcmp.lt.s32.totalorder %v235, 6
      %v292 = vsel %vm291, %v289, %v290
      %v293 = vsel %vm291, %v290, %v289
      %v294 = vpack.c.bf16 %v293, %v292
      %s295 = scalar_lea.vmem %s1, 4
      %v296 = vld [vmem:[%s295] sm:$0x3]
      %v298 = vsel %vm242, %v294, 0
      %v301 = vsel %vm246, %v296, 0
      %303 = vmatpush.bf16.msra.mxu0 0
      %304 = vmatpush.bf16.msra.mxu0 0
      %305 = vmatpush.bf16.msra.mxu0 0
      %306 = vmatpush.bf16.msra.mxu0 0
      %307 = vmatpush.bf16.msra.mxu0 0
      %308 = vmatpush.bf16.msra.mxu0 0
      %309 = vmatpush.bf16.msra.mxu0 0
      %310 = vmatpush.bf16.msra.mxu0 %v301
      %311 = vmatmul.bf16.gmra.mxu0 %v298
      %v312 = vpop.f32.mrf.mxu0
      %v313 = vadd.f32 0.0, %v312
      %v314 = vpop.f32.mrf.mxu0
      %v315 = vadd.f32 0.0, %v314
      %316 = vdwg.mxu0
      %v317 = vadd.f32 %v285, %v313
      %v318 = vadd.f32 %v287, %v315
      %s319 = sadd.s32 %s222, 8
      %s320 = sshra.s32 %s319, 3
      %s321 = sand.u32 %s319, 7
      %s322 = smul.addr %s320, 4
      %s323 = scalar_lea.vmem %s210, %s322
      %v324 = vld [vmem:[%s323] sm:$0xf]
      %v325 = vld [vmem:[%s323 + $0x4] sm:$0xf]
      %v326 = vunpack.c.l.bf16 %v324
      %v327 = vunpack.c.l.bf16 %v325
      %s328 = scalar_lea.vmem %s1, 6
      %v329 = vld [vmem:[%s328] sm:$0x3]
      %v332 = vunpack.c.l.b16 %v324
      %v333 = vunpack.c.l.b16 %v325
      %v334 = vpack.c.b16 %v333, %v332
      %v336 = vsel %vm242, %v334, 0
      %v339 = vsel %vm246, %v329, 0
      %341 = vmatpush.bf16.msra.mxu0 0
      %342 = vmatpush.bf16.msra.mxu0 0
      %343 = vmatpush.bf16.msra.mxu0 0
      %344 = vmatpush.bf16.msra.mxu0 0
      %345 = vmatpush.bf16.msra.mxu0 0
      %346 = vmatpush.bf16.msra.mxu0 0
      %347 = vmatpush.bf16.msra.mxu0 0
      %348 = vmatpush.bf16.msra.mxu0 %v339
      %349 = vmatmul.bf16.gmra.mxu0 %v336
      %v350 = vpop.f32.mrf.mxu0
      %v351 = vadd.f32 0.0, %v350
      %v352 = vpop.f32.mrf.mxu0
      %v353 = vadd.f32 0.0, %v352
      %354 = vdwg.mxu0
      %v355 = vadd.f32 %v317, %v351
      %v356 = vadd.f32 %v318, %v353
      %v357 = vrot.slane %v326, 1
      %v358 = vrot.slane %v327, 1
      %v359 = vsel %vm236, %v357, %v358
      %v360 = vsel %vm236, %v358, %v357
      %v361 = vpack.c.bf16 %v360, %v359
      %s362 = scalar_lea.vmem %s1, 8
      %v363 = vld [vmem:[%s362] sm:$0x3]
      %v365 = vsel %vm242, %v361, 0
      %v368 = vsel %vm246, %v363, 0
      %370 = vmatpush.bf16.msra.mxu0 0
      %371 = vmatpush.bf16.msra.mxu0 0
      %372 = vmatpush.bf16.msra.mxu0 0
      %373 = vmatpush.bf16.msra.mxu0 0
      %374 = vmatpush.bf16.msra.mxu0 0
      %375 = vmatpush.bf16.msra.mxu0 0
      %376 = vmatpush.bf16.msra.mxu0 0
      %377 = vmatpush.bf16.msra.mxu0 %v368
      %378 = vmatmul.bf16.gmra.mxu0 %v365
      %v379 = vpop.f32.mrf.mxu0
      %v380 = vadd.f32 0.0, %v379
      %v381 = vpop.f32.mrf.mxu0
      %v382 = vadd.f32 0.0, %v381
      %383 = vdwg.mxu0
      %v384 = vadd.f32 %v355, %v380
      %v385 = vadd.f32 %v356, %v382
      %v386 = vrot.slane %v326, 2
      %v387 = vrot.slane %v327, 2
      %v388 = vsel %vm291, %v386, %v387
      %v389 = vsel %vm291, %v387, %v386
      %v390 = vpack.c.bf16 %v389, %v388
      %s391 = scalar_lea.vmem %s1, 10
      %v392 = vld [vmem:[%s391] sm:$0x3]
      %v394 = vsel %vm242, %v390, 0
      %v397 = vsel %vm246, %v392, 0
      %399 = vmatpush.bf16.msra.mxu0 0
      %400 = vmatpush.bf16.msra.mxu0 0
      %401 = vmatpush.bf16.msra.mxu0 0
      %402 = vmatpush.bf16.msra.mxu0 0
      %403 = vmatpush.bf16.msra.mxu0 0
      %404 = vmatpush.bf16.msra.mxu0 0
      %405 = vmatpush.bf16.msra.mxu0 0
      %406 = vmatpush.bf16.msra.mxu0 %v397
      %407 = vmatmul.bf16.gmra.mxu0 %v394
      %v408 = vpop.f32.mrf.mxu0
      %v409 = vadd.f32 0.0, %v408
      %v410 = vpop.f32.mrf.mxu0
      %v411 = vadd.f32 0.0, %v410
      %412 = vdwg.mxu0
      %v413 = vadd.f32 %v384, %v409
      %v414 = vadd.f32 %v385, %v411
      %s415 = sadd.s32 %s222, 16
      %s416 = sshra.s32 %s415, 3
      %s417 = sand.u32 %s415, 7
      %s418 = smul.addr %s416, 4
      %s419 = scalar_lea.vmem %s210, %s418
      %v420 = vld [vmem:[%s419] sm:$0xf]
      %v421 = vld [vmem:[%s419 + $0x4] sm:$0xf]
      %v422 = vunpack.c.l.bf16 %v420
      %v423 = vunpack.c.l.bf16 %v421
      %s424 = scalar_lea.vmem %s1, 12
      %v425 = vld [vmem:[%s424] sm:$0x3]
      %v428 = vunpack.c.l.b16 %v420
      %v429 = vunpack.c.l.b16 %v421
      %v430 = vpack.c.b16 %v429, %v428
      %v432 = vsel %vm242, %v430, 0
      %v435 = vsel %vm246, %v425, 0
      %437 = vmatpush.bf16.msra.mxu0 0
      %438 = vmatpush.bf16.msra.mxu0 0
      %439 = vmatpush.bf16.msra.mxu0 0
      %440 = vmatpush.bf16.msra.mxu0 0
      %441 = vmatpush.bf16.msra.mxu0 0
      %442 = vmatpush.bf16.msra.mxu0 0
      %443 = vmatpush.bf16.msra.mxu0 0
      %444 = vmatpush.bf16.msra.mxu0 %v435
      %445 = vmatmul.bf16.gmra.mxu0 %v432
      %v446 = vpop.f32.mrf.mxu0
      %v447 = vadd.f32 0.0, %v446
      %v448 = vpop.f32.mrf.mxu0
      %v449 = vadd.f32 0.0, %v448
      %450 = vdwg.mxu0
      %v451 = vadd.f32 %v413, %v447
      %v452 = vadd.f32 %v414, %v449
      %v453 = vrot.slane %v422, 1
      %v454 = vrot.slane %v423, 1
      %v455 = vsel %vm236, %v453, %v454
      %v456 = vsel %vm236, %v454, %v453
      %v457 = vpack.c.bf16 %v456, %v455
      %s458 = scalar_lea.vmem %s1, 14
      %v459 = vld [vmem:[%s458] sm:$0x3]
      %v461 = vsel %vm242, %v457, 0
      %v464 = vsel %vm246, %v459, 0
      %466 = vmatpush.bf16.msra.mxu0 0
      %467 = vmatpush.bf16.msra.mxu0 0
      %468 = vmatpush.bf16.msra.mxu0 0
      %469 = vmatpush.bf16.msra.mxu0 0
      %470 = vmatpush.bf16.msra.mxu0 0
      %471 = vmatpush.bf16.msra.mxu0 0
      %472 = vmatpush.bf16.msra.mxu0 0
      %473 = vmatpush.bf16.msra.mxu0 %v464
      %474 = vmatmul.bf16.gmra.mxu0 %v461
      %v475 = vpop.f32.mrf.mxu0
      %v476 = vadd.f32 0.0, %v475
      %v477 = vpop.f32.mrf.mxu0
      %v478 = vadd.f32 0.0, %v477
      %479 = vdwg.mxu0
      %v480 = vadd.f32 %v451, %v476
      %v481 = vadd.f32 %v452, %v478
      %v482 = vrot.slane %v422, 2
      %v483 = vrot.slane %v423, 2
      %v484 = vsel %vm291, %v482, %v483
      %v485 = vsel %vm291, %v483, %v482
      %v486 = vpack.c.bf16 %v485, %v484
      %s487 = scalar_lea.vmem %s1, 16
      %v488 = vld [vmem:[%s487] sm:$0x3]
      %v490 = vsel %vm242, %v486, 0
      %v493 = vsel %vm246, %v488, 0
      %495 = vmatpush.bf16.msra.mxu0 0
      %496 = vmatpush.bf16.msra.mxu0 0
      %497 = vmatpush.bf16.msra.mxu0 0
      %498 = vmatpush.bf16.msra.mxu0 0
      %499 = vmatpush.bf16.msra.mxu0 0
      %500 = vmatpush.bf16.msra.mxu0 0
      %501 = vmatpush.bf16.msra.mxu0 0
      %502 = vmatpush.bf16.msra.mxu0 %v493
      %503 = vmatmul.bf16.gmra.mxu0 %v490
      %v504 = vpop.f32.mrf.mxu0
      %v505 = vadd.f32 0.0, %v504
      %v506 = vpop.f32.mrf.mxu0
      %v507 = vadd.f32 0.0, %v506
      %508 = vdwg.mxu0
      %v509 = vadd.f32 %v480, %v505
      %v510 = vadd.f32 %v481, %v507
      %v511 = vld [vmem:[%s2] sm:$0x1]
      %v513 = vperm.slane %v511, 0
      %v515 = vmul.f32 %v509, %v513
      %v516 = vmul.f32 %v510, %v513
      %v517 = vld [vmem:[%s3] sm:$0x1]
      %v519 = vperm.slane %v517, 0
      %v521 = vadd.f32 %v515, %v519
      %v522 = vadd.f32 %v516, %v519
      %v523 = vmax.f32 %v521, 0.0
      %v524 = vmax.f32 %v522, 0.0
      %v525 = vpack.c.bf16 %v523, %v523
      %v526 = vpack.c.bf16 %v524, %v524
      %527 = vst [vmem:[%s219] sm:$0xf] %v525
      %528 = vst [vmem:[%s219 + $0x4] sm:$0xf] %v526
      %s529 = smul.u32 2, %s20
      %p530 = scmp.lt.s32.totalorder %s19, 1
      %s531 = scalar_select %p530, %s19, 1
      %p532 = scmp.lt.s32.totalorder %s529, 5
      %s533 = scalar_select %p532, %s529, 5
      %s534 = smul.addr %s531, 6
      %s535 = sadd.s32 %s533, %s534
      %s536 = smul.addr %s535, 4
      %s537 = scalar_lea.vmem %s4, %s536
      // Predicated region
      $region37: #{depthwise_xcorr_forward.3} parent=35 // pred_check
        %p538 = pneg %p136
      $region38: #{depthwise_xcorr_forward.3} parent=35 // pred_check_branch
        %540 = sbr.rel (%p538) target = $region40
      $region39: #{depthwise_xcorr_forward.3} parent=35 // pred_region
        %s541 = smul.u32 2, %s20
      $region40: #{depthwise_xcorr_forward.3} parent=35 // pred_fallthru
        _
    $region36: #{depthwise_xcorr_forward.3} parent=5 // pred_fallthru
      _
    %p542 = scmp.le.s32.totalorder 2, %s10
    // Predicated region
    $region41: #{depthwise_xcorr_forward.3} parent=5 // pred_check
      %p543 = pneg %p542
    $region42: #{depthwise_xcorr_forward.3} parent=5 // pred_check_branch
      %545 = sbr.rel (%p543) target = $region44
    $region43: #{depthwise_xcorr_forward.3} parent=5 // pred_region
      %s546 = ssub.s32 %s10, 2
      // Predicated region
      $region45: #{depthwise_xcorr_forward.3} parent=43 // pred_check
        %p547 = pneg %p142
      $region46: #{depthwise_xcorr_forward.3} parent=43 // pred_check_branch
        %549 = sbr.rel (%p547) target = $region48
      $region47: #{depthwise_xcorr_forward.3} parent=43 // pred_region
        %s550 = smul.u32 2, %s22
        %p551 = scmp.lt.s32.totalorder %s21, 1
        %s552 = scalar_select %p551, %s21, 1
        %p553 = scmp.lt.s32.totalorder %s550, 5
        %s554 = scalar_select %p553, %s550, 5
        %s555 = smul.addr %s552, 6
        %s556 = sadd.s32 %s554, %s555
        %s557 = smul.addr %s556, 4
        %s558 = scalar_lea.vmem %s4, %s557
      $region48: #{depthwise_xcorr_forward.3} parent=43 // pred_fallthru
        _
    $region44: #{depthwise_xcorr_forward.3} parent=5 // pred_fallthru
      _
  $region6: #{depthwise_xcorr_forward.3} parent=0 // loop_footer
    %s14 = sadd.s32 1, %s10
  $region7: #{depthwise_xcorr_forward.3} parent=0 // loop_footer_branch
    %9 = sbr.rel target = $region3
  $region8: #{depthwise_xcorr_forward.3} parent=0 // loop_exit
    _

// kernel: depthwise_xcorr_forward.4
$region0: #{depthwise_xcorr_forward.4}
  #allocation0 [shape = 'u32[]', space=smem, size = 0x4, offset = 0x4, fixed_abs, tag = 'smem constant byte address 0x4 - core index']
  #allocation1 [shape = 'u32[72,128]{1,0:T(1,128)}', space=vmem, size = 0x9000, scoped, tag = 'internal scratch']
  %s0 = inlined_call_operand.vmem [shape: bf16[2,256,4], index: 0, kind: input, shape index: {}]
  %s1 = inlined_call_operand.vmem [shape: bf16[9,4,128], index: 1, kind: input, shape index: {}]
  %s2 = inlined_call_operand.vmem [shape: f32[1,128], index: 2, kind: input, shape index: {}]
  %s3 = inlined_call_operand.vmem [shape: f32[1,128], index: 3, kind: input, shape index: {}]
  %s4 = inlined_call_operand.vmem [shape: bf16[2,224,128], index: 4, kind: output, shape index: {}]
  %s5 = sld [smem:[#allocation0]]
  $region49: #{depthwise_xcorr_forward.4} parent=0
    _
  %s7 = ssub.s32 1, %s5
  %s8 = scalar_select 0, %s7, %s5
  loop: start=0, step=1, limit=6
  $region2: #{depthwise_xcorr_forward.4} parent=0 // loop_pre_header
    _
  $region3: #{depthwise_xcorr_forward.4} parent=0 // loop_header
    %s10 = sphi 0, %s14
    %p11 = scmp.ge.s32.totalorder %s10, 6
    %s17 = sphi 0, %s29
    %s18 = sphi 0, %s25
    %s19 = sphi 0, %s17
    %s20 = sphi 0, %s18
    %s21 = sphi 0, %s19
    %s22 = sphi 0, %s20
    %s32 = sphi 0, %s34
    %s35 = sphi 0, %s32
    %s36 = sphi 0, %s35
    %s52 = sphi 0, %s36
    %s56 = sphi 0, %s56
    %s58 = sphi 0, %s56
    %s59 = sphi 0, %s58
    %s73 = sphi 0, %s59
    %s77 = sphi 0, %s77
    %s79 = sphi 0, %s77
    %s80 = sphi 0, %s79
    %s94 = sphi 0, %s80
    %s98 = sphi 0, %s98
    %s100 = sphi 0, %s98
    %s101 = sphi 0, %s100
    %s115 = sphi 0, %s101
    %s123 = sphi 0, %s125
    %s126 = sphi 0, %s123
    %s127 = sphi 0, %s126
    %s143 = sphi 0, %s127
  $region4: #{depthwise_xcorr_forward.4} parent=0 // loop_header_branch
    %13 = sbr.rel (%p11) target = $region8
  $region5: #{depthwise_xcorr_forward.4} parent=0 // loop_body
    %s15 = ssub.s32 %s10, 1
    %s16 = ssub.s32 %s10, 2
    %s23 = sadd.s32 1, %s18
    %p24 = scmp.ge.s32.totalorder %s23, 2
    %s25 = scalar_select %p24, 0, %s23
    %s26 = sadd.s32 1, %s17
    %s27 = scalar_select %p24, %s26, %s17
    %p28 = scmp.ge.s32.totalorder %s27, 2
    %s29 = scalar_select %p28, 0, %s27
    %s30 = ssub.s32 %s17, %s29
    %p31 = scmp.eq.s32.totalorder %s30, 0
    %s33 = sadd.s32 %s32, 1
    %s34 = scalar_select %p31, %s32, %s33
    %p37 = pneg %p31
    %p38 = scmp.eq.s32.totalorder %s10, 3
    %p39 = por %p37, %p38
    %p40 = scmp.ne.s32.totalorder %s32, %s35
    %p41 = scmp.eq.s32.totalorder %s10, 0
    %p42 = por %p40, %p41
    %p43 = scmp.ne.s32.totalorder %s32, %s35
    %p44 = scmp.eq.s32.totalorder %s15, 3
    %p45 = por %p43, %p44
    %p46 = scmp.ne.s32.totalorder %s35, %s36
    %p47 = scmp.eq.s32.totalorder %s15, 0
    %p48 = por %p46, %p47
    %p49 = scmp.ne.s32.totalorder %s35, %s36
    %p50 = scmp.eq.s32.totalorder %s16, 3
    %p51 = por %p49, %p50
    %p53 = scmp.ne.s32.totalorder %s36, %s52
    %p54 = scmp.eq.s32.totalorder %s16, 0
    %p55 = por %p53, %p54
    %s57 = sadd.s32 %s56, 1
    %p60 = scmp.eq.s32.totalorder %s10, 3
    %p61 = scmp.ne.s32.totalorder %s56, %s58
    %p62 = scmp.eq.s32.totalorder %s10, 0
    %p63 = por %p61, %p62
    %p64 = scmp.ne.s32.totalorder %s56, %s58
    %p65 = scmp.eq.s32.totalorder %s15, 3
    %p66 = por %p64, %p65
    %p67 = scmp.ne.s32.totalorder %s58, %s59
    %p68 = scmp.eq.s32.totalorder %s15, 0
    %p69 = por %p67, %p68
    %p70 = scmp.ne.s32.totalorder %s58, %s59
    %p71 = scmp.eq.s32.totalorder %s16, 3
    %p72 = por %p70, %p71
    %p74 = scmp.ne.s32.totalorder %s59, %s73
    %p75 = scmp.eq.s32.totalorder %s16, 0
    %p76 = por %p74, %p75
    %s78 = sadd.s32 %s77, 1
    %p81 = scmp.eq.s32.totalorder %s10, 3
    %p82 = scmp.ne.s32.totalorder %s77, %s79
    %p83 = scmp.eq.s32.totalorder %s10, 0
    %p84 = por %p82, %p83
    %p85 = scmp.ne.s32.totalorder %s77, %s79
    %p86 = scmp.eq.s32.totalorder %s15, 3
    %p87 = por %p85, %p86
    %p88 = scmp.ne.s32.totalorder %s79, %s80
    %p89 = scmp.eq.s32.totalorder %s15, 0
    %p90 = por %p88, %p89
    %p91 = scmp.ne.s32.totalorder %s79, %s80
    %p92 = scmp.eq.s32.totalorder %s16, 3
    %p93 = por %p91, %p92
    %p95 = scmp.ne.s32.totalorder %s80, %s94
    %p96 = scmp.eq.s32.totalorder %s16, 0
    %p97 = por %p95, %p96
    %s99 = sadd.s32 %s98, 1
    %p102 = scmp.eq.s32.totalorder %s10, 3
    %p103 = scmp.ne.s32.totalorder %s98, %s100
    %p104 = scmp.eq.s32.totalorder %s10, 0
    %p105 = por %p103, %p104
    %p106 = scmp.ne.s32.totalorder %s98, %s100
    %p107 = scmp.eq.s32.totalorder %s15, 3
    %p108 = por %p106, %p107
    %p109 = scmp.ne.s32.totalorder %s100, %s101
    %p110 = scmp.eq.s32.totalorder %s15, 0
    %p111 = por %p109, %p110
    %p112 = scmp.ne.s32.totalorder %s100, %s101
    %p113 = scmp.eq.s32.totalorder %s16, 3
    %p114 = por %p112, %p113
    %p116 = scmp.ne.s32.totalorder %s101, %s115
    %p117 = scmp.eq.s32.totalorder %s16, 0
    %p118 = por %p116, %p117
    %s119 = ssub.s32 %s17, %s29
    %s120 = ssub.s32 %s18, %s25
    %s121 = sor.u32 %s119, %s120
    %p122 = scmp.eq.s32.totalorder %s121, 0
    %s124 = sadd.s32 %s123, 1
    %s125 = scalar_select %p122, %s123, %s124
    %p128 = pneg %p122
    %p129 = scmp.eq.s32.totalorder %s10, 3
    %p130 = por %p128, %p129
    %p131 = scmp.ne.s32.totalorder %s123, %s126
    %p132 = scmp.eq.s32.totalorder %s10, 0
    %p133 = por %p131, %p132
    %p134 = scmp.ne.s32.totalorder %s123, %s126
    %p135 = scmp.eq.s32.totalorder %s15, 3
    %p136 = por %p134, %p135
    %p137 = scmp.ne.s32.totalorder %s126, %s127
    %p138 = scmp.eq.s32.totalorder %s15, 0
    %p139 = por %p137, %p138
    %p140 = scmp.ne.s32.totalorder %s126, %s127
    %p141 = scmp.eq.s32.totalorder %s16, 3
    %p142 = por %p140, %p141
    %p144 = scmp.ne.s32.totalorder %s127, %s143
    %p145 = scmp.eq.s32.totalorder %s16, 0
    %p146 = por %p144, %p145
    %p147 = scmp.le.s32.totalorder 1, %s10
    %p148 = scmp.lt.s32.totalorder %s10, 5
    %p149 = pnand %p147, %p148
    %p150 = pneg %p149
    // Predicated region
    $region9: #{depthwise_xcorr_forward.4} parent=5 // pred_check
      _
    $region10: #{depthwise_xcorr_forward.4} parent=5 // pred_check_branch
      %152 = sbr.rel (%p149) target = $region12
    $region11: #{depthwise_xcorr_forward.4} parent=5 // pred_region
      %s153 = ssub.s32 %s10, 1
      // Predicated region
      $region13: #{depthwise_xcorr_forward.4} parent=11 // pred_check
        %p154 = pneg %p69
      $region14: #{depthwise_xcorr_forward.4} parent=11 // pred_check_branch
        %156 = sbr.rel (%p154) target = $region16
      $region15: #{depthwise_xcorr_forward.4} parent=11 // pred_region
        _
      $region16: #{depthwise_xcorr_forward.4} parent=11 // pred_fallthru
        _
      // Predicated region
      $region17: #{depthwise_xcorr_forward.4} parent=11 // pred_check
        %p157 = pneg %p90
      $region18: #{depthwise_xcorr_forward.4} parent=11 // pred_check_branch
        %159 = sbr.rel (%p157) target = $region20
      $region19: #{depthwise_xcorr_forward.4} parent=11 // pred_region
        _
      $region20: #{depthwise_xcorr_forward.4} parent=11 // pred_fallthru
        _
      // Predicated region
      $region21: #{depthwise_xcorr_forward.4} parent=11 // pred_check
        %p160 = pneg %p111
      $region22: #{depthwise_xcorr_forward.4} parent=11 // pred_check_branch
        %162 = sbr.rel (%p160) target = $region24
      $region23: #{depthwise_xcorr_forward.4} parent=11 // pred_region
        _
      $region24: #{depthwise_xcorr_forward.4} parent=11 // pred_fallthru
        _
    $region12: #{depthwise_xcorr_forward.4} parent=5 // pred_fallthru
      _
    %p163 = scmp.lt.s32.totalorder %s10, 4
    // Predicated region
    $region25: #{depthwise_xcorr_forward.4} parent=5 // pred_check
      %p164 = pneg %p163
    $region26: #{depthwise_xcorr_forward.4} parent=5 // pred_check_branch
      %166 = sbr.rel (%p164) target = $region28
    $region27: #{depthwise_xcorr_forward.4} parent=5 // pred_region
      // Predicated region
      $region29: #{depthwise_xcorr_forward.4} parent=27 // pred_check
        %p167 = pneg %p42
      $region30: #{depthwise_xcorr_forward.4} parent=27 // pred_check_branch
        %169 = sbr.rel (%p167) target = $region32
      $region31: #{depthwise_xcorr_forward.4} parent=27 // pred_region
        %p170 = scmp.lt.s32.totalorder %s17, 1
        %s171 = scalar_select %p170, %s17, 1
        %s172 = smul.addr %s171, 32
        %s173 = smul.addr %s172, 4
        %s174 = scalar_lea.vmem %s0, %s173
      $region32: #{depthwise_xcorr_forward.4} parent=27 // pred_fallthru
        _
    $region28: #{depthwise_xcorr_forward.4} parent=5 // pred_fallthru
      _
    %p175 = scmp.le.s32.totalorder 1, %s10
    %p176 = scmp.lt.s32.totalorder %s10, 5
    %p177 = pnand %p175, %p176
    %p178 = pneg %p177
    // Predicated region
    $region33: #{depthwise_xcorr_forward.4} parent=5 // pred_check
      _
    $region34: #{depthwise_xcorr_forward.4} parent=5 // pred_check_branch
      %180 = sbr.rel (%p177) target = $region36
    $region35: #{depthwise_xcorr_forward.4} parent=5 // pred_region
      %s181 = ssub.s32 %s10, 1
      %p182 = scmp.lt.s32.totalorder %s19, 1
      %s183 = scalar_select %p182, %s19, 1
      %s184 = smul.addr %s183, 32
      %s185 = smul.addr %s184, 4
      %s186 = scalar_lea.vmem %s0, %s185
      %p187 = pneg %p48
      %p188 = pneg %p45
      %p189 = pneg %p69
      %p190 = pneg %p66
      %p191 = pneg %p90
      %p192 = pneg %p87
      %p193 = pneg %p111
      %p194 = pneg %p108
      %p195 = pneg %p139
      %p196 = pneg %p136
      %s197 = smul.u32 14, %s20
      %p198 = scmp.lt.s32.totalorder %s19, 1
      %s199 = scalar_select %p198, %s19, 1
      %p200 = scmp.lt.s32.totalorder %s197, 27
      %s201 = scalar_select %p200, %s197, 27
      %s202 = smul.addr %s199, 28
      %s203 = sadd.s32 %s201, %s202
      %s204 = smul.addr %s203, 4
      %s205 = scalar_lea.vmem %s4, %s204
      %p206 = scmp.lt.s32.totalorder %s19, 1
      %s207 = scalar_select %p206, %s19, 1
      %s208 = smul.addr %s207, 32
      %s209 = smul.addr %s208, 4
      %s210 = scalar_lea.vmem %s0, %s209
      %s211 = smul.u32 14, %s20
      %p212 = scmp.lt.s32.totalorder %s19, 1
      %s213 = scalar_select %p212, %s19, 1
      %p214 = scmp.lt.s32.totalorder %s211, 27
      %s215 = scalar_select %p214, %s211, 27
      %s216 = smul.addr %s213, 28
      %s217 = sadd.s32 %s215, %s216
      %s218 = smul.addr %s217, 4
      %s219 = scalar_lea.vmem %s4, %s218
      %s220 = smul.u32 14, %s20
      %s222 = smul.u32 %s20, 112
      %s223 = sshra.s32 %s222, 3
      %s224 = sand.u32 %s222, 7
      %s225 = smul.addr %s223, 4
      %s226 = scalar_lea.vmem %s210, %s225
      %v227 = vld [vmem:[%s226] sm:$0xf]
      %v228 = vld [vmem:[%s226 + $0x4] sm:$0xf]
      %v229 = vld [vmem:[%s226 + $0x8] sm:$0xf]
      %v230 = vld [vmem:[%s226 + $0xc] sm:$0xf]
      %v231 = vld [vmem:[%s226 + $0x10] sm:$0xf]
      %v232 = vld [vmem:[%s226 + $0x14] sm:$0xf]
      %v233 = vld [vmem:[%s226 + $0x18] sm:$0xf]
      %v234 = vld [vmem:[%s226 + $0x1c] sm:$0xf]
      %v235 = vld [vmem:[%s226 + $0x20] sm:$0xf]
      %v236 = vld [vmem:[%s226 + $0x24] sm:$0xf]
      %v237 = vld [vmem:[%s226 + $0x28] sm:$0xf]
      %v238 = vld [vmem:[%s226 + $0x2c] sm:$0xf]
      %v239 = vld [vmem:[%s226 + $0x30] sm:$0xf]
      %v240 = vld [vmem:[%s226 + $0x34] sm:$0xf]
      %v241 = vunpack.c.l.bf16 %v227
      %v242 = vunpack.c.l.bf16 %v228
      %v243 = vunpack.c.l.bf16 %v229
      %v244 = vunpack.c.l.bf16 %v230
      %v245 = vunpack.c.l.bf16 %v231
      %v246 = vunpack.c.l.bf16 %v232
      %v247 = vunpack.c.l.bf16 %v233
      %v248 = vunpack.c.l.bf16 %v234
      %v249 = vunpack.c.l.bf16 %v235
      %v250 = vunpack.c.l.bf16 %v236
      %v251 = vunpack.c.l.bf16 %v237
      %v252 = vunpack.c.l.bf16 %v238
      %v253 = vunpack.c.l.bf16 %v239
      %v254 = vunpack.c.l.bf16 %v240
      %v255 = vld [vmem:[%s1] sm:$0x3]
      %v256 = vrot.slane %v241, 1
      %v257 = vrot.slane %v242, 1
      %v258 = vrot.slane %v243, 1
      %v259 = vrot.slane %v244, 1
      %v260 = vrot.slane %v245, 1
      %v261 = vrot.slane %v246, 1
      %v262 = vrot.slane %v247, 1
      %v263 = vrot.slane %v248, 1
      %v264 = vrot.slane %v249, 1
      %v265 = vrot.slane %v250, 1
      %v266 = vrot.slane %v251, 1
      %v267 = vrot.slane %v252, 1
      %v268 = vrot.slane %v253, 1
      %v269 = vrot.slane %v254, 1
      %v270 = vlaneseq
      %v271 = vshrl.u32 %v270, 7
      %vm272 = vcmp.lt.s32.totalorder %v271, 7
      %v273 = vsel %vm272, %v268, %v269
      %v274 = vsel %vm272, %v267, %v268
      %v275 = vsel %vm272, %v266, %v267
      %v276 = vsel %vm272, %v265, %v266
      %v277 = vsel %vm272, %v264, %v265
      %v278 = vsel %vm272, %v263, %v264
      %v279 = vsel %vm272, %v262, %v263
      %v280 = vsel %vm272, %v261, %v262
      %v281 = vsel %vm272, %v260, %v261
      %v282 = vsel %vm272, %v259, %v260
      %v283 = vsel %vm272, %v258, %v259
      %v284 = vsel %vm272, %v257, %v258
      %v285 = vsel %vm272, %v256, %v257
      %v286 = vsel %vm272, %v269, %v256
      %v287 = vpack.c.bf16 %v284, %v285
      %v288 = vpack.c.bf16 %v282, %v283
      %v289 = vpack.c.bf16 %v280, %v281
      %v290 = vpack.c.bf16 %v278, %v279
      %v291 = vpack.c.bf16 %v276, %v277
      %v292 = vpack.c.bf16 %v274, %v275
      %v293 = vpack.c.bf16 %v286, %v273
      %s294 = scalar_lea.vmem %s1, 2
      %v295 = vld [vmem:[%s294] sm:$0x3]
      %vm296 = vcmask 31744
      %v298 = vsel %vm296, %v287, 0
      %v301 = vsel %vm296, %v288, 0
      %v304 = vsel %vm296, %v289, 0
      %v307 = vsel %vm296, %v290, 0
      %v310 = vsel %vm296, %v291, 0
      %v313 = vsel %vm296, %v292, 0
      %v316 = vsel %vm296, %v293, 0
      %vm318 = vcmask 1041408
      %v320 = vsel %vm318, %v295, 0
      %322 = vmatpush.bf16.msra.mxu0 0
      %323 = vmatpush.bf16.msra.mxu0 0
      %324 = vmatpush.bf16.msra.mxu0 0
      %325 = vmatpush.bf16.msra.mxu0 0
      %326 = vmatpush.bf16.msra.mxu0 0
      %327 = vmatpush.bf16.msra.mxu0 0
      %328 = vmatpush.bf16.msra.mxu0 0
      %329 = vmatpush.bf16.msra.mxu0 %v320
      %330 = vmatmul.bf16.gmra.mxu0 %v298
      %v331 = vpop.f32.mrf.mxu0
      %v332 = vadd.f32 0.0, %v331
      %v333 = vpop.f32.mrf.mxu0
      %v334 = vadd.f32 0.0, %v333
      %335 = vmatmul.bf16.gmra.mxu0 %v301
      %v336 = vpop.f32.mrf.mxu0
      %v337 = vadd.f32 0.0, %v336
      %v338 = vpop.f32.mrf.mxu0
      %v339 = vadd.f32 0.0, %v338
      %340 = vmatmul.bf16.gmra.mxu0 %v304
      %v341 = vpop.f32.mrf.mxu0
      %v342 = vadd.f32 0.0, %v341
      %v343 = vpop.f32.mrf.mxu0
      %v344 = vadd.f32 0.0, %v343
      %345 = vmatmul.bf16.gmra.mxu0 %v307
      %v346 = vpop.f32.mrf.mxu0
      %v347 = vadd.f32 0.0, %v346
      %v348 = vpop.f32.mrf.mxu0
      %v349 = vadd.f32 0.0, %v348
      %350 = vmatmul.bf16.gmra.mxu0 %v310
      %v351 = vpop.f32.mrf.mxu0
      %v352 = vadd.f32 0.0, %v351
      %v353 = vpop.f32.mrf.mxu0
      %v354 = vadd.f32 0.0, %v353
      %355 = vmatmul.bf16.gmra.mxu0 %v313
      %v356 = vpop.f32.mrf.mxu0
      %v357 = vadd.f32 0.0, %v356
      %v358 = vpop.f32.mrf.mxu0
      %v359 = vadd.f32 0.0, %v358
      %360 = vmatmul.bf16.gmra.mxu0 %v316
      %v361 = vpop.f32.mrf.mxu0
      %v362 = vadd.f32 0.0, %v361
      %v363 = vpop.f32.mrf.mxu0
      %v364 = vadd.f32 0.0, %v363
      %365 = vdwg.mxu0
      %v380 = vunpack.c.l.b16 %v227
      %v381 = vunpack.c.l.b16 %v228
      %v382 = vunpack.c.l.b16 %v229
      %v383 = vunpack.c.l.b16 %v230
      %v384 = vunpack.c.l.b16 %v231
      %v385 = vunpack.c.l.b16 %v232
      %v386 = vunpack.c.l.b16 %v233
      %v387 = vunpack.c.l.b16 %v234
      %v388 = vunpack.c.l.b16 %v235
      %v389 = vunpack.c.l.b16 %v236
      %v390 = vunpack.c.l.b16 %v237
      %v391 = vunpack.c.l.b16 %v238
      %v392 = vunpack.c.l.b16 %v239
      %v393 = vunpack.c.l.b16 %v240
      %v394 = vpack.c.b16 %v381, %v380
      %v395 = vpack.c.b16 %v383, %v382
      %v396 = vpack.c.b16 %v385, %v384
      %v397 = vpack.c.b16 %v387, %v386
      %v398 = vpack.c.b16 %v389, %v388
      %v399 = vpack.c.b16 %v391, %v390
      %v400 = vpack.c.b16 %v393, %v392
      %v402 = vsel %vm296, %v394, 0
      %v405 = vsel %vm296, %v395, 0
      %v408 = vsel %vm296, %v396, 0
      %v411 = vsel %vm296, %v397, 0
      %v414 = vsel %vm296, %v398, 0
      %v417 = vsel %vm296, %v399, 0
      %v420 = vsel %vm296, %v400, 0
      %v423 = vsel %vm318, %v255, 0
      %425 = vmatpush.bf16.msra.mxu0 0
      %426 = vmatpush.bf16.msra.mxu0 0
      %427 = vmatpush.bf16.msra.mxu0 0
      %428 = vmatpush.bf16.msra.mxu0 0
      %429 = vmatpush.bf16.msra.mxu0 0
      %430 = vmatpush.bf16.msra.mxu0 0
      %431 = vmatpush.bf16.msra.mxu0 0
      %432 = vmatpush.bf16.msra.mxu0 %v423
      %433 = vmatmul.bf16.gmra.mxu0 %v402
      %v434 = vpop.f32.mrf.mxu0
      %v435 = vadd.f32 %v332, %v434
      %v436 = vpop.f32.mrf.mxu0
      %v437 = vadd.f32 %v334, %v436
      %438 = vmatmul.bf16.gmra.mxu0 %v405
      %v439 = vpop.f32.mrf.mxu0
      %v440 = vadd.f32 %v337, %v439
      %v441 = vpop.f32.mrf.mxu0
      %v442 = vadd.f32 %v339, %v441
      %443 = vmatmul.bf16.gmra.mxu0 %v408
      %v444 = vpop.f32.mrf.mxu0
      %v445 = vadd.f32 %v342, %v444
      %v446 = vpop.f32.mrf.mxu0
      %v447 = vadd.f32 %v344, %v446
      %448 = vmatmul.bf16.gmra.mxu0 %v411
      %v449 = vpop.f32.mrf.mxu0
      %v450 = vadd.f32 %v347, %v449
      %v451 = vpop.f32.mrf.mxu0
      %v452 = vadd.f32 %v349, %v451
      %453 = vmatmul.bf16.gmra.mxu0 %v414
      %v454 = vpop.f32.mrf.mxu0
      %v455 = vadd.f32 %v352, %v454
      %v456 = vpop.f32.mrf.mxu0
      %v457 = vadd.f32 %v354, %v456
      %458 = vmatmul.bf16.gmra.mxu0 %v417
      %v459 = vpop.f32.mrf.mxu0
      %v460 = vadd.f32 %v357, %v459
      %v461 = vpop.f32.mrf.mxu0
      %v462 = vadd.f32 %v359, %v461
      %463 = vmatmul.bf16.gmra.mxu0 %v420
      %v464 = vpop.f32.mrf.mxu0
      %v465 = vadd.f32 %v362, %v464
      %v466 = vpop.f32.mrf.mxu0
      %v467 = vadd.f32 %v364, %v466
      %468 = vdwg.mxu0
      %v469 = vrot.slane %v241, 2
      %v470 = vrot.slane %v242, 2
      %v471 = vrot.slane %v243, 2
      %v472 = vrot.slane %v244, 2
      %v473 = vrot.slane %v245, 2
      %v474 = vrot.slane %v246, 2
      %v475 = vrot.slane %v247, 2
      %v476 = vrot.slane %v248, 2
      %v477 = vrot.slane %v249, 2
      %v478 = vrot.slane %v250, 2
      %v479 = vrot.slane %v251, 2
      %v480 = vrot.slane %v252, 2
      %v481 = vrot.slane %v253, 2
      %v482 = vrot.slane %v254, 2
      %vm483 = vcmp.lt.s32.totalorder %v271, 6
      %v484 = vsel %vm483, %v481, %v482
      %v485 = vsel %vm483, %v480, %v481
      %v486 = vsel %vm483, %v479, %v480
      %v487 = vsel %vm483, %v478, %v479
      %v488 = vsel %vm483, %v477, %v478
      %v489 = vsel %vm483, %v476, %v477
      %v490 = vsel %vm483, %v475, %v476
      %v491 = vsel %vm483, %v474, %v475
      %v492 = vsel %vm483, %v473, %v474
      %v493 = vsel %vm483, %v472, %v473
      %v494 = vsel %vm483, %v471, %v472
      %v495 = vsel %vm483, %v470, %v471
      %v496 = vsel %vm483, %v469, %v470
      %v497 = vsel %vm483, %v482, %v469
      %v498 = vpack.c.bf16 %v495, %v496
      %v499 = vpack.c.bf16 %v493, %v494
      %v500 = vpack.c.bf16 %v491, %v492
      %v501 = vpack.c.bf16 %v489, %v490
      %v502 = vpack.c.bf16 %v487, %v488
      %v503 = vpack.c.bf16 %v485, %v486
      %v504 = vpack.c.bf16 %v497, %v484
      %s505 = scalar_lea.vmem %s1, 4
      %v506 = vld [vmem:[%s505] sm:$0x3]
      %v508 = vsel %vm296, %v498, 0
      %v511 = vsel %vm296, %v499, 0
      %v514 = vsel %vm296, %v500, 0
      %v517 = vsel %vm296, %v501, 0
      %v520 = vsel %vm296, %v502, 0
      %v523 = vsel %vm296, %v503, 0
      %v526 = vsel %vm296, %v504, 0
      %v529 = vsel %vm318, %v506, 0
      %531 = vmatpush.bf16.msra.mxu0 0
      %532 = vmatpush.bf16.msra.mxu0 0
      %533 = vmatpush.bf16.msra.mxu0 0
      %534 = vmatpush.bf16.msra.mxu0 0
      %535 = vmatpush.bf16.msra.mxu0 0
      %536 = vmatpush.bf16.msra.mxu0 0
      %537 = vmatpush.bf16.msra.mxu0 0
      %538 = vmatpush.bf16.msra.mxu0 %v529
      %539 = vmatmul.bf16.gmra.mxu0 %v508
      %v540 = vpop.f32.mrf.mxu0
      %v541 = vadd.f32 0.0, %v540
      %v542 = vpop.f32.mrf.mxu0
      %v543 = vadd.f32 0.0, %v542
      %544 = vmatmul.bf16.gmra.mxu0 %v511
      %v545 = vpop.f32.mrf.mxu0
      %v546 = vadd.f32 0.0, %v545
      %v547 = vpop.f32.mrf.mxu0
      %v548 = vadd.f32 0.0, %v547
      %549 = vmatmul.bf16.gmra.mxu0 %v514
      %v550 = vpop.f32.mrf.mxu0
      %v551 = vadd.f32 0.0, %v550
      %v552 = vpop.f32.mrf.mxu0
      %v553 = vadd.f32 0.0, %v552
      %554 = vmatmul.bf16.gmra.mxu0 %v517
      %v555 = vpop.f32.mrf.mxu0
      %v556 = vadd.f32 0.0, %v555
      %v557 = vpop.f32.mrf.mxu0
      %v558 = vadd.f32 0.0, %v557
      %559 = vmatmul.bf16.gmra.mxu0 %v520
      %v560 = vpop.f32.mrf.mxu0
      %v561 = vadd.f32 0.0, %v560
      %v562 = vpop.f32.mrf.mxu0
      %v563 = vadd.f32 0.0, %v562
      %564 = vmatmul.bf16.gmra.mxu0 %v523
      %v565 = vpop.f32.mrf.mxu0
      %v566 = vadd.f32 0.0, %v565
      %v567 = vpop.f32.mrf.mxu0
      %v568 = vadd.f32 0.0, %v567
      %569 = vmatmul.bf16.gmra.mxu0 %v526
      %v570 = vpop.f32.mrf.mxu0
      %v571 = vadd.f32 0.0, %v570
      %v572 = vpop.f32.mrf.mxu0
      %v573 = vadd.f32 0.0, %v572
      %574 = vdwg.mxu0
      %v575 = vadd.f32 %v435, %v541
      %v576 = vadd.f32 %v437, %v543
      %v577 = vadd.f32 %v440, %v546
      %v578 = vadd.f32 %v442, %v548
      %v579 = vadd.f32 %v445, %v551
      %v580 = vadd.f32 %v447, %v553
      %v581 = vadd.f32 %v450, %v556
      %v582 = vadd.f32 %v452, %v558
      %v583 = vadd.f32 %v455, %v561
      %v584 = vadd.f32 %v457, %v563
      %v585 = vadd.f32 %v460, %v566
      %v586 = vadd.f32 %v462, %v568
      %v587 = vadd.f32 %v465, %v571
      %v588 = vadd.f32 %v467, %v573
      %s589 = sadd.s32 %s222, 16
      %s590 = sshra.s32 %s589, 3
      %s591 = sand.u32 %s589, 7
      %s592 = smul.addr %s590, 4
      %s593 = scalar_lea.vmem %s210, %s592
      %v594 = vld [vmem:[%s593] sm:$0xf]
      %v595 = vld [vmem:[%s593 + $0x4] sm:$0xf]
      %v596 = vld [vmem:[%s593 + $0x8] sm:$0xf]
      %v597 = vld [vmem:[%s593 + $0xc] sm:$0xf]
      %v598 = vld [vmem:[%s593 + $0x10] sm:$0xf]
      %v599 = vld [vmem:[%s593 + $0x14] sm:$0xf]
      %v600 = vld [vmem:[%s593 + $0x18] sm:$0xf]
      %v601 = vld [vmem:[%s593 + $0x1c] sm:$0xf]
      %v602 = vld [vmem:[%s593 + $0x20] sm:$0xf]
      %v603 = vld [vmem:[%s593 + $0x24] sm:$0xf]
      %v604 = vld [vmem:[%s593 + $0x28] sm:$0xf]
      %v605 = vld [vmem:[%s593 + $0x2c] sm:$0xf]
      %v606 = vld [vmem:[%s593 + $0x30] sm:$0xf]
      %v607 = vld [vmem:[%s593 + $0x34] sm:$0xf]
      %v608 = vunpack.c.l.bf16 %v594
      %v609 = vunpack.c.l.bf16 %v595
      %v610 = vunpack.c.l.bf16 %v596
      %v611 = vunpack.c.l.bf16 %v597
      %v612 = vunpack.c.l.bf16 %v598
      %v613 = vunpack.c.l.bf16 %v599
      %v614 = vunpack.c.l.bf16 %v600
      %v615 = vunpack.c.l.bf16 %v601
      %v616 = vunpack.c.l.bf16 %v602
      %v617 = vunpack.c.l.bf16 %v603
      %v618 = vunpack.c.l.bf16 %v604
      %v619 = vunpack.c.l.bf16 %v605
      %v620 = vunpack.c.l.bf16 %v606
      %v621 = vunpack.c.l.bf16 %v607
      %s622 = scalar_lea.vmem %s1, 6
      %v623 = vld [vmem:[%s622] sm:$0x3]
      %v638 = vunpack.c.l.b16 %v594
      %v639 = vunpack.c.l.b16 %v595
      %v640 = vunpack.c.l.b16 %v596
      %v641 = vunpack.c.l.b16 %v597
      %v642 = vunpack.c.l.b16 %v598
      %v643 = vunpack.c.l.b16 %v599
      %v644 = vunpack.c.l.b16 %v600
      %v645 = vunpack.c.l.b16 %v601
      %v646 = vunpack.c.l.b16 %v602
      %v647 = vunpack.c.l.b16 %v603
      %v648 = vunpack.c.l.b16 %v604
      %v649 = vunpack.c.l.b16 %v605
      %v650 = vunpack.c.l.b16 %v606
      %v651 = vunpack.c.l.b16 %v607
      %v652 = vpack.c.b16 %v639, %v638
      %v653 = vpack.c.b16 %v641, %v640
      %v654 = vpack.c.b16 %v643, %v642
      %v655 = vpack.c.b16 %v645, %v644
      %v656 = vpack.c.b16 %v647, %v646
      %v657 = vpack.c.b16 %v649, %v648
      %v658 = vpack.c.b16 %v651, %v650
      %v660 = vsel %vm296, %v652, 0
      %v663 = vsel %vm296, %v653, 0
      %v666 = vsel %vm296, %v654, 0
      %v669 = vsel %vm296, %v655, 0
      %v672 = vsel %vm296, %v656, 0
      %v675 = vsel %vm296, %v657, 0
      %v678 = vsel %vm296, %v658, 0
      %v681 = vsel %vm318, %v623, 0
      %683 = vmatpush.bf16.msra.mxu0 0
      %684 = vmatpush.bf16.msra.mxu0 0
      %685 = vmatpush.bf16.msra.mxu0 0
      %686 = vmatpush.bf16.msra.mxu0 0
      %687 = vmatpush.bf16.msra.mxu0 0
      %688 = vmatpush.bf16.msra.mxu0 0
      %689 = vmatpush.bf16.msra.mxu0 0
      %690 = vmatpush.bf16.msra.mxu0 %v681
      %691 = vmatmul.bf16.gmra.mxu0 %v660
      %v692 = vpop.f32.mrf.mxu0
      %v693 = vadd.f32 0.0, %v692
      %v694 = vpop.f32.mrf.mxu0
      %v695 = vadd.f32 0.0, %v694
      %696 = vmatmul.bf16.gmra.mxu0 %v663
      %v697 = vpop.f32.mrf.mxu0
      %v698 = vadd.f32 0.0, %v697
      %v699 = vpop.f32.mrf.mxu0
      %v700 = vadd.f32 0.0, %v699
      %701 = vmatmul.bf16.gmra.mxu0 %v666
      %v702 = vpop.f32.mrf.mxu0
      %v703 = vadd.f32 0.0, %v702
      %v704 = vpop.f32.mrf.mxu0
      %v705 = vadd.f32 0.0, %v704
      %706 = vmatmul.bf16.gmra.mxu0 %v669
      %v707 = vpop.f32.mrf.mxu0
      %v708 = vadd.f32 0.0, %v707
      %v709 = vpop.f32.mrf.mxu0
      %v710 = vadd.f32 0.0, %v709
      %711 = vmatmul.bf16.gmra.mxu0 %v672
      %v712 = vpop.f32.mrf.mxu0
      %v713 = vadd.f32 0.0, %v712
      %v714 = vpop.f32.mrf.mxu0
      %v715 = vadd.f32 0.0, %v714
      %716 = vmatmul.bf16.gmra.mxu0 %v675
      %v717 = vpop.f32.mrf.mxu0
      %v718 = vadd.f32 0.0, %v717
      %v719 = vpop.f32.mrf.mxu0
      %v720 = vadd.f32 0.0, %v719
      %721 = vmatmul.bf16.gmra.mxu0 %v678
      %v722 = vpop.f32.mrf.mxu0
      %v723 = vadd.f32 0.0, %v722
      %v724 = vpop.f32.mrf.mxu0
      %v725 = vadd.f32 0.0, %v724
      %726 = vdwg.mxu0
      %v727 = vadd.f32 %v575, %v693
      %v728 = vadd.f32 %v576, %v695
      %v729 = vadd.f32 %v577, %v698
      %v730 = vadd.f32 %v578, %v700
      %v731 = vadd.f32 %v579, %v703
      %v732 = vadd.f32 %v580, %v705
      %v733 = vadd.f32 %v581, %v708
      %v734 = vadd.f32 %v582, %v710
      %v735 = vadd.f32 %v583, %v713
      %v736 = vadd.f32 %v584, %v715
      %v737 = vadd.f32 %v585, %v718
      %v738 = vadd.f32 %v586, %v720
      %v739 = vadd.f32 %v587, %v723
      %v740 = vadd.f32 %v588, %v725
      %v741 = vrot.slane %v608, 1
      %v742 = vrot.slane %v609, 1
      %v743 = vrot.slane %v610, 1
      %v744 = vrot.slane %v611, 1
      %v745 = vrot.slane %v612, 1
      %v746 = vrot.slane %v613, 1
      %v747 = vrot.slane %v614, 1
      %v748 = vrot.slane %v615, 1
      %v749 = vrot.slane %v616, 1
      %v750 = vrot.slane %v617, 1
      %v751 = vrot.slane %v618, 1
      %v752 = vrot.slane %v619, 1
      %v753 = vrot.slane %v620, 1
      %v754 = vrot.slane %v621, 1
      %v755 = vsel %vm272, %v753, %v754
      %v756 = vsel %vm272, %v752, %v753
      %v757 = vsel %vm272, %v751, %v752
      %v758 = vsel %vm272, %v750, %v751
      %v759 = vsel %vm272, %v749, %v750
      %v760 = vsel %vm272, %v748, %v749
      %v761 = vsel %vm272, %v747, %v748
      %v762 = vsel %vm272, %v746, %v747
      %v763 = vsel %vm272, %v745, %v746
      %v764 = vsel %vm272, %v744, %v745
      %v765 = vsel %vm272, %v743, %v744
      %v766 = vsel %vm272, %v742, %v743
      %v767 = vsel %vm272, %v741, %v742
      %v768 = vsel %vm272, %v754, %v741
      %v769 = vpack.c.bf16 %v766, %v767
      %v770 = vpack.c.bf16 %v764, %v765
      %v771 = vpack.c.bf16 %v762, %v763
      %v772 = vpack.c.bf16 %v760, %v761
      %v773 = vpack.c.bf16 %v758, %v759
      %v774 = vpack.c.bf16 %v756, %v757
      %v775 = vpack.c.bf16 %v768, %v755
      %s776 = scalar_lea.vmem %s1, 8
      %v777 = vld [vmem:[%s776] sm:$0x3]
      %v779 = vsel %vm296, %v769, 0
      %v782 = vsel %vm296, %v770, 0
      %v785 = vsel %vm296, %v771, 0
      %v788 = vsel %vm296, %v772, 0
      %v791 = vsel %vm296, %v773, 0
      %v794 = vsel %vm296, %v774, 0
      %v797 = vsel %vm296, %v775, 0
      %v800 = vsel %vm318, %v777, 0
      %802 = vmatpush.bf16.msra.mxu0 0
      %803 = vmatpush.bf16.msra.mxu0 0
      %804 = vmatpush.bf16.msra.mxu0 0
      %805 = vmatpush.bf16.msra.mxu0 0
      %806 = vmatpush.bf16.msra.mxu0 0
      %807 = vmatpush.bf16.msra.mxu0 0
      %808 = vmatpush.bf16.msra.mxu0 0
      %809 = vmatpush.bf16.msra.mxu0 %v800
      %810 = vmatmul.bf16.gmra.mxu0 %v779
      %v811 = vpop.f32.mrf.mxu0
      %v812 = vadd.f32 0.0, %v811
      %v813 = vpop.f32.mrf.mxu0
      %v814 = vadd.f32 0.0, %v813
      %815 = vmatmul.bf16.gmra.mxu0 %v782
      %v816 = vpop.f32.mrf.mxu0
      %v817 = vadd.f32 0.0, %v816
      %v818 = vpop.f32.mrf.mxu0
      %v819 = vadd.f32 0.0, %v818
      %820 = vmatmul.bf16.gmra.mxu0 %v785
      %v821 = vpop.f32.mrf.mxu0
      %v822 = vadd.f32 0.0, %v821
      %v823 = vpop.f32.mrf.mxu0
      %v824 = vadd.f32 0.0, %v823
      %825 = vmatmul.bf16.gmra.mxu0 %v788
      %v826 = vpop.f32.mrf.mxu0
      %v827 = vadd.f32 0.0, %v826
      %v828 = vpop.f32.mrf.mxu0
      %v829 = vadd.f32 0.0, %v828
      %830 = vmatmul.bf16.gmra.mxu0 %v791
      %v831 = vpop.f32.mrf.mxu0
      %v832 = vadd.f32 0.0, %v831
      %v833 = vpop.f32.mrf.mxu0
      %v834 = vadd.f32 0.0, %v833
      %835 = vmatmul.bf16.gmra.mxu0 %v794
      %v836 = vpop.f32.mrf.mxu0
      %v837 = vadd.f32 0.0, %v836
      %v838 = vpop.f32.mrf.mxu0
      %v839 = vadd.f32 0.0, %v838
      %840 = vmatmul.bf16.gmra.mxu0 %v797
      %v841 = vpop.f32.mrf.mxu0
      %v842 = vadd.f32 0.0, %v841
      %v843 = vpop.f32.mrf.mxu0
      %v844 = vadd.f32 0.0, %v843
      %845 = vdwg.mxu0
      %v846 = vadd.f32 %v727, %v812
      %v847 = vadd.f32 %v728, %v814
      %v848 = vadd.f32 %v729, %v817
      %v849 = vadd.f32 %v730, %v819
      %v850 = vadd.f32 %v731, %v822
      %v851 = vadd.f32 %v732, %v824
      %v852 = vadd.f32 %v733, %v827
      %v853 = vadd.f32 %v734, %v829
      %v854 = vadd.f32 %v735, %v832
      %v855 = vadd.f32 %v736, %v834
      %v856 = vadd.f32 %v737, %v837
      %v857 = vadd.f32 %v738, %v839
      %v858 = vadd.f32 %v739, %v842
      %v859 = vadd.f32 %v740, %v844
      %v860 = vrot.slane %v608, 2
      %v861 = vrot.slane %v609, 2
      %v862 = vrot.slane %v610, 2
      %v863 = vrot.slane %v611, 2
      %v864 = vrot.slane %v612, 2
      %v865 = vrot.slane %v613, 2
      %v866 = vrot.slane %v614, 2
      %v867 = vrot.slane %v615, 2
      %v868 = vrot.slane %v616, 2
      %v869 = vrot.slane %v617, 2
      %v870 = vrot.slane %v618, 2
      %v871 = vrot.slane %v619, 2
      %v872 = vrot.slane %v620, 2
      %v873 = vrot.slane %v621, 2
      %v874 = vsel %vm483, %v872, %v873
      %v875 = vsel %vm483, %v871, %v872
      %v876 = vsel %vm483, %v870, %v871
      %v877 = vsel %vm483, %v869, %v870
      %v878 = vsel %vm483, %v868, %v869
      %v879 = vsel %vm483, %v867, %v868
      %v880 = vsel %vm483, %v866, %v867
      %v881 = vsel %vm483, %v865, %v866
      %v882 = vsel %vm483, %v864, %v865
      %v883 = vsel %vm483, %v863, %v864
      %v884 = vsel %vm483, %v862, %v863
      %v885 = vsel %vm483, %v861, %v862
      %v886 = vsel %vm483, %v860, %v861
      %v887 = vsel %vm483, %v873, %v860
      %v888 = vpack.c.bf16 %v885, %v886
      %v889 = vpack.c.bf16 %v883, %v884
      %v890 = vpack.c.bf16 %v881, %v882
      %v891 = vpack.c.bf16 %v879, %v880
      %v892 = vpack.c.bf16 %v877, %v878
      %v893 = vpack.c.bf16 %v875, %v876
      %v894 = vpack.c.bf16 %v887, %v874
      %s895 = scalar_lea.vmem %s1, 10
      %v896 = vld [vmem:[%s895] sm:$0x3]
      %v898 = vsel %vm296, %v888, 0
      %v901 = vsel %vm296, %v889, 0
      %v904 = vsel %vm296, %v890, 0
      %v907 = vsel %vm296, %v891, 0
      %v910 = vsel %vm296, %v892, 0
      %v913 = vsel %vm296, %v893, 0
      %v916 = vsel %vm296, %v894, 0
      %v919 = vsel %vm318, %v896, 0
      %921 = vmatpush.bf16.msra.mxu0 0
      %922 = vmatpush.bf16.msra.mxu0 0
      %923 = vmatpush.bf16.msra.mxu0 0
      %924 = vmatpush.bf16.msra.mxu0 0
      %925 = vmatpush.bf16.msra.mxu0 0
      %926 = vmatpush.bf16.msra.mxu0 0
      %927 = vmatpush.bf16.msra.mxu0 0
      %928 = vmatpush.bf16.msra.mxu0 %v919
      %929 = vmatmul.bf16.gmra.mxu0 %v898
      %v930 = vpop.f32.mrf.mxu0
      %v931 = vadd.f32 0.0, %v930
      %v932 = vpop.f32.mrf.mxu0
      %v933 = vadd.f32 0.0, %v932
      %934 = vmatmul.bf16.gmra.mxu0 %v901
      %v935 = vpop.f32.mrf.mxu0
      %v936 = vadd.f32 0.0, %v935
      %v937 = vpop.f32.mrf.mxu0
      %v938 = vadd.f32 0.0, %v937
      %939 = vmatmul.bf16.gmra.mxu0 %v904
      %v940 = vpop.f32.mrf.mxu0
      %v941 = vadd.f32 0.0, %v940
      %v942 = vpop.f32.mrf.mxu0
      %v943 = vadd.f32 0.0, %v942
      %944 = vmatmul.bf16.gmra.mxu0 %v907
      %v945 = vpop.f32.mrf.mxu0
      %v946 = vadd.f32 0.0, %v945
      %v947 = vpop.f32.mrf.mxu0
      %v948 = vadd.f32 0.0, %v947
      %949 = vmatmul.bf16.gmra.mxu0 %v910
      %v950 = vpop.f32.mrf.mxu0
      %v951 = vadd.f32 0.0, %v950
      %v952 = vpop.f32.mrf.mxu0
      %v953 = vadd.f32 0.0, %v952
      %954 = vmatmul.bf16.gmra.mxu0 %v913
      %v955 = vpop.f32.mrf.mxu0
      %v956 = vadd.f32 0.0, %v955
      %v957 = vpop.f32.mrf.mxu0
      %v958 = vadd.f32 0.0, %v957
      %959 = vmatmul.bf16.gmra.mxu0 %v916
      %v960 = vpop.f32.mrf.mxu0
      %v961 = vadd.f32 0.0, %v960
      %v962 = vpop.f32.mrf.mxu0
      %v963 = vadd.f32 0.0, %v962
      %964 = vdwg.mxu0
      %v965 = vadd.f32 %v846, %v931
      %v966 = vadd.f32 %v847, %v933
      %v967 = vadd.f32 %v848, %v936
      %v968 = vadd.f32 %v849, %v938
      %v969 = vadd.f32 %v850, %v941
      %v970 = vadd.f32 %v851, %v943
      %v971 = vadd.f32 %v852, %v946
      %v972 = vadd.f32 %v853, %v948
      %v973 = vadd.f32 %v854, %v951
      %v974 = vadd.f32 %v855, %v953
      %v975 = vadd.f32 %v856, %v956
      %v976 = vadd.f32 %v857, %v958
      %v977 = vadd.f32 %v858, %v961
      %v978 = vadd.f32 %v859, %v963
      %s979 = sadd.s32 %s222, 32
      %s980 = sshra.s32 %s979, 3
      %s981 = sand.u32 %s979, 7
      %s982 = smul.addr %s980, 4
      %s983 = scalar_lea.vmem %s210, %s982
      %v984 = vld [vmem:[%s983] sm:$0xf]
      %v985 = vld [vmem:[%s983 + $0x4] sm:$0xf]
      %v986 = vld [vmem:[%s983 + $0x8] sm:$0xf]
      %v987 = vld [vmem:[%s983 + $0xc] sm:$0xf]
      %v988 = vld [vmem:[%s983 + $0x10] sm:$0xf]
      %v989 = vld [vmem:[%s983 + $0x14] sm:$0xf]
      %v990 = vld [vmem:[%s983 + $0x18] sm:$0xf]
      %v991 = vld [vmem:[%s983 + $0x1c] sm:$0xf]
      %v992 = vld [vmem:[%s983 + $0x20] sm:$0xf]
      %v993 = vld [vmem:[%s983 + $0x24] sm:$0xf]
      %v994 = vld [vmem:[%s983 + $0x28] sm:$0xf]
      %v995 = vld [vmem:[%s983 + $0x2c] sm:$0xf]
      %v996 = vld [vmem:[%s983 + $0x30] sm:$0xf]
      %v997 = vld [vmem:[%s983 + $0x34] sm:$0xf]
      %v998 = vunpack.c.l.bf16 %v984
      %v999 = vunpack.c.l.bf16 %v985
      %v1000 = vunpack.c.l.bf16 %v986
      %v1001 = vunpack.c.l.bf16 %v987
      %v1002 = vunpack.c.l.bf16 %v988
      %v1003 = vunpack.c.l.bf16 %v989
      %v1004 = vunpack.c.l.bf16 %v990
      %v1005 = vunpack.c.l.bf16 %v991
      %v1006 = vunpack.c.l.bf16 %v992
      %v1007 = vunpack.c.l.bf16 %v993
      %v1008 = vunpack.c.l.bf16 %v994
      %v1009 = vunpack.c.l.bf16 %v995
      %v1010 = vunpack.c.l.bf16 %v996
      %v1011 = vunpack.c.l.bf16 %v997
      %s1012 = scalar_lea.vmem %s1, 12
      %v1013 = vld [vmem:[%s1012] sm:$0x3]
      %v1028 = vunpack.c.l.b16 %v984
      %v1029 = vunpack.c.l.b16 %v985
      %v1030 = vunpack.c.l.b16 %v986
      %v1031 = vunpack.c.l.b16 %v987
      %v1032 = vunpack.c.l.b16 %v988
      %v1033 = vunpack.c.l.b16 %v989
      %v1034 = vunpack.c.l.b16 %v990
      %v1035 = vunpack.c.l.b16 %v991
      %v1036 = vunpack.c.l.b16 %v992
      %v1037 = vunpack.c.l.b16 %v993
      %v1038 = vunpack.c.l.b16 %v994
      %v1039 = vunpack.c.l.b16 %v995
      %v1040 = vunpack.c.l.b16 %v996
      %v1041 = vunpack.c.l.b16 %v997
      %v1042 = vpack.c.b16 %v1029, %v1028
      %v1043 = vpack.c.b16 %v1031, %v1030
      %v1044 = vpack.c.b16 %v1033, %v1032
      %v1045 = vpack.c.b16 %v1035, %v1034
      %v1046 = vpack.c.b16 %v1037, %v1036
      %v1047 = vpack.c.b16 %v1039, %v1038
      %v1048 = vpack.c.b16 %v1041, %v1040
      %v1050 = vsel %vm296, %v1042, 0
      %v1053 = vsel %vm296, %v1043, 0
      %v1056 = vsel %vm296, %v1044, 0
      %v1059 = vsel %vm296, %v1045, 0
      %v1062 = vsel %vm296, %v1046, 0
      %v1065 = vsel %vm296, %v1047, 0
      %v1068 = vsel %vm296, %v1048, 0
      %v1071 = vsel %vm318, %v1013, 0
      %1073 = vmatpush.bf16.msra.mxu0 0
      %1074 = vmatpush.bf16.msra.mxu0 0
      %1075 = vmatpush.bf16.msra.mxu0 0
      %1076 = vmatpush.bf16.msra.mxu0 0
      %1077 = vmatpush.bf16.msra.mxu0 0
      %1078 = vmatpush.bf16.msra.mxu0 0
      %1079 = vmatpush.bf16.msra.mxu0 0
      %1080 = vmatpush.bf16.msra.mxu0 %v1071
      %1081 = vmatmul.bf16.gmra.mxu0 %v1050
      %v1082 = vpop.f32.mrf.mxu0
      %v1083 = vadd.f32 0.0, %v1082
      %v1084 = vpop.f32.mrf.mxu0
      %v1085 = vadd.f32 0.0, %v1084
      %1086 = vmatmul.bf16.gmra.mxu0 %v1053
      %v1087 = vpop.f32.mrf.mxu0
      %v1088 = vadd.f32 0.0, %v1087
      %v1089 = vpop.f32.mrf.mxu0
      %v1090 = vadd.f32 0.0, %v1089
      %1091 = vmatmul.bf16.gmra.mxu0 %v1056
      %v1092 = vpop.f32.mrf.mxu0
      %v1093 = vadd.f32 0.0, %v1092
      %v1094 = vpop.f32.mrf.mxu0
      %v1095 = vadd.f32 0.0, %v1094
      %1096 = vmatmul.bf16.gmra.mxu0 %v1059
      %v1097 = vpop.f32.mrf.mxu0
      %v1098 = vadd.f32 0.0, %v1097
      %v1099 = vpop.f32.mrf.mxu0
      %v1100 = vadd.f32 0.0, %v1099
      %1101 = vmatmul.bf16.gmra.mxu0 %v1062
      %v1102 = vpop.f32.mrf.mxu0
      %v1103 = vadd.f32 0.0, %v1102
      %v1104 = vpop.f32.mrf.mxu0
      %v1105 = vadd.f32 0.0, %v1104
      %1106 = vmatmul.bf16.gmra.mxu0 %v1065
      %v1107 = vpop.f32.mrf.mxu0
      %v1108 = vadd.f32 0.0, %v1107
      %v1109 = vpop.f32.mrf.mxu0
      %v1110 = vadd.f32 0.0, %v1109
      %1111 = vmatmul.bf16.gmra.mxu0 %v1068
      %v1112 = vpop.f32.mrf.mxu0
      %v1113 = vadd.f32 0.0, %v1112
      %v1114 = vpop.f32.mrf.mxu0
      %v1115 = vadd.f32 0.0, %v1114
      %1116 = vdwg.mxu0
      %v1117 = vadd.f32 %v965, %v1083
      %v1118 = vadd.f32 %v966, %v1085
      %v1119 = vadd.f32 %v967, %v1088
      %v1120 = vadd.f32 %v968, %v1090
      %v1121 = vadd.f32 %v969, %v1093
      %v1122 = vadd.f32 %v970, %v1095
      %v1123 = vadd.f32 %v971, %v1098
      %v1124 = vadd.f32 %v972, %v1100
      %v1125 = vadd.f32 %v973, %v1103
      %v1126 = vadd.f32 %v974, %v1105
      %v1127 = vadd.f32 %v975, %v1108
      %v1128 = vadd.f32 %v976, %v1110
      %v1129 = vadd.f32 %v977, %v1113
      %v1130 = vadd.f32 %v978, %v1115
      %v1131 = vrot.slane %v998, 1
      %v1132 = vrot.slane %v999, 1
      %v1133 = vrot.slane %v1000, 1
      %v1134 = vrot.slane %v1001, 1
      %v1135 = vrot.slane %v1002, 1
      %v1136 = vrot.slane %v1003, 1
      %v1137 = vrot.slane %v1004, 1
      %v1138 = vrot.slane %v1005, 1
      %v1139 = vrot.slane %v1006, 1
      %v1140 = vrot.slane %v1007, 1
      %v1141 = vrot.slane %v1008, 1
      %v1142 = vrot.slane %v1009, 1
      %v1143 = vrot.slane %v1010, 1
      %v1144 = vrot.slane %v1011, 1
      %v1145 = vsel %vm272, %v1143, %v1144
      %v1146 = vsel %vm272, %v1142, %v1143
      %v1147 = vsel %vm272, %v1141, %v1142
      %v1148 = vsel %vm272, %v1140, %v1141
      %v1149 = vsel %vm272, %v1139, %v1140
      %v1150 = vsel %vm272, %v1138, %v1139
      %v1151 = vsel %vm272, %v1137, %v1138
      %v1152 = vsel %vm272, %v1136, %v1137
      %v1153 = vsel %vm272, %v1135, %v1136
      %v1154 = vsel %vm272, %v1134, %v1135
      %v1155 = vsel %vm272, %v1133, %v1134
      %v1156 = vsel %vm272, %v1132, %v1133
      %v1157 = vsel %vm272, %v1131, %v1132
      %v1158 = vsel %vm272, %v1144, %v1131
      %v1159 = vpack.c.bf16 %v1156, %v1157
      %v1160 = vpack.c.bf16 %v1154, %v1155
      %v1161 = vpack.c.bf16 %v1152, %v1153
      %v1162 = vpack.c.bf16 %v1150, %v1151
      %v1163 = vpack.c.bf16 %v1148, %v1149
      %v1164 = vpack.c.bf16 %v1146, %v1147
      %v1165 = vpack.c.bf16 %v1158, %v1145
      %s1166 = scalar_lea.vmem %s1, 14
      %v1167 = vld [vmem:[%s1166] sm:$0x3]
      %v1169 = vsel %vm296, %v1159, 0
      %v1172 = vsel %vm296, %v1160, 0
      %v1175 = vsel %vm296, %v1161, 0
      %v1178 = vsel %vm296, %v1162, 0
      %v1181 = vsel %vm296, %v1163, 0
      %v1184 = vsel %vm296, %v1164, 0
      %v1187 = vsel %vm296, %v1165, 0
      %v1190 = vsel %vm318, %v1167, 0
      %1192 = vmatpush.bf16.msra.mxu0 0
      %1193 = vmatpush.bf16.msra.mxu0 0
      %1194 = vmatpush.bf16.msra.mxu0 0
      %1195 = vmatpush.bf16.msra.mxu0 0
      %1196 = vmatpush.bf16.msra.mxu0 0
      %1197 = vmatpush.bf16.msra.mxu0 0
      %1198 = vmatpush.bf16.msra.mxu0 0
      %1199 = vmatpush.bf16.msra.mxu0 %v1190
      %1200 = vmatmul.bf16.gmra.mxu0 %v1169
      %v1201 = vpop.f32.mrf.mxu0
      %v1202 = vadd.f32 0.0, %v1201
      %v1203 = vpop.f32.mrf.mxu0
      %v1204 = vadd.f32 0.0, %v1203
      %1205 = vmatmul.bf16.gmra.mxu0 %v1172
      %v1206 = vpop.f32.mrf.mxu0
      %v1207 = vadd.f32 0.0, %v1206
      %v1208 = vpop.f32.mrf.mxu0
      %v1209 = vadd.f32 0.0, %v1208
      %1210 = vmatmul.bf16.gmra.mxu0 %v1175
      %v1211 = vpop.f32.mrf.mxu0
      %v1212 = vadd.f32 0.0, %v1211
      %v1213 = vpop.f32.mrf.mxu0
      %v1214 = vadd.f32 0.0, %v1213
      %1215 = vmatmul.bf16.gmra.mxu0 %v1178
      %v1216 = vpop.f32.mrf.mxu0
      %v1217 = vadd.f32 0.0, %v1216
      %v1218 = vpop.f32.mrf.mxu0
      %v1219 = vadd.f32 0.0, %v1218
      %1220 = vmatmul.bf16.gmra.mxu0 %v1181
      %v1221 = vpop.f32.mrf.mxu0
      %v1222 = vadd.f32 0.0, %v1221
      %v1223 = vpop.f32.mrf.mxu0
      %v1224 = vadd.f32 0.0, %v1223
      %1225 = vmatmul.bf16.gmra.mxu0 %v1184
      %v1226 = vpop.f32.mrf.mxu0
      %v1227 = vadd.f32 0.0, %v1226
      %v1228 = vpop.f32.mrf.mxu0
      %v1229 = vadd.f32 0.0, %v1228
      %1230 = vmatmul.bf16.gmra.mxu0 %v1187
      %v1231 = vpop.f32.mrf.mxu0
      %v1232 = vadd.f32 0.0, %v1231
      %v1233 = vpop.f32.mrf.mxu0
      %v1234 = vadd.f32 0.0, %v1233
      %1235 = vdwg.mxu0
      %v1236 = vadd.f32 %v1117, %v1202
      %v1237 = vadd.f32 %v1118, %v1204
      %v1238 = vadd.f32 %v1119, %v1207
      %v1239 = vadd.f32 %v1120, %v1209
      %v1240 = vadd.f32 %v1121, %v1212
      %v1241 = vadd.f32 %v1122, %v1214
      %v1242 = vadd.f32 %v1123, %v1217
      %v1243 = vadd.f32 %v1124, %v1219
      %v1244 = vadd.f32 %v1125, %v1222
      %v1245 = vadd.f32 %v1126, %v1224
      %v1246 = vadd.f32 %v1127, %v1227
      %v1247 = vadd.f32 %v1128, %v1229
      %v1248 = vadd.f32 %v1129, %v1232
      %v1249 = vadd.f32 %v1130, %v1234
      %v1250 = vrot.slane %v998, 2
      %v1251 = vrot.slane %v999, 2
      %v1252 = vrot.slane %v1000, 2
      %v1253 = vrot.slane %v1001, 2
      %v1254 = vrot.slane %v1002, 2
      %v1255 = vrot.slane %v1003, 2
      %v1256 = vrot.slane %v1004, 2
      %v1257 = vrot.slane %v1005, 2
      %v1258 = vrot.slane %v1006, 2
      %v1259 = vrot.slane %v1007, 2
      %v1260 = vrot.slane %v1008, 2
      %v1261 = vrot.slane %v1009, 2
      %v1262 = vrot.slane %v1010, 2
      %v1263 = vrot.slane %v1011, 2
      %v1264 = vsel %vm483, %v1262, %v1263
      %v1265 = vsel %vm483, %v1261, %v1262
      %v1266 = vsel %vm483, %v1260, %v1261
      %v1267 = vsel %vm483, %v1259, %v1260
      %v1268 = vsel %vm483, %v1258, %v1259
      %v1269 = vsel %vm483, %v1257, %v1258
      %v1270 = vsel %vm483, %v1256, %v1257
      %v1271 = vsel %vm483, %v1255, %v1256
      %v1272 = vsel %vm483, %v1254, %v1255
      %v1273 = vsel %vm483, %v1253, %v1254
      %v1274 = vsel %vm483, %v1252, %v1253
      %v1275 = vsel %vm483, %v1251, %v1252
      %v1276 = vsel %vm483, %v1250, %v1251
      %v1277 = vsel %vm483, %v1263, %v1250
      %v1278 = vpack.c.bf16 %v1275, %v1276
      %v1279 = vpack.c.bf16 %v1273, %v1274
      %v1280 = vpack.c.bf16 %v1271, %v1272
      %v1281 = vpack.c.bf16 %v1269, %v1270
      %v1282 = vpack.c.bf16 %v1267, %v1268
      %v1283 = vpack.c.bf16 %v1265, %v1266
      %v1284 = vpack.c.bf16 %v1277, %v1264
      %s1285 = scalar_lea.vmem %s1, 16
      %v1286 = vld [vmem:[%s1285] sm:$0x3]
      %v1288 = vsel %vm296, %v1278, 0
      %v1291 = vsel %vm296, %v1279, 0
      %v1294 = vsel %vm296, %v1280, 0
      %v1297 = vsel %vm296, %v1281, 0
      %v1300 = vsel %vm296, %v1282, 0
      %v1303 = vsel %vm296, %v1283, 0
      %v1306 = vsel %vm296, %v1284, 0
      %v1309 = vsel %vm318, %v1286, 0
      %1311 = vmatpush.bf16.msra.mxu0 0
      %1312 = vmatpush.bf16.msra.mxu0 0
      %1313 = vmatpush.bf16.msra.mxu0 0
      %1314 = vmatpush.bf16.msra.mxu0 0
      %1315 = vmatpush.bf16.msra.mxu0 0
      %1316 = vmatpush.bf16.msra.mxu0 0
      %1317 = vmatpush.bf16.msra.mxu0 0
      %1318 = vmatpush.bf16.msra.mxu0 %v1309
      %1319 = vmatmul.bf16.gmra.mxu0 %v1288
      %v1320 = vpop.f32.mrf.mxu0
      %v1321 = vadd.f32 0.0, %v1320
      %v1322 = vpop.f32.mrf.mxu0
      %v1323 = vadd.f32 0.0, %v1322
      %1324 = vmatmul.bf16.gmra.mxu0 %v1291
      %v1325 = vpop.f32.mrf.mxu0
      %v1326 = vadd.f32 0.0, %v1325
      %v1327 = vpop.f32.mrf.mxu0
      %v1328 = vadd.f32 0.0, %v1327
      %1329 = vmatmul.bf16.gmra.mxu0 %v1294
      %v1330 = vpop.f32.mrf.mxu0
      %v1331 = vadd.f32 0.0, %v1330
      %v1332 = vpop.f32.mrf.mxu0
      %v1333 = vadd.f32 0.0, %v1332
      %1334 = vmatmul.bf16.gmra.mxu0 %v1297
      %v1335 = vpop.f32.mrf.mxu0
      %v1336 = vadd.f32 0.0, %v1335
      %v1337 = vpop.f32.mrf.mxu0
      %v1338 = vadd.f32 0.0, %v1337
      %1339 = vmatmul.bf16.gmra.mxu0 %v1300
      %v1340 = vpop.f32.mrf.mxu0
      %v1341 = vadd.f32 0.0, %v1340
      %v1342 = vpop.f32.mrf.mxu0
      %v1343 = vadd.f32 0.0, %v1342
      %1344 = vmatmul.bf16.gmra.mxu0 %v1303
      %v1345 = vpop.f32.mrf.mxu0
      %v1346 = vadd.f32 0.0, %v1345
      %v1347 = vpop.f32.mrf.mxu0
      %v1348 = vadd.f32 0.0, %v1347
      %1349 = vmatmul.bf16.gmra.mxu0 %v1306
      %v1350 = vpop.f32.mrf.mxu0
      %v1351 = vadd.f32 0.0, %v1350
      %v1352 = vpop.f32.mrf.mxu0
      %v1353 = vadd.f32 0.0, %v1352
      %1354 = vdwg.mxu0
      %v1355 = vadd.f32 %v1236, %v1321
      %v1356 = vadd.f32 %v1237, %v1323
      %v1357 = vadd.f32 %v1238, %v1326
      %v1358 = vadd.f32 %v1239, %v1328
      %v1359 = vadd.f32 %v1240, %v1331
      %v1360 = vadd.f32 %v1241, %v1333
      %v1361 = vadd.f32 %v1242, %v1336
      %v1362 = vadd.f32 %v1243, %v1338
      %v1363 = vadd.f32 %v1244, %v1341
      %v1364 = vadd.f32 %v1245, %v1343
      %v1365 = vadd.f32 %v1246, %v1346
      %v1366 = vadd.f32 %v1247, %v1348
      %v1367 = vadd.f32 %v1248, %v1351
      %v1368 = vadd.f32 %v1249, %v1353
      %v1369 = vld [vmem:[%s2] sm:$0x1]
      %v1371 = vperm.slane %v1369, 0
      %v1373 = vmul.f32 %v1355, %v1371
      %v1374 = vmul.f32 %v1356, %v1371
      %v1375 = vmul.f32 %v1357, %v1371
      %v1376 = vmul.f32 %v1358, %v1371
      %v1377 = vmul.f32 %v1359, %v1371
      %v1378 = vmul.f32 %v1360, %v1371
      %v1379 = vmul.f32 %v1361, %v1371
      %v1380 = vmul.f32 %v1362, %v1371
      %v1381 = vmul.f32 %v1363, %v1371
      %v1382 = vmul.f32 %v1364, %v1371
      %v1383 = vmul.f32 %v1365, %v1371
      %v1384 = vmul.f32 %v1366, %v1371
      %v1385 = vmul.f32 %v1367, %v1371
      %v1386 = vmul.f32 %v1368, %v1371
      %v1387 = vld [vmem:[%s3] sm:$0x1]
      %v1389 = vperm.slane %v1387, 0
      %v1391 = vadd.f32 %v1373, %v1389
      %v1392 = vadd.f32 %v1374, %v1389
      %v1393 = vadd.f32 %v1375, %v1389
      %v1394 = vadd.f32 %v1376, %v1389
      %v1395 = vadd.f32 %v1377, %v1389
      %v1396 = vadd.f32 %v1378, %v1389
      %v1397 = vadd.f32 %v1379, %v1389
      %v1398 = vadd.f32 %v1380, %v1389
      %v1399 = vadd.f32 %v1381, %v1389
      %v1400 = vadd.f32 %v1382, %v1389
      %v1401 = vadd.f32 %v1383, %v1389
      %v1402 = vadd.f32 %v1384, %v1389
      %v1403 = vadd.f32 %v1385, %v1389
      %v1404 = vadd.f32 %v1386, %v1389
      %v1405 = vmax.f32 %v1391, 0.0
      %v1406 = vmax.f32 %v1392, 0.0
      %v1407 = vmax.f32 %v1393, 0.0
      %v1408 = vmax.f32 %v1394, 0.0
      %v1409 = vmax.f32 %v1395, 0.0
      %v1410 = vmax.f32 %v1396, 0.0
      %v1411 = vmax.f32 %v1397, 0.0
      %v1412 = vmax.f32 %v1398, 0.0
      %v1413 = vmax.f32 %v1399, 0.0
      %v1414 = vmax.f32 %v1400, 0.0
      %v1415 = vmax.f32 %v1401, 0.0
      %v1416 = vmax.f32 %v1402, 0.0
      %v1417 = vmax.f32 %v1403, 0.0
      %v1418 = vmax.f32 %v1404, 0.0
      %v1419 = vpack.c.bf16 %v1405, %v1405
      %v1420 = vpack.c.bf16 %v1406, %v1406
      %v1421 = vpack.c.bf16 %v1407, %v1407
      %v1422 = vpack.c.bf16 %v1408, %v1408
      %v1423 = vpack.c.bf16 %v1409, %v1409
      %v1424 = vpack.c.bf16 %v1410, %v1410
      %v1425 = vpack.c.bf16 %v1411, %v1411
      %v1426 = vpack.c.bf16 %v1412, %v1412
      %v1427 = vpack.c.bf16 %v1413, %v1413
      %v1428 = vpack.c.bf16 %v1414, %v1414
      %v1429 = vpack.c.bf16 %v1415, %v1415
      %v1430 = vpack.c.bf16 %v1416, %v1416
      %v1431 = vpack.c.bf16 %v1417, %v1417
      %v1432 = vpack.c.bf16 %v1418, %v1418
      %1433 = vst [vmem:[%s219] sm:$0xf] %v1419
      %1434 = vst [vmem:[%s219 + $0x4] sm:$0xf] %v1420
      %1435 = vst [vmem:[%s219 + $0x8] sm:$0xf] %v1421
      %1436 = vst [vmem:[%s219 + $0xc] sm:$0xf] %v1422
      %1437 = vst [vmem:[%s219 + $0x10] sm:$0xf] %v1423
      %1438 = vst [vmem:[%s219 + $0x14] sm:$0xf] %v1424
      %1439 = vst [vmem:[%s219 + $0x18] sm:$0xf] %v1425
      %1440 = vst [vmem:[%s219 + $0x1c] sm:$0xf] %v1426
      %1441 = vst [vmem:[%s219 + $0x20] sm:$0xf] %v1427
      %1442 = vst [vmem:[%s219 + $0x24] sm:$0xf] %v1428
      %1443 = vst [vmem:[%s219 + $0x28] sm:$0xf] %v1429
      %1444 = vst [vmem:[%s219 + $0x2c] sm:$0xf] %v1430
      %1445 = vst [vmem:[%s219 + $0x30] sm:$0xf] %v1431
      %1446 = vst [vmem:[%s219 + $0x34] sm:$0xf] %v1432
      %s1447 = smul.u32 14, %s20
      %p1448 = scmp.lt.s32.totalorder %s19, 1
      %s1449 = scalar_select %p1448, %s19, 1
      %p1450 = scmp.lt.s32.totalorder %s1447, 27
      %s1451 = scalar_select %p1450, %s1447, 27
      %s1452 = smul.addr %s1449, 28
      %s1453 = sadd.s32 %s1451, %s1452
      %s1454 = smul.addr %s1453, 4
      %s1455 = scalar_lea.vmem %s4, %s1454
      // Predicated region
      $region37: #{depthwise_xcorr_forward.4} parent=35 // pred_check
        %p1456 = pneg %p136
      $region38: #{depthwise_xcorr_forward.4} parent=35 // pred_check_branch
        %1458 = sbr.rel (%p1456) target = $region40
      $region39: #{depthwise_xcorr_forward.4} parent=35 // pred_region
        %s1459 = smul.u32 14, %s20
      $region40: #{depthwise_xcorr_forward.4} parent=35 // pred_fallthru
        _
    $region36: #{depthwise_xcorr_forward.4} parent=5 // pred_fallthru
      _
    %p1460 = scmp.le.s32.totalorder 2, %s10
    // Predicated region
    $region41: #{depthwise_xcorr_forward.4} parent=5 // pred_check
      %p1461 = pneg %p1460
    $region42: #{depthwise_xcorr_forward.4} parent=5 // pred_check_branch
      %1463 = sbr.rel (%p1461) target = $region44
    $region43: #{depthwise_xcorr_forward.4} parent=5 // pred_region
      %s1464 = ssub.s32 %s10, 2
      // Predicated region
      $region45: #{depthwise_xcorr_forward.4} parent=43 // pred_check
        %p1465 = pneg %p142
      $region46: #{depthwise_xcorr_forward.4} parent=43 // pred_check_branch
        %1467 = sbr.rel (%p1465) target = $region48
      $region47: #{depthwise_xcorr_forward.4} parent=43 // pred_region
        %s1468 = smul.u32 14, %s22
        %p1469 = scmp.lt.s32.totalorder %s21, 1
        %s1470 = scalar_select %p1469, %s21, 1
        %p1471 = scmp.lt.s32.totalorder %s1468, 27
        %s1472 = scalar_select %p1471, %s1468, 27
        %s1473 = smul.addr %s1470, 28
        %s1474 = sadd.s32 %s1472, %s1473
        %s1475 = smul.addr %s1474, 4
        %s1476 = scalar_lea.vmem %s4, %s1475
      $region48: #{depthwise_xcorr_forward.4} parent=43 // pred_fallthru
        _
    $region44: #{depthwise_xcorr_forward.4} parent=5 // pred_fallthru
      _
  $region6: #{depthwise_xcorr_forward.4} parent=0 // loop_footer
    %s14 = sadd.s32 1, %s10
  $region7: #{depthwise_xcorr_forward.4} parent=0 // loop_footer_branch
    %9 = sbr.rel target = $region3
  $region8: #{depthwise_xcorr_forward.4} parent=0 // loop_exit
    _

// kernel: depthwise_xcorr_forward.5
$region0: #{depthwise_xcorr_forward.5}
  #allocation0 [shape = 'u32[]', space=smem, size = 0x4, offset = 0x4, fixed_abs, tag = 'smem constant byte address 0x4 - core index']
  #allocation1 [shape = 'u32[72,128]{1,0:T(1,128)}', space=vmem, size = 0x9000, scoped, tag = 'internal scratch']
  %s0 = inlined_call_operand.vmem [shape: bf16[2,224,128], index: 0, kind: input, shape index: {}]
  %s1 = inlined_call_operand.vmem [shape: bf16[2,48,128], index: 1, kind: input, shape index: {}]
  %s2 = inlined_call_operand.vmem [shape: bf16[128,128], index: 2, kind: input, shape index: {}]
  %s3 = inlined_call_operand.vmem [shape: f32[1,128], index: 3, kind: input, shape index: {}]
  %s4 = inlined_call_operand.vmem [shape: f32[1,128], index: 4, kind: input, shape index: {}]
  %s5 = inlined_call_operand.vmem [shape: bf16[128,128], index: 5, kind: input, shape index: {}]
  %s6 = inlined_call_operand.vmem [shape: f32[1,128], index: 6, kind: input, shape index: {}]
  %s7 = inlined_call_operand.vmem [shape: f32[2,144,128], index: 7, kind: output, shape index: {}]
  %s8 = sld [smem:[#allocation0]]
  $region61: #{depthwise_xcorr_forward.5} parent=0
    _
  %s10 = ssub.s32 1, %s8
  %s11 = scalar_select 0, %s10, %s8
  loop: start=0, step=1, limit=8
  $region2: #{depthwise_xcorr_forward.5} parent=0 // loop_pre_header
    _
  $region3: #{depthwise_xcorr_forward.5} parent=0 // loop_header
    %s13 = sphi 0, %s17
    %p14 = scmp.ge.s32.totalorder %s13, 8
    %s20 = sphi 0, %s32
    %s21 = sphi 0, %s28
    %s22 = sphi 0, %s20
    %s23 = sphi 0, %s21
    %s24 = sphi 0, %s22
    %s25 = sphi 0, %s23
    %s35 = sphi 0, %s37
    %s38 = sphi 0, %s35
    %s39 = sphi 0, %s38
    %s55 = sphi 0, %s39
    %s61 = sphi 0, %s63
    %s64 = sphi 0, %s61
    %s65 = sphi 0, %s64
    %s81 = sphi 0, %s65
    %s85 = sphi 0, %s85
    %s87 = sphi 0, %s85
    %s88 = sphi 0, %s87
    %s102 = sphi 0, %s88
    %s106 = sphi 0, %s106
    %s108 = sphi 0, %s106
    %s109 = sphi 0, %s108
    %s123 = sphi 0, %s109
    %s127 = sphi 0, %s127
    %s129 = sphi 0, %s127
    %s130 = sphi 0, %s129
    %s144 = sphi 0, %s130
    %s148 = sphi 0, %s148
    %s150 = sphi 0, %s148
    %s151 = sphi 0, %s150
    %s165 = sphi 0, %s151
    %s169 = sphi 0, %s169
    %s171 = sphi 0, %s169
    %s172 = sphi 0, %s171
    %s186 = sphi 0, %s172
    %s194 = sphi 0, %s196
    %s197 = sphi 0, %s194
    %s198 = sphi 0, %s197
    %s214 = sphi 0, %s198
  $region4: #{depthwise_xcorr_forward.5} parent=0 // loop_header_branch
    %16 = sbr.rel (%p14) target = $region8
  $region5: #{depthwise_xcorr_forward.5} parent=0 // loop_body
    %s18 = ssub.s32 %s13, 1
    %s19 = ssub.s32 %s13, 2
    %s26 = sadd.s32 1, %s21
    %p27 = scmp.ge.s32.totalorder %s26, 3
    %s28 = scalar_select %p27, 0, %s26
    %s29 = sadd.s32 1, %s20
    %s30 = scalar_select %p27, %s29, %s20
    %p31 = scmp.ge.s32.totalorder %s30, 2
    %s32 = scalar_select %p31, 0, %s30
    %s33 = ssub.s32 %s20, %s32
    %p34 = scmp.eq.s32.totalorder %s33, 0
    %s36 = sadd.s32 %s35, 1
    %s37 = scalar_select %p34, %s35, %s36
    %p40 = pneg %p34
    %p41 = scmp.eq.s32.totalorder %s13, 5
    %p42 = por %p40, %p41
    %p43 = scmp.ne.s32.totalorder %s35, %s38
    %p44 = scmp.eq.s32.totalorder %s13, 0
    %p45 = por %p43, %p44
    %p46 = scmp.ne.s32.totalorder %s35, %s38
    %p47 = scmp.eq.s32.totalorder %s18, 5
    %p48 = por %p46, %p47
    %p49 = scmp.ne.s32.totalorder %s38, %s39
    %p50 = scmp.eq.s32.totalorder %s18, 0
    %p51 = por %p49, %p50
    %p52 = scmp.ne.s32.totalorder %s38, %s39
    %p53 = scmp.eq.s32.totalorder %s19, 5
    %p54 = por %p52, %p53
    %p56 = scmp.ne.s32.totalorder %s39, %s55
    %p57 = scmp.eq.s32.totalorder %s19, 0
    %p58 = por %p56, %p57
    %s59 = ssub.s32 %s20, %s32
    %p60 = scmp.eq.s32.totalorder %s59, 0
    %s62 = sadd.s32 %s61, 1
    %s63 = scalar_select %p60, %s61, %s62
    %p66 = pneg %p60
    %p67 = scmp.eq.s32.totalorder %s13, 5
    %p68 = por %p66, %p67
    %p69 = scmp.ne.s32.totalorder %s61, %s64
    %p70 = scmp.eq.s32.totalorder %s13, 0
    %p71 = por %p69, %p70
    %p72 = scmp.ne.s32.totalorder %s61, %s64
    %p73 = scmp.eq.s32.totalorder %s18, 5
    %p74 = por %p72, %p73
    %p75 = scmp.ne.s32.totalorder %s64, %s65
    %p76 = scmp.eq.s32.totalorder %s18, 0
    %p77 = por %p75, %p76
    %p78 = scmp.ne.s32.totalorder %s64, %s65
    %p79 = scmp.eq.s32.totalorder %s19, 5
    %p80 = por %p78, %p79
    %p82 = scmp.ne.s32.totalorder %s65, %s81
    %p83 = scmp.eq.s32.totalorder %s19, 0
    %p84 = por %p82, %p83
    %s86 = sadd.s32 %s85, 1
    %p89 = scmp.eq.s32.totalorder %s13, 5
    %p90 = scmp.ne.s32.totalorder %s85, %s87
    %p91 = scmp.eq.s32.totalorder %s13, 0
    %p92 = por %p90, %p91
    %p93 = scmp.ne.s32.totalorder %s85, %s87
    %p94 = scmp.eq.s32.totalorder %s18, 5
    %p95 = por %p93, %p94
    %p96 = scmp.ne.s32.totalorder %s87, %s88
    %p97 = scmp.eq.s32.totalorder %s18, 0
    %p98 = por %p96, %p97
    %p99 = scmp.ne.s32.totalorder %s87, %s88
    %p100 = scmp.eq.s32.totalorder %s19, 5
    %p101 = por %p99, %p100
    %p103 = scmp.ne.s32.totalorder %s88, %s102
    %p104 = scmp.eq.s32.totalorder %s19, 0
    %p105 = por %p103, %p104
    %s107 = sadd.s32 %s106, 1
    %p110 = scmp.eq.s32.totalorder %s13, 5
    %p111 = scmp.ne.s32.totalorder %s106, %s108
    %p112 = scmp.eq.s32.totalorder %s13, 0
    %p113 = por %p111, %p112
    %p114 = scmp.ne.s32.totalorder %s106, %s108
    %p115 = scmp.eq.s32.totalorder %s18, 5
    %p116 = por %p114, %p115
    %p117 = scmp.ne.s32.totalorder %s108, %s109
    %p118 = scmp.eq.s32.totalorder %s18, 0
    %p119 = por %p117, %p118
    %p120 = scmp.ne.s32.totalorder %s108, %s109
    %p121 = scmp.eq.s32.totalorder %s19, 5
    %p122 = por %p120, %p121
    %p124 = scmp.ne.s32.totalorder %s109, %s123
    %p125 = scmp.eq.s32.totalorder %s19, 0
    %p126 = por %p124, %p125
    %s128 = sadd.s32 %s127, 1
    %p131 = scmp.eq.s32.totalorder %s13, 5
    %p132 = scmp.ne.s32.totalorder %s127, %s129
    %p133 = scmp.eq.s32.totalorder %s13, 0
    %p134 = por %p132, %p133
    %p135 = scmp.ne.s32.totalorder %s127, %s129
    %p136 = scmp.eq.s32.totalorder %s18, 5
    %p137 = por %p135, %p136
    %p138 = scmp.ne.s32.totalorder %s129, %s130
    %p139 = scmp.eq.s32.totalorder %s18, 0
    %p140 = por %p138, %p139
    %p141 = scmp.ne.s32.totalorder %s129, %s130
    %p142 = scmp.eq.s32.totalorder %s19, 5
    %p143 = por %p141, %p142
    %p145 = scmp.ne.s32.totalorder %s130, %s144
    %p146 = scmp.eq.s32.totalorder %s19, 0
    %p147 = por %p145, %p146
    %s149 = sadd.s32 %s148, 1
    %p152 = scmp.eq.s32.totalorder %s13, 5
    %p153 = scmp.ne.s32.totalorder %s148, %s150
    %p154 = scmp.eq.s32.totalorder %s13, 0
    %p155 = por %p153, %p154
    %p156 = scmp.ne.s32.totalorder %s148, %s150
    %p157 = scmp.eq.s32.totalorder %s18, 5
    %p158 = por %p156, %p157
    %p159 = scmp.ne.s32.totalorder %s150, %s151
    %p160 = scmp.eq.s32.totalorder %s18, 0
    %p161 = por %p159, %p160
    %p162 = scmp.ne.s32.totalorder %s150, %s151
    %p163 = scmp.eq.s32.totalorder %s19, 5
    %p164 = por %p162, %p163
    %p166 = scmp.ne.s32.totalorder %s151, %s165
    %p167 = scmp.eq.s32.totalorder %s19, 0
    %p168 = por %p166, %p167
    %s170 = sadd.s32 %s169, 1
    %p173 = scmp.eq.s32.totalorder %s13, 5
    %p174 = scmp.ne.s32.totalorder %s169, %s171
    %p175 = scmp.eq.s32.totalorder %s13, 0
    %p176 = por %p174, %p175
    %p177 = scmp.ne.s32.totalorder %s169, %s171
    %p178 = scmp.eq.s32.totalorder %s18, 5
    %p179 = por %p177, %p178
    %p180 = scmp.ne.s32.totalorder %s171, %s172
    %p181 = scmp.eq.s32.totalorder %s18, 0
    %p182 = por %p180, %p181
    %p183 = scmp.ne.s32.totalorder %s171, %s172
    %p184 = scmp.eq.s32.totalorder %s19, 5
    %p185 = por %p183, %p184
    %p187 = scmp.ne.s32.totalorder %s172, %s186
    %p188 = scmp.eq.s32.totalorder %s19, 0
    %p189 = por %p187, %p188
    %s190 = ssub.s32 %s20, %s32
    %s191 = ssub.s32 %s21, %s28
    %s192 = sor.u32 %s190, %s191
    %p193 = scmp.eq.s32.totalorder %s192, 0
    %s195 = sadd.s32 %s194, 1
    %s196 = scalar_select %p193, %s194, %s195
    %p199 = pneg %p193
    %p200 = scmp.eq.s32.totalorder %s13, 5
    %p201 = por %p199, %p200
    %p202 = scmp.ne.s32.totalorder %s194, %s197
    %p203 = scmp.eq.s32.totalorder %s13, 0
    %p204 = por %p202, %p203
    %p205 = scmp.ne.s32.totalorder %s194, %s197
    %p206 = scmp.eq.s32.totalorder %s18, 5
    %p207 = por %p205, %p206
    %p208 = scmp.ne.s32.totalorder %s197, %s198
    %p209 = scmp.eq.s32.totalorder %s18, 0
    %p210 = por %p208, %p209
    %p211 = scmp.ne.s32.totalorder %s197, %s198
    %p212 = scmp.eq.s32.totalorder %s19, 5
    %p213 = por %p211, %p212
    %p215 = scmp.ne.s32.totalorder %s198, %s214
    %p216 = scmp.eq.s32.totalorder %s19, 0
    %p217 = por %p215, %p216
    %p218 = scmp.le.s32.totalorder 1, %s13
    %p219 = scmp.lt.s32.totalorder %s13, 7
    %p220 = pnand %p218, %p219
    %p221 = pneg %p220
    // Predicated region
    $region9: #{depthwise_xcorr_forward.5} parent=5 // pred_check
      _
    $region10: #{depthwise_xcorr_forward.5} parent=5 // pred_check_branch
      %223 = sbr.rel (%p220) target = $region12
    $region11: #{depthwise_xcorr_forward.5} parent=5 // pred_region
      %s224 = ssub.s32 %s13, 1
      // Predicated region
      $region13: #{depthwise_xcorr_forward.5} parent=11 // pred_check
        %p225 = pneg %p98
      $region14: #{depthwise_xcorr_forward.5} parent=11 // pred_check_branch
        %227 = sbr.rel (%p225) target = $region16
      $region15: #{depthwise_xcorr_forward.5} parent=11 // pred_region
        _
      $region16: #{depthwise_xcorr_forward.5} parent=11 // pred_fallthru
        _
      // Predicated region
      $region17: #{depthwise_xcorr_forward.5} parent=11 // pred_check
        %p228 = pneg %p119
      $region18: #{depthwise_xcorr_forward.5} parent=11 // pred_check_branch
        %230 = sbr.rel (%p228) target = $region20
      $region19: #{depthwise_xcorr_forward.5} parent=11 // pred_region
        _
      $region20: #{depthwise_xcorr_forward.5} parent=11 // pred_fallthru
        _
      // Predicated region
      $region21: #{depthwise_xcorr_forward.5} parent=11 // pred_check
        %p231 = pneg %p140
      $region22: #{depthwise_xcorr_forward.5} parent=11 // pred_check_branch
        %233 = sbr.rel (%p231) target = $region24
      $region23: #{depthwise_xcorr_forward.5} parent=11 // pred_region
        _
      $region24: #{depthwise_xcorr_forward.5} parent=11 // pred_fallthru
        _
      // Predicated region
      $region25: #{depthwise_xcorr_forward.5} parent=11 // pred_check
        %p234 = pneg %p161
      $region26: #{depthwise_xcorr_forward.5} parent=11 // pred_check_branch
        %236 = sbr.rel (%p234) target = $region28
      $region27: #{depthwise_xcorr_forward.5} parent=11 // pred_region
        _
      $region28: #{depthwise_xcorr_forward.5} parent=11 // pred_fallthru
        _
      // Predicated region
      $region29: #{depthwise_xcorr_forward.5} parent=11 // pred_check
        %p237 = pneg %p182
      $region30: #{depthwise_xcorr_forward.5} parent=11 // pred_check_branch
        %239 = sbr.rel (%p237) target = $region32
      $region31: #{depthwise_xcorr_forward.5} parent=11 // pred_region
        _
      $region32: #{depthwise_xcorr_forward.5} parent=11 // pred_fallthru
        _
    $region12: #{depthwise_xcorr_forward.5} parent=5 // pred_fallthru
      _
    %p240 = scmp.lt.s32.totalorder %s13, 6
    // Predicated region
    $region33: #{depthwise_xcorr_forward.5} parent=5 // pred_check
      %p241 = pneg %p240
    $region34: #{depthwise_xcorr_forward.5} parent=5 // pred_check_branch
      %243 = sbr.rel (%p241) target = $region36
    $region35: #{depthwise_xcorr_forward.5} parent=5 // pred_region
      // Predicated region
      $region37: #{depthwise_xcorr_forward.5} parent=35 // pred_check
        %p244 = pneg %p45
      $region38: #{depthwise_xcorr_forward.5} parent=35 // pred_check_branch
        %246 = sbr.rel (%p244) target = $region40
      $region39: #{depthwise_xcorr_forward.5} parent=35 // pred_region
        %p247 = scmp.lt.s32.totalorder %s20, 1
        %s248 = scalar_select %p247, %s20, 1
        %s249 = smul.addr %s248, 28
        %s250 = smul.addr %s249, 4
        %s251 = scalar_lea.vmem %s0, %s250
      $region40: #{depthwise_xcorr_forward.5} parent=35 // pred_fallthru
        _
      // Predicated region
      $region41: #{depthwise_xcorr_forward.5} parent=35 // pred_check
        %p252 = pneg %p71
      $region42: #{depthwise_xcorr_forward.5} parent=35 // pred_check_branch
        %254 = sbr.rel (%p252) target = $region44
      $region43: #{depthwise_xcorr_forward.5} parent=35 // pred_region
        %p255 = scmp.lt.s32.totalorder %s20, 1
        %s256 = scalar_select %p255, %s20, 1
        %s257 = smul.addr %s256, 6
        %s258 = smul.addr %s257, 4
        %s259 = scalar_lea.vmem %s1, %s258
      $region44: #{depthwise_xcorr_forward.5} parent=35 // pred_fallthru
        _
    $region36: #{depthwise_xcorr_forward.5} parent=5 // pred_fallthru
      _
    %p260 = scmp.le.s32.totalorder 1, %s13
    %p261 = scmp.lt.s32.totalorder %s13, 7
    %p262 = pnand %p260, %p261
    %p263 = pneg %p262
    // Predicated region
    $region45: #{depthwise_xcorr_forward.5} parent=5 // pred_check
      _
    $region46: #{depthwise_xcorr_forward.5} parent=5 // pred_check_branch
      %265 = sbr.rel (%p262) target = $region48
    $region47: #{depthwise_xcorr_forward.5} parent=5 // pred_region
      %s266 = ssub.s32 %s13, 1
      %p267 = scmp.lt.s32.totalorder %s22, 1
      %s268 = scalar_select %p267, %s22, 1
      %s269 = smul.addr %s268, 28
      %s270 = smul.addr %s269, 4
      %s271 = scalar_lea.vmem %s0, %s270
      %p272 = pneg %p51
      %p273 = pneg %p48
      %p274 = scmp.lt.s32.totalorder %s22, 1
      %s275 = scalar_select %p274, %s22, 1
      %s276 = smul.addr %s275, 6
      %s277 = smul.addr %s276, 4
      %s278 = scalar_lea.vmem %s1, %s277
      %p279 = pneg %p77
      %p280 = pneg %p74
      %p281 = pneg %p98
      %p282 = pneg %p95
      %p283 = pneg %p119
      %p284 = pneg %p116
      %p285 = pneg %p140
      %p286 = pneg %p137
      %p287 = pneg %p161
      %p288 = pneg %p158
      %p289 = pneg %p182
      %p290 = pneg %p179
      %p291 = pneg %p210
      %p292 = pneg %p207
      %s293 = smul.u32 6, %s23
      %p294 = scmp.lt.s32.totalorder %s22, 1
      %s295 = scalar_select %p294, %s22, 1
      %p296 = scmp.lt.s32.totalorder %s293, 17
      %s297 = scalar_select %p296, %s293, 17
      %s298 = smul.addr %s295, 18
      %s299 = sadd.s32 %s297, %s298
      %s300 = smul.addr %s299, 8
      %s301 = scalar_lea.vmem %s7, %s300
      %p302 = scmp.lt.s32.totalorder %s22, 1
      %s303 = scalar_select %p302, %s22, 1
      %s304 = smul.addr %s303, 28
      %s305 = smul.addr %s304, 4
      %s306 = scalar_lea.vmem %s0, %s305
      %p307 = scmp.lt.s32.totalorder %s22, 1
      %s308 = scalar_select %p307, %s22, 1
      %s309 = smul.addr %s308, 6
      %s310 = smul.addr %s309, 4
      %s311 = scalar_lea.vmem %s1, %s310
      %s312 = smul.u32 6, %s23
      %p313 = scmp.lt.s32.totalorder %s22, 1
      %s314 = scalar_select %p313, %s22, 1
      %p315 = scmp.lt.s32.totalorder %s312, 17
      %s316 = scalar_select %p315, %s312, 17
      %s317 = smul.addr %s314, 18
      %s318 = sadd.s32 %s316, %s317
      %s319 = smul.addr %s318, 8
      %s320 = scalar_lea.vmem %s7, %s319
      %s321 = smul.u32 6, %s23
      %s322 = smul.u32 %s23, 48
      %s323 = sshra.s32 %s322, 3
      %s324 = sand.u32 %s322, 7
      %s325 = smul.addr %s323, 4
      %s326 = scalar_lea.vmem %s306, %s325
      %v327 = vld [vmem:[%s326] sm:$0xf]
      %v328 = vld [vmem:[%s326 + $0x4] sm:$0xf]
      %v329 = vld [vmem:[%s326 + $0x8] sm:$0xf]
      %v330 = vld [vmem:[%s326 + $0xc] sm:$0xf]
      %v331 = vld [vmem:[%s326 + $0x10] sm:$0xf]
      %v332 = vld [vmem:[%s326 + $0x14] sm:$0xf]
      %v333 = vunpack.c.l.bf16 %v327
      %v334 = vunpack.c.l.bf16 %v328
      %v335 = vunpack.c.l.bf16 %v329
      %v336 = vunpack.c.l.bf16 %v330
      %v337 = vunpack.c.l.bf16 %v331
      %v338 = vunpack.c.l.bf16 %v332
      %v339 = vld [vmem:[%s311] sm:$0x1]
      %v340 = vunpack.c.l.bf16 %v339
      %v341 = vperm.slane %v340, 0
      %v342 = vmul.f32 %v333, %v341
      %v343 = vmul.f32 %v334, %v341
      %v344 = vmul.f32 %v335, %v341
      %v345 = vmul.f32 %v336, %v341
      %v346 = vmul.f32 %v337, %v341
      %v347 = vmul.f32 %v338, %v341
      %v348 = vadd.f32 %v342, 0.0
      %v349 = vadd.f32 %v343, 0.0
      %v350 = vadd.f32 %v344, 0.0
      %v351 = vadd.f32 %v345, 0.0
      %v352 = vadd.f32 %v346, 0.0
      %v353 = vadd.f32 %v347, 0.0
      %v354 = vrot.slane %v333, 1
      %v355 = vrot.slane %v334, 1
      %v356 = vrot.slane %v335, 1
      %v357 = vrot.slane %v336, 1
      %v358 = vrot.slane %v337, 1
      %v359 = vrot.slane %v338, 1
      %v360 = vlaneseq
      %v361 = vshrl.u32 %v360, 7
      %vm362 = vcmp.lt.s32.totalorder %v361, 7
      %v363 = vsel %vm362, %v358, %v359
      %v364 = vsel %vm362, %v357, %v358
      %v365 = vsel %vm362, %v356, %v357
      %v366 = vsel %vm362, %v355, %v356
      %v367 = vsel %vm362, %v354, %v355
      %v368 = vsel %vm362, %v359, %v354
      %v369 = vperm.slane %v340, 1
      %v370 = vmul.f32 %v367, %v369
      %v371 = vmul.f32 %v366, %v369
      %v372 = vmul.f32 %v365, %v369
      %v373 = vmul.f32 %v364, %v369
      %v374 = vmul.f32 %v363, %v369
      %v375 = vmul.f32 %v368, %v369
      %v376 = vadd.f32 %v348, %v370
      %v377 = vadd.f32 %v349, %v371
      %v378 = vadd.f32 %v350, %v372
      %v379 = vadd.f32 %v351, %v373
      %v380 = vadd.f32 %v352, %v374
      %v381 = vadd.f32 %v353, %v375
      %v382 = vrot.slane %v333, 2
      %v383 = vrot.slane %v334, 2
      %v384 = vrot.slane %v335, 2
      %v385 = vrot.slane %v336, 2
      %v386 = vrot.slane %v337, 2
      %v387 = vrot.slane %v338, 2
      %vm388 = vcmp.lt.s32.totalorder %v361, 6
      %v389 = vsel %vm388, %v386, %v387
      %v390 = vsel %vm388, %v385, %v386
      %v391 = vsel %vm388, %v384, %v385
      %v392 = vsel %vm388, %v383, %v384
      %v393 = vsel %vm388, %v382, %v383
      %v394 = vsel %vm388, %v387, %v382
      %v395 = vld [vmem:[%s311] sm:$0x2]
      %v396 = vunpack.c.l.bf16 %v395
      %v397 = vperm.slane %v396, 2
      %v398 = vmul.f32 %v393, %v397
      %v399 = vmul.f32 %v392, %v397
      %v400 = vmul.f32 %v391, %v397
      %v401 = vmul.f32 %v390, %v397
      %v402 = vmul.f32 %v389, %v397
      %v403 = vmul.f32 %v394, %v397
      %v404 = vadd.f32 %v376, %v398
      %v405 = vadd.f32 %v377, %v399
      %v406 = vadd.f32 %v378, %v400
      %v407 = vadd.f32 %v379, %v401
      %v408 = vadd.f32 %v380, %v402
      %v409 = vadd.f32 %v381, %v403
      %v410 = vrot.slane %v333, 3
      %v411 = vrot.slane %v334, 3
      %v412 = vrot.slane %v335, 3
      %v413 = vrot.slane %v336, 3
      %v414 = vrot.slane %v337, 3
      %v415 = vrot.slane %v338, 3
      %vm416 = vcmp.lt.s32.totalorder %v361, 5
      %v417 = vsel %vm416, %v414, %v415
      %v418 = vsel %vm416, %v413, %v414
      %v419 = vsel %vm416, %v412, %v413
      %v420 = vsel %vm416, %v411, %v412
      %v421 = vsel %vm416, %v410, %v411
      %v422 = vsel %vm416, %v415, %v410
      %v423 = vperm.slane %v396, 3
      %v424 = vmul.f32 %v421, %v423
      %v425 = vmul.f32 %v420, %v423
      %v426 = vmul.f32 %v419, %v423
      %v427 = vmul.f32 %v418, %v423
      %v428 = vmul.f32 %v417, %v423
      %v429 = vmul.f32 %v422, %v423
      %v430 = vadd.f32 %v404, %v424
      %v431 = vadd.f32 %v405, %v425
      %v432 = vadd.f32 %v406, %v426
      %v433 = vadd.f32 %v407, %v427
      %v434 = vadd.f32 %v408, %v428
      %v435 = vadd.f32 %v409, %v429
      %v436 = vrot.slane %v333, 4
      %v437 = vrot.slane %v334, 4
      %v438 = vrot.slane %v335, 4
      %v439 = vrot.slane %v336, 4
      %v440 = vrot.slane %v337, 4
      %v441 = vrot.slane %v338, 4
      %vm442 = vcmp.lt.s32.totalorder %v361, 4
      %v443 = vsel %vm442, %v440, %v441
      %v444 = vsel %vm442, %v439, %v440
      %v445 = vsel %vm442, %v438, %v439
      %v446 = vsel %vm442, %v437, %v438
      %v447 = vsel %vm442, %v436, %v437
      %v448 = vsel %vm442, %v441, %v436
      %v449 = vld [vmem:[%s311] sm:$0x4]
      %v450 = vunpack.c.l.bf16 %v449
      %v451 = vperm.slane %v450, 4
      %v452 = vmul.f32 %v447, %v451
      %v453 = vmul.f32 %v446, %v451
      %v454 = vmul.f32 %v445, %v451
      %v455 = vmul.f32 %v444, %v451
      %v456 = vmul.f32 %v443, %v451
      %v457 = vmul.f32 %v448, %v451
      %v458 = vadd.f32 %v430, %v452
      %v459 = vadd.f32 %v431, %v453
      %v460 = vadd.f32 %v432, %v454
      %v461 = vadd.f32 %v433, %v455
      %v462 = vadd.f32 %v434, %v456
      %v463 = vadd.f32 %v435, %v457
      %v464 = vrot.slane %v333, 5
      %v465 = vrot.slane %v334, 5
      %v466 = vrot.slane %v335, 5
      %v467 = vrot.slane %v336, 5
      %v468 = vrot.slane %v337, 5
      %v469 = vrot.slane %v338, 5
      %vm470 = vcmp.lt.s32.totalorder %v361, 3
      %v471 = vsel %vm470, %v468, %v469
      %v472 = vsel %vm470, %v467, %v468
      %v473 = vsel %vm470, %v466, %v467
      %v474 = vsel %vm470, %v465, %v466
      %v475 = vsel %vm470, %v464, %v465
      %v476 = vsel %vm470, %v469, %v464
      %v477 = vperm.slane %v450, 5
      %v478 = vmul.f32 %v475, %v477
      %v479 = vmul.f32 %v474, %v477
      %v480 = vmul.f32 %v473, %v477
      %v481 = vmul.f32 %v472, %v477
      %v482 = vmul.f32 %v471, %v477
      %v483 = vmul.f32 %v476, %v477
      %v484 = vadd.f32 %v458, %v478
      %v485 = vadd.f32 %v459, %v479
      %v486 = vadd.f32 %v460, %v480
      %v487 = vadd.f32 %v461, %v481
      %v488 = vadd.f32 %v462, %v482
      %v489 = vadd.f32 %v463, %v483
      %s490 = sadd.s32 %s322, 16
      %s491 = sshra.s32 %s490, 3
      %s492 = sand.u32 %s490, 7
      %s493 = smul.addr %s491, 4
      %s494 = scalar_lea.vmem %s306, %s493
      %v495 = vld [vmem:[%s494] sm:$0xf]
      %v496 = vld [vmem:[%s494 + $0x4] sm:$0xf]
      %v497 = vld [vmem:[%s494 + $0x8] sm:$0xf]
      %v498 = vld [vmem:[%s494 + $0xc] sm:$0xf]
      %v499 = vld [vmem:[%s494 + $0x10] sm:$0xf]
      %v500 = vld [vmem:[%s494 + $0x14] sm:$0xf]
      %v501 = vunpack.c.l.bf16 %v495
      %v502 = vunpack.c.l.bf16 %v496
      %v503 = vunpack.c.l.bf16 %v497
      %v504 = vunpack.c.l.bf16 %v498
      %v505 = vunpack.c.l.bf16 %v499
      %v506 = vunpack.c.l.bf16 %v500
      %v507 = vld [vmem:[%s311 + $0x4] sm:$0x1]
      %v508 = vunpack.c.l.bf16 %v507
      %v509 = vperm.slane %v508, 0
      %v510 = vmul.f32 %v501, %v509
      %v511 = vmul.f32 %v502, %v509
      %v512 = vmul.f32 %v503, %v509
      %v513 = vmul.f32 %v504, %v509
      %v514 = vmul.f32 %v505, %v509
      %v515 = vmul.f32 %v506, %v509
      %v516 = vadd.f32 %v484, %v510
      %v517 = vadd.f32 %v485, %v511
      %v518 = vadd.f32 %v486, %v512
      %v519 = vadd.f32 %v487, %v513
      %v520 = vadd.f32 %v488, %v514
      %v521 = vadd.f32 %v489, %v515
      %v522 = vrot.slane %v501, 1
      %v523 = vrot.slane %v502, 1
      %v524 = vrot.slane %v503, 1
      %v525 = vrot.slane %v504, 1
      %v526 = vrot.slane %v505, 1
      %v527 = vrot.slane %v506, 1
      %v528 = vsel %vm362, %v526, %v527
      %v529 = vsel %vm362, %v525, %v526
      %v530 = vsel %vm362, %v524, %v525
      %v531 = vsel %vm362, %v523, %v524
      %v532 = vsel %vm362, %v522, %v523
      %v533 = vsel %vm362, %v527, %v522
      %v534 = vperm.slane %v508, 1
      %v535 = vmul.f32 %v532, %v534
      %v536 = vmul.f32 %v531, %v534
      %v537 = vmul.f32 %v530, %v534
      %v538 = vmul.f32 %v529, %v534
      %v539 = vmul.f32 %v528, %v534
      %v540 = vmul.f32 %v533, %v534
      %v541 = vadd.f32 %v516, %v535
      %v542 = vadd.f32 %v517, %v536
      %v543 = vadd.f32 %v518, %v537
      %v544 = vadd.f32 %v519, %v538
      %v545 = vadd.f32 %v520, %v539
      %v546 = vadd.f32 %v521, %v540
      %v547 = vrot.slane %v501, 2
      %v548 = vrot.slane %v502, 2
      %v549 = vrot.slane %v503, 2
      %v550 = vrot.slane %v504, 2
      %v551 = vrot.slane %v505, 2
      %v552 = vrot.slane %v506, 2
      %v553 = vsel %vm388, %v551, %v552
      %v554 = vsel %vm388, %v550, %v551
      %v555 = vsel %vm388, %v549, %v550
      %v556 = vsel %vm388, %v548, %v549
      %v557 = vsel %vm388, %v547, %v548
      %v558 = vsel %vm388, %v552, %v547
      %v559 = vld [vmem:[%s311 + $0x4] sm:$0x2]
      %v560 = vunpack.c.l.bf16 %v559
      %v561 = vperm.slane %v560, 2
      %v562 = vmul.f32 %v557, %v561
      %v563 = vmul.f32 %v556, %v561
      %v564 = vmul.f32 %v555, %v561
      %v565 = vmul.f32 %v554, %v561
      %v566 = vmul.f32 %v553, %v561
      %v567 = vmul.f32 %v558, %v561
      %v568 = vadd.f32 %v541, %v562
      %v569 = vadd.f32 %v542, %v563
      %v570 = vadd.f32 %v543, %v564
      %v571 = vadd.f32 %v544, %v565
      %v572 = vadd.f32 %v545, %v566
      %v573 = vadd.f32 %v546, %v567
      %v574 = vrot.slane %v501, 3
      %v575 = vrot.slane %v502, 3
      %v576 = vrot.slane %v503, 3
      %v577 = vrot.slane %v504, 3
      %v578 = vrot.slane %v505, 3
      %v579 = vrot.slane %v506, 3
      %v580 = vsel %vm416, %v578, %v579
      %v581 = vsel %vm416, %v577, %v578
      %v582 = vsel %vm416, %v576, %v577
      %v583 = vsel %vm416, %v575, %v576
      %v584 = vsel %vm416, %v574, %v575
      %v585 = vsel %vm416, %v579, %v574
      %v586 = vperm.slane %v560, 3
      %v587 = vmul.f32 %v584, %v586
      %v588 = vmul.f32 %v583, %v586
      %v589 = vmul.f32 %v582, %v586
      %v590 = vmul.f32 %v581, %v586
      %v591 = vmul.f32 %v580, %v586
      %v592 = vmul.f32 %v585, %v586
      %v593 = vadd.f32 %v568, %v587
      %v594 = vadd.f32 %v569, %v588
      %v595 = vadd.f32 %v570, %v589
      %v596 = vadd.f32 %v571, %v590
      %v597 = vadd.f32 %v572, %v591
      %v598 = vadd.f32 %v573, %v592
      %v599 = vrot.slane %v501, 4
      %v600 = vrot.slane %v502, 4
      %v601 = vrot.slane %v503, 4
      %v602 = vrot.slane %v504, 4
      %v603 = vrot.slane %v505, 4
      %v604 = vrot.slane %v506, 4
      %v605 = vsel %vm442, %v603, %v604
      %v606 = vsel %vm442, %v602, %v603
      %v607 = vsel %vm442, %v601, %v602
      %v608 = vsel %vm442, %v600, %v601
      %v609 = vsel %vm442, %v599, %v600
      %v610 = vsel %vm442, %v604, %v599
      %v611 = vld [vmem:[%s311 + $0x4] sm:$0x4]
      %v612 = vunpack.c.l.bf16 %v611
      %v613 = vperm.slane %v612, 4
      %v614 = vmul.f32 %v609, %v613
      %v615 = vmul.f32 %v608, %v613
      %v616 = vmul.f32 %v607, %v613
      %v617 = vmul.f32 %v606, %v613
      %v618 = vmul.f32 %v605, %v613
      %v619 = vmul.f32 %v610, %v613
      %v620 = vadd.f32 %v593, %v614
      %v621 = vadd.f32 %v594, %v615
      %v622 = vadd.f32 %v595, %v616
      %v623 = vadd.f32 %v596, %v617
      %v624 = vadd.f32 %v597, %v618
      %v625 = vadd.f32 %v598, %v619
      %v626 = vrot.slane %v501, 5
      %v627 = vrot.slane %v502, 5
      %v628 = vrot.slane %v503, 5
      %v629 = vrot.slane %v504, 5
      %v630 = vrot.slane %v505, 5
      %v631 = vrot.slane %v506, 5
      %v632 = vsel %vm470, %v630, %v631
      %v633 = vsel %vm470, %v629, %v630
      %v634 = vsel %vm470, %v628, %v629
      %v635 = vsel %vm470, %v627, %v628
      %v636 = vsel %vm470, %v626, %v627
      %v637 = vsel %vm470, %v631, %v626
      %v638 = vperm.slane %v612, 5
      %v639 = vmul.f32 %v636, %v638
      %v640 = vmul.f32 %v635, %v638
      %v641 = vmul.f32 %v634, %v638
      %v642 = vmul.f32 %v633, %v638
      %v643 = vmul.f32 %v632, %v638
      %v644 = vmul.f32 %v637, %v638
      %v645 = vadd.f32 %v620, %v639
      %v646 = vadd.f32 %v621, %v640
      %v647 = vadd.f32 %v622, %v641
      %v648 = vadd.f32 %v623, %v642
      %v649 = vadd.f32 %v624, %v643
      %v650 = vadd.f32 %v625, %v644
      %s651 = sadd.s32 %s322, 32
      %s652 = sshra.s32 %s651, 3
      %s653 = sand.u32 %s651, 7
      %s654 = smul.addr %s652, 4
      %s655 = scalar_lea.vmem %s306, %s654
      %v656 = vld [vmem:[%s655] sm:$0xf]
      %v657 = vld [vmem:[%s655 + $0x4] sm:$0xf]
      %v658 = vld [vmem:[%s655 + $0x8] sm:$0xf]
      %v659 = vld [vmem:[%s655 + $0xc] sm:$0xf]
      %v660 = vld [vmem:[%s655 + $0x10] sm:$0xf]
      %v661 = vld [vmem:[%s655 + $0x14] sm:$0xf]
      %v662 = vunpack.c.l.bf16 %v656
      %v663 = vunpack.c.l.bf16 %v657
      %v664 = vunpack.c.l.bf16 %v658
      %v665 = vunpack.c.l.bf16 %v659
      %v666 = vunpack.c.l.bf16 %v660
      %v667 = vunpack.c.l.bf16 %v661
      %v668 = vld [vmem:[%s311 + $0x8] sm:$0x1]
      %v669 = vunpack.c.l.bf16 %v668
      %v670 = vperm.slane %v669, 0
      %v671 = vmul.f32 %v662, %v670
      %v672 = vmul.f32 %v663, %v670
      %v673 = vmul.f32 %v664, %v670
      %v674 = vmul.f32 %v665, %v670
      %v675 = vmul.f32 %v666, %v670
      %v676 = vmul.f32 %v667, %v670
      %v677 = vadd.f32 %v645, %v671
      %v678 = vadd.f32 %v646, %v672
      %v679 = vadd.f32 %v647, %v673
      %v680 = vadd.f32 %v648, %v674
      %v681 = vadd.f32 %v649, %v675
      %v682 = vadd.f32 %v650, %v676
      %v683 = vrot.slane %v662, 1
      %v684 = vrot.slane %v663, 1
      %v685 = vrot.slane %v664, 1
      %v686 = vrot.slane %v665, 1
      %v687 = vrot.slane %v666, 1
      %v688 = vrot.slane %v667, 1
      %v689 = vsel %vm362, %v687, %v688
      %v690 = vsel %vm362, %v686, %v687
      %v691 = vsel %vm362, %v685, %v686
      %v692 = vsel %vm362, %v684, %v685
      %v693 = vsel %vm362, %v683, %v684
      %v694 = vsel %vm362, %v688, %v683
      %v695 = vperm.slane %v669, 1
      %v696 = vmul.f32 %v693, %v695
      %v697 = vmul.f32 %v692, %v695
      %v698 = vmul.f32 %v691, %v695
      %v699 = vmul.f32 %v690, %v695
      %v700 = vmul.f32 %v689, %v695
      %v701 = vmul.f32 %v694, %v695
      %v702 = vadd.f32 %v677, %v696
      %v703 = vadd.f32 %v678, %v697
      %v704 = vadd.f32 %v679, %v698
      %v705 = vadd.f32 %v680, %v699
      %v706 = vadd.f32 %v681, %v700
      %v707 = vadd.f32 %v682, %v701
      %v708 = vrot.slane %v662, 2
      %v709 = vrot.slane %v663, 2
      %v710 = vrot.slane %v664, 2
      %v711 = vrot.slane %v665, 2
      %v712 = vrot.slane %v666, 2
      %v713 = vrot.slane %v667, 2
      %v714 = vsel %vm388, %v712, %v713
      %v715 = vsel %vm388, %v711, %v712
      %v716 = vsel %vm388, %v710, %v711
      %v717 = vsel %vm388, %v709, %v710
      %v718 = vsel %vm388, %v708, %v709
      %v719 = vsel %vm388, %v713, %v708
      %v720 = vld [vmem:[%s311 + $0x8] sm:$0x2]
      %v721 = vunpack.c.l.bf16 %v720
      %v722 = vperm.slane %v721, 2
      %v723 = vmul.f32 %v718, %v722
      %v724 = vmul.f32 %v717, %v722
      %v725 = vmul.f32 %v716, %v722
      %v726 = vmul.f32 %v715, %v722
      %v727 = vmul.f32 %v714, %v722
      %v728 = vmul.f32 %v719, %v722
      %v729 = vadd.f32 %v702, %v723
      %v730 = vadd.f32 %v703, %v724
      %v731 = vadd.f32 %v704, %v725
      %v732 = vadd.f32 %v705, %v726
      %v733 = vadd.f32 %v706, %v727
      %v734 = vadd.f32 %v707, %v728
      %v735 = vrot.slane %v662, 3
      %v736 = vrot.slane %v663, 3
      %v737 = vrot.slane %v664, 3
      %v738 = vrot.slane %v665, 3
      %v739 = vrot.slane %v666, 3
      %v740 = vrot.slane %v667, 3
      %v741 = vsel %vm416, %v739, %v740
      %v742 = vsel %vm416, %v738, %v739
      %v743 = vsel %vm416, %v737, %v738
      %v744 = vsel %vm416, %v736, %v737
      %v745 = vsel %vm416, %v735, %v736
      %v746 = vsel %vm416, %v740, %v735
      %v747 = vperm.slane %v721, 3
      %v748 = vmul.f32 %v745, %v747
      %v749 = vmul.f32 %v744, %v747
      %v750 = vmul.f32 %v743, %v747
      %v751 = vmul.f32 %v742, %v747
      %v752 = vmul.f32 %v741, %v747
      %v753 = vmul.f32 %v746, %v747
      %v754 = vadd.f32 %v729, %v748
      %v755 = vadd.f32 %v730, %v749
      %v756 = vadd.f32 %v731, %v750
      %v757 = vadd.f32 %v732, %v751
      %v758 = vadd.f32 %v733, %v752
      %v759 = vadd.f32 %v734, %v753
      %v760 = vrot.slane %v662, 4
      %v761 = vrot.slane %v663, 4
      %v762 = vrot.slane %v664, 4
      %v763 = vrot.slane %v665, 4
      %v764 = vrot.slane %v666, 4
      %v765 = vrot.slane %v667, 4
      %v766 = vsel %vm442, %v764, %v765
      %v767 = vsel %vm442, %v763, %v764
      %v768 = vsel %vm442, %v762, %v763
      %v769 = vsel %vm442, %v761, %v762
      %v770 = vsel %vm442, %v760, %v761
      %v771 = vsel %vm442, %v765, %v760
      %v772 = vld [vmem:[%s311 + $0x8] sm:$0x4]
      %v773 = vunpack.c.l.bf16 %v772
      %v774 = vperm.slane %v773, 4
      %v775 = vmul.f32 %v770, %v774
      %v776 = vmul.f32 %v769, %v774
      %v777 = vmul.f32 %v768, %v774
      %v778 = vmul.f32 %v767, %v774
      %v779 = vmul.f32 %v766, %v774
      %v780 = vmul.f32 %v771, %v774
      %v781 = vadd.f32 %v754, %v775
      %v782 = vadd.f32 %v755, %v776
      %v783 = vadd.f32 %v756, %v777
      %v784 = vadd.f32 %v757, %v778
      %v785 = vadd.f32 %v758, %v779
      %v786 = vadd.f32 %v759, %v780
      %v787 = vrot.slane %v662, 5
      %v788 = vrot.slane %v663, 5
      %v789 = vrot.slane %v664, 5
      %v790 = vrot.slane %v665, 5
      %v791 = vrot.slane %v666, 5
      %v792 = vrot.slane %v667, 5
      %v793 = vsel %vm470, %v791, %v792
      %v794 = vsel %vm470, %v790, %v791
      %v795 = vsel %vm470, %v789, %v790
      %v796 = vsel %vm470, %v788, %v789
      %v797 = vsel %vm470, %v787, %v788
      %v798 = vsel %vm470, %v792, %v787
      %v799 = vperm.slane %v773, 5
      %v800 = vmul.f32 %v797, %v799
      %v801 = vmul.f32 %v796, %v799
      %v802 = vmul.f32 %v795, %v799
      %v803 = vmul.f32 %v794, %v799
      %v804 = vmul.f32 %v793, %v799
      %v805 = vmul.f32 %v798, %v799
      %v806 = vadd.f32 %v781, %v800
      %v807 = vadd.f32 %v782, %v801
      %v808 = vadd.f32 %v783, %v802
      %v809 = vadd.f32 %v784, %v803
      %v810 = vadd.f32 %v785, %v804
      %v811 = vadd.f32 %v786, %v805
      %s812 = sadd.s32 %s322, 48
      %s813 = sshra.s32 %s812, 3
      %s814 = sand.u32 %s812, 7
      %s815 = smul.addr %s813, 4
      %s816 = scalar_lea.vmem %s306, %s815
      %v817 = vld [vmem:[%s816] sm:$0xf]
      %v818 = vld [vmem:[%s816 + $0x4] sm:$0xf]
      %v819 = vld [vmem:[%s816 + $0x8] sm:$0xf]
      %v820 = vld [vmem:[%s816 + $0xc] sm:$0xf]
      %v821 = vld [vmem:[%s816 + $0x10] sm:$0xf]
      %v822 = vld [vmem:[%s816 + $0x14] sm:$0xf]
      %v823 = vunpack.c.l.bf16 %v817
      %v824 = vunpack.c.l.bf16 %v818
      %v825 = vunpack.c.l.bf16 %v819
      %v826 = vunpack.c.l.bf16 %v820
      %v827 = vunpack.c.l.bf16 %v821
      %v828 = vunpack.c.l.bf16 %v822
      %v829 = vld [vmem:[%s311 + $0xc] sm:$0x1]
      %v830 = vunpack.c.l.bf16 %v829
      %v831 = vperm.slane %v830, 0
      %v832 = vmul.f32 %v823, %v831
      %v833 = vmul.f32 %v824, %v831
      %v834 = vmul.f32 %v825, %v831
      %v835 = vmul.f32 %v826, %v831
      %v836 = vmul.f32 %v827, %v831
      %v837 = vmul.f32 %v828, %v831
      %v838 = vadd.f32 %v806, %v832
      %v839 = vadd.f32 %v807, %v833
      %v840 = vadd.f32 %v808, %v834
      %v841 = vadd.f32 %v809, %v835
      %v842 = vadd.f32 %v810, %v836
      %v843 = vadd.f32 %v811, %v837
      %v844 = vrot.slane %v823, 1
      %v845 = vrot.slane %v824, 1
      %v846 = vrot.slane %v825, 1
      %v847 = vrot.slane %v826, 1
      %v848 = vrot.slane %v827, 1
      %v849 = vrot.slane %v828, 1
      %v850 = vsel %vm362, %v848, %v849
      %v851 = vsel %vm362, %v847, %v848
      %v852 = vsel %vm362, %v846, %v847
      %v853 = vsel %vm362, %v845, %v846
      %v854 = vsel %vm362, %v844, %v845
      %v855 = vsel %vm362, %v849, %v844
      %v856 = vperm.slane %v830, 1
      %v857 = vmul.f32 %v854, %v856
      %v858 = vmul.f32 %v853, %v856
      %v859 = vmul.f32 %v852, %v856
      %v860 = vmul.f32 %v851, %v856
      %v861 = vmul.f32 %v850, %v856
      %v862 = vmul.f32 %v855, %v856
      %v863 = vadd.f32 %v838, %v857
      %v864 = vadd.f32 %v839, %v858
      %v865 = vadd.f32 %v840, %v859
      %v866 = vadd.f32 %v841, %v860
      %v867 = vadd.f32 %v842, %v861
      %v868 = vadd.f32 %v843, %v862
      %v869 = vrot.slane %v823, 2
      %v870 = vrot.slane %v824, 2
      %v871 = vrot.slane %v825, 2
      %v872 = vrot.slane %v826, 2
      %v873 = vrot.slane %v827, 2
      %v874 = vrot.slane %v828, 2
      %v875 = vsel %vm388, %v873, %v874
      %v876 = vsel %vm388, %v872, %v873
      %v877 = vsel %vm388, %v871, %v872
      %v878 = vsel %vm388, %v870, %v871
      %v879 = vsel %vm388, %v869, %v870
      %v880 = vsel %vm388, %v874, %v869
      %v881 = vld [vmem:[%s311 + $0xc] sm:$0x2]
      %v882 = vunpack.c.l.bf16 %v881
      %v883 = vperm.slane %v882, 2
      %v884 = vmul.f32 %v879, %v883
      %v885 = vmul.f32 %v878, %v883
      %v886 = vmul.f32 %v877, %v883
      %v887 = vmul.f32 %v876, %v883
      %v888 = vmul.f32 %v875, %v883
      %v889 = vmul.f32 %v880, %v883
      %v890 = vadd.f32 %v863, %v884
      %v891 = vadd.f32 %v864, %v885
      %v892 = vadd.f32 %v865, %v886
      %v893 = vadd.f32 %v866, %v887
      %v894 = vadd.f32 %v867, %v888
      %v895 = vadd.f32 %v868, %v889
      %v896 = vrot.slane %v823, 3
      %v897 = vrot.slane %v824, 3
      %v898 = vrot.slane %v825, 3
      %v899 = vrot.slane %v826, 3
      %v900 = vrot.slane %v827, 3
      %v901 = vrot.slane %v828, 3
      %v902 = vsel %vm416, %v900, %v901
      %v903 = vsel %vm416, %v899, %v900
      %v904 = vsel %vm416, %v898, %v899
      %v905 = vsel %vm416, %v897, %v898
      %v906 = vsel %vm416, %v896, %v897
      %v907 = vsel %vm416, %v901, %v896
      %v908 = vperm.slane %v882, 3
      %v909 = vmul.f32 %v906, %v908
      %v910 = vmul.f32 %v905, %v908
      %v911 = vmul.f32 %v904, %v908
      %v912 = vmul.f32 %v903, %v908
      %v913 = vmul.f32 %v902, %v908
      %v914 = vmul.f32 %v907, %v908
      %v915 = vadd.f32 %v890, %v909
      %v916 = vadd.f32 %v891, %v910
      %v917 = vadd.f32 %v892, %v911
      %v918 = vadd.f32 %v893, %v912
      %v919 = vadd.f32 %v894, %v913
      %v920 = vadd.f32 %v895, %v914
      %v921 = vrot.slane %v823, 4
      %v922 = vrot.slane %v824, 4
      %v923 = vrot.slane %v825, 4
      %v924 = vrot.slane %v826, 4
      %v925 = vrot.slane %v827, 4
      %v926 = vrot.slane %v828, 4
      %v927 = vsel %vm442, %v925, %v926
      %v928 = vsel %vm442, %v924, %v925
      %v929 = vsel %vm442, %v923, %v924
      %v930 = vsel %vm442, %v922, %v923
      %v931 = vsel %vm442, %v921, %v922
      %v932 = vsel %vm442, %v926, %v921
      %v933 = vld [vmem:[%s311 + $0xc] sm:$0x4]
      %v934 = vunpack.c.l.bf16 %v933
      %v935 = vperm.slane %v934, 4
      %v936 = vmul.f32 %v931, %v935
      %v937 = vmul.f32 %v930, %v935
      %v938 = vmul.f32 %v929, %v935
      %v939 = vmul.f32 %v928, %v935
      %v940 = vmul.f32 %v927, %v935
      %v941 = vmul.f32 %v932, %v935
      %v942 = vadd.f32 %v915, %v936
      %v943 = vadd.f32 %v916, %v937
      %v944 = vadd.f32 %v917, %v938
      %v945 = vadd.f32 %v918, %v939
      %v946 = vadd.f32 %v919, %v940
      %v947 = vadd.f32 %v920, %v941
      %v948 = vrot.slane %v823, 5
      %v949 = vrot.slane %v824, 5
      %v950 = vrot.slane %v825, 5
      %v951 = vrot.slane %v826, 5
      %v952 = vrot.slane %v827, 5
      %v953 = vrot.slane %v828, 5
      %v954 = vsel %vm470, %v952, %v953
      %v955 = vsel %vm470, %v951, %v952
      %v956 = vsel %vm470, %v950, %v951
      %v957 = vsel %vm470, %v949, %v950
      %v958 = vsel %vm470, %v948, %v949
      %v959 = vsel %vm470, %v953, %v948
      %v960 = vperm.slane %v934, 5
      %v961 = vmul.f32 %v958, %v960
      %v962 = vmul.f32 %v957, %v960
      %v963 = vmul.f32 %v956, %v960
      %v964 = vmul.f32 %v955, %v960
      %v965 = vmul.f32 %v954, %v960
      %v966 = vmul.f32 %v959, %v960
      %v967 = vadd.f32 %v942, %v961
      %v968 = vadd.f32 %v943, %v962
      %v969 = vadd.f32 %v944, %v963
      %v970 = vadd.f32 %v945, %v964
      %v971 = vadd.f32 %v946, %v965
      %v972 = vadd.f32 %v947, %v966
      %s973 = sadd.s32 %s322, 64
      %s974 = sshra.s32 %s973, 3
      %s975 = sand.u32 %s973, 7
      %s976 = smul.addr %s974, 4
      %s977 = scalar_lea.vmem %s306, %s976
      %v978 = vld [vmem:[%s977] sm:$0xf]
      %v979 = vld [vmem:[%s977 + $0x4] sm:$0xf]
      %v980 = vld [vmem:[%s977 + $0x8] sm:$0xf]
      %v981 = vld [vmem:[%s977 + $0xc] sm:$0xf]
      %v982 = vld [vmem:[%s977 + $0x10] sm:$0xf]
      %v983 = vld [vmem:[%s977 + $0x14] sm:$0xf]
      %v984 = vunpack.c.l.bf16 %v978
      %v985 = vunpack.c.l.bf16 %v979
      %v986 = vunpack.c.l.bf16 %v980
      %v987 = vunpack.c.l.bf16 %v981
      %v988 = vunpack.c.l.bf16 %v982
      %v989 = vunpack.c.l.bf16 %v983
      %v990 = vld [vmem:[%s311 + $0x10] sm:$0x1]
      %v991 = vunpack.c.l.bf16 %v990
      %v992 = vperm.slane %v991, 0
      %v993 = vmul.f32 %v984, %v992
      %v994 = vmul.f32 %v985, %v992
      %v995 = vmul.f32 %v986, %v992
      %v996 = vmul.f32 %v987, %v992
      %v997 = vmul.f32 %v988, %v992
      %v998 = vmul.f32 %v989, %v992
      %v999 = vadd.f32 %v967, %v993
      %v1000 = vadd.f32 %v968, %v994
      %v1001 = vadd.f32 %v969, %v995
      %v1002 = vadd.f32 %v970, %v996
      %v1003 = vadd.f32 %v971, %v997
      %v1004 = vadd.f32 %v972, %v998
      %v1005 = vrot.slane %v984, 1
      %v1006 = vrot.slane %v985, 1
      %v1007 = vrot.slane %v986, 1
      %v1008 = vrot.slane %v987, 1
      %v1009 = vrot.slane %v988, 1
      %v1010 = vrot.slane %v989, 1
      %v1011 = vsel %vm362, %v1009, %v1010
      %v1012 = vsel %vm362, %v1008, %v1009
      %v1013 = vsel %vm362, %v1007, %v1008
      %v1014 = vsel %vm362, %v1006, %v1007
      %v1015 = vsel %vm362, %v1005, %v1006
      %v1016 = vsel %vm362, %v1010, %v1005
      %v1017 = vperm.slane %v991, 1
      %v1018 = vmul.f32 %v1015, %v1017
      %v1019 = vmul.f32 %v1014, %v1017
      %v1020 = vmul.f32 %v1013, %v1017
      %v1021 = vmul.f32 %v1012, %v1017
      %v1022 = vmul.f32 %v1011, %v1017
      %v1023 = vmul.f32 %v1016, %v1017
      %v1024 = vadd.f32 %v999, %v1018
      %v1025 = vadd.f32 %v1000, %v1019
      %v1026 = vadd.f32 %v1001, %v1020
      %v1027 = vadd.f32 %v1002, %v1021
      %v1028 = vadd.f32 %v1003, %v1022
      %v1029 = vadd.f32 %v1004, %v1023
      %v1030 = vrot.slane %v984, 2
      %v1031 = vrot.slane %v985, 2
      %v1032 = vrot.slane %v986, 2
      %v1033 = vrot.slane %v987, 2
      %v1034 = vrot.slane %v988, 2
      %v1035 = vrot.slane %v989, 2
      %v1036 = vsel %vm388, %v1034, %v1035
      %v1037 = vsel %vm388, %v1033, %v1034
      %v1038 = vsel %vm388, %v1032, %v1033
      %v1039 = vsel %vm388, %v1031, %v1032
      %v1040 = vsel %vm388, %v1030, %v1031
      %v1041 = vsel %vm388, %v1035, %v1030
      %v1042 = vld [vmem:[%s311 + $0x10] sm:$0x2]
      %v1043 = vunpack.c.l.bf16 %v1042
      %v1044 = vperm.slane %v1043, 2
      %v1045 = vmul.f32 %v1040, %v1044
      %v1046 = vmul.f32 %v1039, %v1044
      %v1047 = vmul.f32 %v1038, %v1044
      %v1048 = vmul.f32 %v1037, %v1044
      %v1049 = vmul.f32 %v1036, %v1044
      %v1050 = vmul.f32 %v1041, %v1044
      %v1051 = vadd.f32 %v1024, %v1045
      %v1052 = vadd.f32 %v1025, %v1046
      %v1053 = vadd.f32 %v1026, %v1047
      %v1054 = vadd.f32 %v1027, %v1048
      %v1055 = vadd.f32 %v1028, %v1049
      %v1056 = vadd.f32 %v1029, %v1050
      %v1057 = vrot.slane %v984, 3
      %v1058 = vrot.slane %v985, 3
      %v1059 = vrot.slane %v986, 3
      %v1060 = vrot.slane %v987, 3
      %v1061 = vrot.slane %v988, 3
      %v1062 = vrot.slane %v989, 3
      %v1063 = vsel %vm416, %v1061, %v1062
      %v1064 = vsel %vm416, %v1060, %v1061
      %v1065 = vsel %vm416, %v1059, %v1060
      %v1066 = vsel %vm416, %v1058, %v1059
      %v1067 = vsel %vm416, %v1057, %v1058
      %v1068 = vsel %vm416, %v1062, %v1057
      %v1069 = vperm.slane %v1043, 3
      %v1070 = vmul.f32 %v1067, %v1069
      %v1071 = vmul.f32 %v1066, %v1069
      %v1072 = vmul.f32 %v1065, %v1069
      %v1073 = vmul.f32 %v1064, %v1069
      %v1074 = vmul.f32 %v1063, %v1069
      %v1075 = vmul.f32 %v1068, %v1069
      %v1076 = vadd.f32 %v1051, %v1070
      %v1077 = vadd.f32 %v1052, %v1071
      %v1078 = vadd.f32 %v1053, %v1072
      %v1079 = vadd.f32 %v1054, %v1073
      %v1080 = vadd.f32 %v1055, %v1074
      %v1081 = vadd.f32 %v1056, %v1075
      %v1082 = vrot.slane %v984, 4
      %v1083 = vrot.slane %v985, 4
      %v1084 = vrot.slane %v986, 4
      %v1085 = vrot.slane %v987, 4
      %v1086 = vrot.slane %v988, 4
      %v1087 = vrot.slane %v989, 4
      %v1088 = vsel %vm442, %v1086, %v1087
      %v1089 = vsel %vm442, %v1085, %v1086
      %v1090 = vsel %vm442, %v1084, %v1085
      %v1091 = vsel %vm442, %v1083, %v1084
      %v1092 = vsel %vm442, %v1082, %v1083
      %v1093 = vsel %vm442, %v1087, %v1082
      %v1094 = vld [vmem:[%s311 + $0x10] sm:$0x4]
      %v1095 = vunpack.c.l.bf16 %v1094
      %v1096 = vperm.slane %v1095, 4
      %v1097 = vmul.f32 %v1092, %v1096
      %v1098 = vmul.f32 %v1091, %v1096
      %v1099 = vmul.f32 %v1090, %v1096
      %v1100 = vmul.f32 %v1089, %v1096
      %v1101 = vmul.f32 %v1088, %v1096
      %v1102 = vmul.f32 %v1093, %v1096
      %v1103 = vadd.f32 %v1076, %v1097
      %v1104 = vadd.f32 %v1077, %v1098
      %v1105 = vadd.f32 %v1078, %v1099
      %v1106 = vadd.f32 %v1079, %v1100
      %v1107 = vadd.f32 %v1080, %v1101
      %v1108 = vadd.f32 %v1081, %v1102
      %v1109 = vrot.slane %v984, 5
      %v1110 = vrot.slane %v985, 5
      %v1111 = vrot.slane %v986, 5
      %v1112 = vrot.slane %v987, 5
      %v1113 = vrot.slane %v988, 5
      %v1114 = vrot.slane %v989, 5
      %v1115 = vsel %vm470, %v1113, %v1114
      %v1116 = vsel %vm470, %v1112, %v1113
      %v1117 = vsel %vm470, %v1111, %v1112
      %v1118 = vsel %vm470, %v1110, %v1111
      %v1119 = vsel %vm470, %v1109, %v1110
      %v1120 = vsel %vm470, %v1114, %v1109
      %v1121 = vperm.slane %v1095, 5
      %v1122 = vmul.f32 %v1119, %v1121
      %v1123 = vmul.f32 %v1118, %v1121
      %v1124 = vmul.f32 %v1117, %v1121
      %v1125 = vmul.f32 %v1116, %v1121
      %v1126 = vmul.f32 %v1115, %v1121
      %v1127 = vmul.f32 %v1120, %v1121
      %v1128 = vadd.f32 %v1103, %v1122
      %v1129 = vadd.f32 %v1104, %v1123
      %v1130 = vadd.f32 %v1105, %v1124
      %v1131 = vadd.f32 %v1106, %v1125
      %v1132 = vadd.f32 %v1107, %v1126
      %v1133 = vadd.f32 %v1108, %v1127
      %s1134 = sadd.s32 %s322, 80
      %s1135 = sshra.s32 %s1134, 3
      %s1136 = sand.u32 %s1134, 7
      %s1137 = smul.addr %s1135, 4
      %s1138 = scalar_lea.vmem %s306, %s1137
      %v1139 = vld [vmem:[%s1138] sm:$0xf]
      %v1140 = vld [vmem:[%s1138 + $0x4] sm:$0xf]
      %v1141 = vld [vmem:[%s1138 + $0x8] sm:$0xf]
      %v1142 = vld [vmem:[%s1138 + $0xc] sm:$0xf]
      %v1143 = vld [vmem:[%s1138 + $0x10] sm:$0xf]
      %v1144 = vld [vmem:[%s1138 + $0x14] sm:$0xf]
      %v1145 = vunpack.c.l.bf16 %v1139
      %v1146 = vunpack.c.l.bf16 %v1140
      %v1147 = vunpack.c.l.bf16 %v1141
      %v1148 = vunpack.c.l.bf16 %v1142
      %v1149 = vunpack.c.l.bf16 %v1143
      %v1150 = vunpack.c.l.bf16 %v1144
      %v1151 = vld [vmem:[%s311 + $0x14] sm:$0x1]
      %v1152 = vunpack.c.l.bf16 %v1151
      %v1153 = vperm.slane %v1152, 0
      %v1154 = vmul.f32 %v1145, %v1153
      %v1155 = vmul.f32 %v1146, %v1153
      %v1156 = vmul.f32 %v1147, %v1153
      %v1157 = vmul.f32 %v1148, %v1153
      %v1158 = vmul.f32 %v1149, %v1153
      %v1159 = vmul.f32 %v1150, %v1153
      %v1160 = vadd.f32 %v1128, %v1154
      %v1161 = vadd.f32 %v1129, %v1155
      %v1162 = vadd.f32 %v1130, %v1156
      %v1163 = vadd.f32 %v1131, %v1157
      %v1164 = vadd.f32 %v1132, %v1158
      %v1165 = vadd.f32 %v1133, %v1159
      %v1166 = vrot.slane %v1145, 1
      %v1167 = vrot.slane %v1146, 1
      %v1168 = vrot.slane %v1147, 1
      %v1169 = vrot.slane %v1148, 1
      %v1170 = vrot.slane %v1149, 1
      %v1171 = vrot.slane %v1150, 1
      %v1172 = vsel %vm362, %v1170, %v1171
      %v1173 = vsel %vm362, %v1169, %v1170
      %v1174 = vsel %vm362, %v1168, %v1169
      %v1175 = vsel %vm362, %v1167, %v1168
      %v1176 = vsel %vm362, %v1166, %v1167
      %v1177 = vsel %vm362, %v1171, %v1166
      %v1178 = vperm.slane %v1152, 1
      %v1179 = vmul.f32 %v1176, %v1178
      %v1180 = vmul.f32 %v1175, %v1178
      %v1181 = vmul.f32 %v1174, %v1178
      %v1182 = vmul.f32 %v1173, %v1178
      %v1183 = vmul.f32 %v1172, %v1178
      %v1184 = vmul.f32 %v1177, %v1178
      %v1185 = vadd.f32 %v1160, %v1179
      %v1186 = vadd.f32 %v1161, %v1180
      %v1187 = vadd.f32 %v1162, %v1181
      %v1188 = vadd.f32 %v1163, %v1182
      %v1189 = vadd.f32 %v1164, %v1183
      %v1190 = vadd.f32 %v1165, %v1184
      %v1191 = vrot.slane %v1145, 2
      %v1192 = vrot.slane %v1146, 2
      %v1193 = vrot.slane %v1147, 2
      %v1194 = vrot.slane %v1148, 2
      %v1195 = vrot.slane %v1149, 2
      %v1196 = vrot.slane %v1150, 2
      %v1197 = vsel %vm388, %v1195, %v1196
      %v1198 = vsel %vm388, %v1194, %v1195
      %v1199 = vsel %vm388, %v1193, %v1194
      %v1200 = vsel %vm388, %v1192, %v1193
      %v1201 = vsel %vm388, %v1191, %v1192
      %v1202 = vsel %vm388, %v1196, %v1191
      %v1203 = vld [vmem:[%s311 + $0x14] sm:$0x2]
      %v1204 = vunpack.c.l.bf16 %v1203
      %v1205 = vperm.slane %v1204, 2
      %v1206 = vmul.f32 %v1201, %v1205
      %v1207 = vmul.f32 %v1200, %v1205
      %v1208 = vmul.f32 %v1199, %v1205
      %v1209 = vmul.f32 %v1198, %v1205
      %v1210 = vmul.f32 %v1197, %v1205
      %v1211 = vmul.f32 %v1202, %v1205
      %v1212 = vadd.f32 %v1185, %v1206
      %v1213 = vadd.f32 %v1186, %v1207
      %v1214 = vadd.f32 %v1187, %v1208
      %v1215 = vadd.f32 %v1188, %v1209
      %v1216 = vadd.f32 %v1189, %v1210
      %v1217 = vadd.f32 %v1190, %v1211
      %v1218 = vrot.slane %v1145, 3
      %v1219 = vrot.slane %v1146, 3
      %v1220 = vrot.slane %v1147, 3
      %v1221 = vrot.slane %v1148, 3
      %v1222 = vrot.slane %v1149, 3
      %v1223 = vrot.slane %v1150, 3
      %v1224 = vsel %vm416, %v1222, %v1223
      %v1225 = vsel %vm416, %v1221, %v1222
      %v1226 = vsel %vm416, %v1220, %v1221
      %v1227 = vsel %vm416, %v1219, %v1220
      %v1228 = vsel %vm416, %v1218, %v1219
      %v1229 = vsel %vm416, %v1223, %v1218
      %v1230 = vperm.slane %v1204, 3
      %v1231 = vmul.f32 %v1228, %v1230
      %v1232 = vmul.f32 %v1227, %v1230
      %v1233 = vmul.f32 %v1226, %v1230
      %v1234 = vmul.f32 %v1225, %v1230
      %v1235 = vmul.f32 %v1224, %v1230
      %v1236 = vmul.f32 %v1229, %v1230
      %v1237 = vadd.f32 %v1212, %v1231
      %v1238 = vadd.f32 %v1213, %v1232
      %v1239 = vadd.f32 %v1214, %v1233
      %v1240 = vadd.f32 %v1215, %v1234
      %v1241 = vadd.f32 %v1216, %v1235
      %v1242 = vadd.f32 %v1217, %v1236
      %v1243 = vrot.slane %v1145, 4
      %v1244 = vrot.slane %v1146, 4
      %v1245 = vrot.slane %v1147, 4
      %v1246 = vrot.slane %v1148, 4
      %v1247 = vrot.slane %v1149, 4
      %v1248 = vrot.slane %v1150, 4
      %v1249 = vsel %vm442, %v1247, %v1248
      %v1250 = vsel %vm442, %v1246, %v1247
      %v1251 = vsel %vm442, %v1245, %v1246
      %v1252 = vsel %vm442, %v1244, %v1245
      %v1253 = vsel %vm442, %v1243, %v1244
      %v1254 = vsel %vm442, %v1248, %v1243
      %v1255 = vld [vmem:[%s311 + $0x14] sm:$0x4]
      %v1256 = vunpack.c.l.bf16 %v1255
      %v1257 = vperm.slane %v1256, 4
      %v1258 = vmul.f32 %v1253, %v1257
      %v1259 = vmul.f32 %v1252, %v1257
      %v1260 = vmul.f32 %v1251, %v1257
      %v1261 = vmul.f32 %v1250, %v1257
      %v1262 = vmul.f32 %v1249, %v1257
      %v1263 = vmul.f32 %v1254, %v1257
      %v1264 = vadd.f32 %v1237, %v1258
      %v1265 = vadd.f32 %v1238, %v1259
      %v1266 = vadd.f32 %v1239, %v1260
      %v1267 = vadd.f32 %v1240, %v1261
      %v1268 = vadd.f32 %v1241, %v1262
      %v1269 = vadd.f32 %v1242, %v1263
      %v1270 = vrot.slane %v1145, 5
      %v1271 = vrot.slane %v1146, 5
      %v1272 = vrot.slane %v1147, 5
      %v1273 = vrot.slane %v1148, 5
      %v1274 = vrot.slane %v1149, 5
      %v1275 = vrot.slane %v1150, 5
      %v1276 = vsel %vm470, %v1274, %v1275
      %v1277 = vsel %vm470, %v1273, %v1274
      %v1278 = vsel %vm470, %v1272, %v1273
      %v1279 = vsel %vm470, %v1271, %v1272
      %v1280 = vsel %vm470, %v1270, %v1271
      %v1281 = vsel %vm470, %v1275, %v1270
      %v1282 = vperm.slane %v1256, 5
      %v1283 = vmul.f32 %v1280, %v1282
      %v1284 = vmul.f32 %v1279, %v1282
      %v1285 = vmul.f32 %v1278, %v1282
      %v1286 = vmul.f32 %v1277, %v1282
      %v1287 = vmul.f32 %v1276, %v1282
      %v1288 = vmul.f32 %v1281, %v1282
      %v1289 = vadd.f32 %v1264, %v1283
      %v1290 = vadd.f32 %v1265, %v1284
      %v1291 = vadd.f32 %v1266, %v1285
      %v1292 = vadd.f32 %v1267, %v1286
      %v1293 = vadd.f32 %v1268, %v1287
      %v1294 = vadd.f32 %v1269, %v1288
      %v1295 = vpack.c.bf16 %v1290, %v1289
      %v1296 = vpack.c.bf16 %v1292, %v1291
      %v1297 = vpack.c.bf16 %v1294, %v1293
      %v1298 = vld [vmem:[%s2] sm:$0xf]
      %v1299 = vld [vmem:[%s2 + $0x4] sm:$0xf]
      %v1300 = vld [vmem:[%s2 + $0x8] sm:$0xf]
      %v1301 = vld [vmem:[%s2 + $0xc] sm:$0xf]
      %v1302 = vld [vmem:[%s2 + $0x10] sm:$0xf]
      %v1303 = vld [vmem:[%s2 + $0x14] sm:$0xf]
      %v1304 = vld [vmem:[%s2 + $0x18] sm:$0xf]
      %v1305 = vld [vmem:[%s2 + $0x1c] sm:$0xf]
      %v1306 = vld [vmem:[%s2 + $0x20] sm:$0xf]
      %v1307 = vld [vmem:[%s2 + $0x24] sm:$0xf]
      %v1308 = vld [vmem:[%s2 + $0x28] sm:$0xf]
      %v1309 = vld [vmem:[%s2 + $0x2c] sm:$0xf]
      %v1310 = vld [vmem:[%s2 + $0x30] sm:$0xf]
      %v1311 = vld [vmem:[%s2 + $0x34] sm:$0xf]
      %v1312 = vld [vmem:[%s2 + $0x38] sm:$0xf]
      %v1313 = vld [vmem:[%s2 + $0x3c] sm:$0xf]
      %v1330 = vunpack.c.l.b16 %v1298
      %v1331 = vunpack.c.l.b16 %v1299
      %v1332 = vunpack.c.l.b16 %v1300
      %v1333 = vunpack.c.l.b16 %v1301
      %v1334 = vunpack.c.l.b16 %v1302
      %v1335 = vunpack.c.l.b16 %v1303
      %v1336 = vunpack.c.l.b16 %v1304
      %v1337 = vunpack.c.l.b16 %v1305
      %v1338 = vunpack.c.l.b16 %v1306
      %v1339 = vunpack.c.l.b16 %v1307
      %v1340 = vunpack.c.l.b16 %v1308
      %v1341 = vunpack.c.l.b16 %v1309
      %v1342 = vunpack.c.l.b16 %v1310
      %v1343 = vunpack.c.l.b16 %v1311
      %v1344 = vunpack.c.l.b16 %v1312
      %v1345 = vunpack.c.l.b16 %v1313
      %v1346 = vpack.c.b16 %v1331, %v1330
      %v1347 = vpack.c.b16 %v1333, %v1332
      %v1348 = vpack.c.b16 %v1335, %v1334
      %v1349 = vpack.c.b16 %v1337, %v1336
      %v1350 = vpack.c.b16 %v1339, %v1338
      %v1351 = vpack.c.b16 %v1341, %v1340
      %v1352 = vpack.c.b16 %v1343, %v1342
      %v1353 = vpack.c.b16 %v1345, %v1344
      %1362 = vmatpush.bf16.msra.mxu0 %v1353
      %1363 = vmatpush.bf16.msra.mxu0 %v1352
      %1364 = vmatpush.bf16.msra.mxu0 %v1351
      %1365 = vmatpush.bf16.msra.mxu0 %v1350
      %1366 = vmatpush.bf16.msra.mxu0 %v1349
      %1367 = vmatpush.bf16.msra.mxu0 %v1348
      %1368 = vmatpush.bf16.msra.mxu0 %v1347
      %1369 = vmatpush.bf16.msra.mxu0 %v1346
      %1370 = vmatmul.bf16.gmra.mxu0 %v1295
      %v1371 = vpop.f32.mrf.mxu0
      %v1372 = vadd.f32 0.0, %v1371
      %v1373 = vpop.f32.mrf.mxu0
      %v1374 = vadd.f32 0.0, %v1373
      %1375 = vmatmul.bf16.gmra.mxu0 %v1296
      %v1376 = vpop.f32.mrf.mxu0
      %v1377 = vadd.f32 0.0, %v1376
      %v1378 = vpop.f32.mrf.mxu0
      %v1379 = vadd.f32 0.0, %v1378
      %1380 = vmatmul.bf16.gmra.mxu0 %v1297
      %v1381 = vpop.f32.mrf.mxu0
      %v1382 = vadd.f32 0.0, %v1381
      %v1383 = vpop.f32.mrf.mxu0
      %v1384 = vadd.f32 0.0, %v1383
      %1385 = vdwg.mxu0
      %v1386 = vld [vmem:[%s3] sm:$0x1]
      %v1388 = vperm.slane %v1386, 0
      %v1390 = vmul.f32 %v1372, %v1388
      %v1391 = vmul.f32 %v1374, %v1388
      %v1392 = vmul.f32 %v1377, %v1388
      %v1393 = vmul.f32 %v1379, %v1388
      %v1394 = vmul.f32 %v1382, %v1388
      %v1395 = vmul.f32 %v1384, %v1388
      %v1396 = vld [vmem:[%s4] sm:$0x1]
      %v1398 = vperm.slane %v1396, 0
      %v1400 = vadd.f32 %v1390, %v1398
      %v1401 = vadd.f32 %v1391, %v1398
      %v1402 = vadd.f32 %v1392, %v1398
      %v1403 = vadd.f32 %v1393, %v1398
      %v1404 = vadd.f32 %v1394, %v1398
      %v1405 = vadd.f32 %v1395, %v1398
      %v1406 = vmax.f32 %v1400, 0.0
      %v1407 = vmax.f32 %v1401, 0.0
      %v1408 = vmax.f32 %v1402, 0.0
      %v1409 = vmax.f32 %v1403, 0.0
      %v1410 = vmax.f32 %v1404, 0.0
      %v1411 = vmax.f32 %v1405, 0.0
      %v1412 = vpack.c.bf16 %v1407, %v1406
      %v1413 = vpack.c.bf16 %v1409, %v1408
      %v1414 = vpack.c.bf16 %v1411, %v1410
      %v1415 = vld [vmem:[%s5] sm:$0xf]
      %v1416 = vld [vmem:[%s5 + $0x4] sm:$0xf]
      %v1417 = vld [vmem:[%s5 + $0x8] sm:$0xf]
      %v1418 = vld [vmem:[%s5 + $0xc] sm:$0xf]
      %v1419 = vld [vmem:[%s5 + $0x10] sm:$0xf]
      %v1420 = vld [vmem:[%s5 + $0x14] sm:$0xf]
      %v1421 = vld [vmem:[%s5 + $0x18] sm:$0xf]
      %v1422 = vld [vmem:[%s5 + $0x1c] sm:$0xf]
      %v1423 = vld [vmem:[%s5 + $0x20] sm:$0xf]
      %v1424 = vld [vmem:[%s5 + $0x24] sm:$0xf]
      %v1425 = vld [vmem:[%s5 + $0x28] sm:$0xf]
      %v1426 = vld [vmem:[%s5 + $0x2c] sm:$0xf]
      %v1427 = vld [vmem:[%s5 + $0x30] sm:$0xf]
      %v1428 = vld [vmem:[%s5 + $0x34] sm:$0xf]
      %v1429 = vld [vmem:[%s5 + $0x38] sm:$0xf]
      %v1430 = vld [vmem:[%s5 + $0x3c] sm:$0xf]
      %v1431 = vld [vmem:[%s6] sm:$0x1]
      %v1433 = vperm.slane %v1431, 0
      %v1451 = vunpack.c.l.b16 %v1415
      %v1452 = vunpack.c.l.b16 %v1416
      %v1453 = vunpack.c.l.b16 %v1417
      %v1454 = vunpack.c.l.b16 %v1418
      %v1455 = vunpack.c.l.b16 %v1419
      %v1456 = vunpack.c.l.b16 %v1420
      %v1457 = vunpack.c.l.b16 %v1421
      %v1458 = vunpack.c.l.b16 %v1422
      %v1459 = vunpack.c.l.b16 %v1423
      %v1460 = vunpack.c.l.b16 %v1424
      %v1461 = vunpack.c.l.b16 %v1425
      %v1462 = vunpack.c.l.b16 %v1426
      %v1463 = vunpack.c.l.b16 %v1427
      %v1464 = vunpack.c.l.b16 %v1428
      %v1465 = vunpack.c.l.b16 %v1429
      %v1466 = vunpack.c.l.b16 %v1430
      %v1467 = vpack.c.b16 %v1452, %v1451
      %v1468 = vpack.c.b16 %v1454, %v1453
      %v1469 = vpack.c.b16 %v1456, %v1455
      %v1470 = vpack.c.b16 %v1458, %v1457
      %v1471 = vpack.c.b16 %v1460, %v1459
      %v1472 = vpack.c.b16 %v1462, %v1461
      %v1473 = vpack.c.b16 %v1464, %v1463
      %v1474 = vpack.c.b16 %v1466, %v1465
      %1483 = vmatpush.bf16.msra.mxu0 %v1474
      %1484 = vmatpush.bf16.msra.mxu0 %v1473
      %1485 = vmatpush.bf16.msra.mxu0 %v1472
      %1486 = vmatpush.bf16.msra.mxu0 %v1471
      %1487 = vmatpush.bf16.msra.mxu0 %v1470
      %1488 = vmatpush.bf16.msra.mxu0 %v1469
      %1489 = vmatpush.bf16.msra.mxu0 %v1468
      %1490 = vmatpush.bf16.msra.mxu0 %v1467
      %1491 = vmatmul.bf16.gmra.mxu0 %v1412
      %v1492 = vpop.f32.mrf.mxu0
      %v1493 = vadd.f32 %v1433, %v1492
      %v1494 = vpop.f32.mrf.mxu0
      %v1495 = vadd.f32 %v1433, %v1494
      %1496 = vmatmul.bf16.gmra.mxu0 %v1413
      %v1497 = vpop.f32.mrf.mxu0
      %v1498 = vadd.f32 %v1433, %v1497
      %v1499 = vpop.f32.mrf.mxu0
      %v1500 = vadd.f32 %v1433, %v1499
      %1501 = vmatmul.bf16.gmra.mxu0 %v1414
      %v1502 = vpop.f32.mrf.mxu0
      %v1503 = vadd.f32 %v1433, %v1502
      %v1504 = vpop.f32.mrf.mxu0
      %v1505 = vadd.f32 %v1433, %v1504
      %1506 = vdwg.mxu0
      %1507 = vst [vmem:[%s320] sm:$0xff] %v1493
      %1508 = vst [vmem:[%s320 + $0x8] sm:$0xff] %v1495
      %1509 = vst [vmem:[%s320 + $0x10] sm:$0xff] %v1498
      %1510 = vst [vmem:[%s320 + $0x18] sm:$0xff] %v1500
      %1511 = vst [vmem:[%s320 + $0x20] sm:$0xff] %v1503
      %1512 = vst [vmem:[%s320 + $0x28] sm:$0xff] %v1505
      %s1513 = smul.u32 6, %s23
      %p1514 = scmp.lt.s32.totalorder %s22, 1
      %s1515 = scalar_select %p1514, %s22, 1
      %p1516 = scmp.lt.s32.totalorder %s1513, 17
      %s1517 = scalar_select %p1516, %s1513, 17
      %s1518 = smul.addr %s1515, 18
      %s1519 = sadd.s32 %s1517, %s1518
      %s1520 = smul.addr %s1519, 8
      %s1521 = scalar_lea.vmem %s7, %s1520
      // Predicated region
      $region49: #{depthwise_xcorr_forward.5} parent=47 // pred_check
        %p1522 = pneg %p207
      $region50: #{depthwise_xcorr_forward.5} parent=47 // pred_check_branch
        %1524 = sbr.rel (%p1522) target = $region52
      $region51: #{depthwise_xcorr_forward.5} parent=47 // pred_region
        %s1525 = smul.u32 6, %s23
      $region52: #{depthwise_xcorr_forward.5} parent=47 // pred_fallthru
        _
    $region48: #{depthwise_xcorr_forward.5} parent=5 // pred_fallthru
      _
    %p1526 = scmp.le.s32.totalorder 2, %s13
    // Predicated region
    $region53: #{depthwise_xcorr_forward.5} parent=5 // pred_check
      %p1527 = pneg %p1526
    $region54: #{depthwise_xcorr_forward.5} parent=5 // pred_check_branch
      %1529 = sbr.rel (%p1527) target = $region56
    $region55: #{depthwise_xcorr_forward.5} parent=5 // pred_region
      %s1530 = ssub.s32 %s13, 2
      // Predicated region
      $region57: #{depthwise_xcorr_forward.5} parent=55 // pred_check
        %p1531 = pneg %p213
      $region58: #{depthwise_xcorr_forward.5} parent=55 // pred_check_branch
        %1533 = sbr.rel (%p1531) target = $region60
      $region59: #{depthwise_xcorr_forward.5} parent=55 // pred_region
        %s1534 = smul.u32 6, %s25
        %p1535 = scmp.lt.s32.totalorder %s24, 1
        %s1536 = scalar_select %p1535, %s24, 1
        %p1537 = scmp.lt.s32.totalorder %s1534, 17
        %s1538 = scalar_select %p1537, %s1534, 17
        %s1539 = smul.addr %s1536, 18
        %s1540 = sadd.s32 %s1538, %s1539
        %s1541 = smul.addr %s1540, 8
        %s1542 = scalar_lea.vmem %s7, %s1541
      $region60: #{depthwise_xcorr_forward.5} parent=55 // pred_fallthru
        _
    $region56: #{depthwise_xcorr_forward.5} parent=5 // pred_fallthru
      _
  $region6: #{depthwise_xcorr_forward.5} parent=0 // loop_footer
    %s17 = sadd.s32 1, %s13
  $region7: #{depthwise_xcorr_forward.5} parent=0 // loop_footer_branch
    %12 = sbr.rel target = $region3
  $region8: #{depthwise_xcorr_forward.5} parent=0 // loop_exit
    _

</llo_original>
